<compile_context>
chip_gen: v6e
topology: v6e:2x2x1
jax: 0.10.0
libtpu: 0.0.40
codegen_flags: <defaults>
</compile_context>

<pallas_src>
import math
import functools

import jax
import jax.numpy as jnp
from jax.experimental import pallas as pl
from jax.experimental.pallas import tpu as pltpu


def transformer_block_kernel(
    x_ref,
    wqkv_ref, bqkv_ref,
    wo_ref, bo_ref, ga_ref, ba_ref,
    w1_ref, b1_ref, w2_ref, b2_ref, gf_ref, bf_ref,
    o_ref,
    *, num_heads, head_dim, eps):
    Bt, S, D = x_ref.shape
    H, Hd = num_heads, head_dim
    M = Bt * S

    x = x_ref[...].astype(jnp.float32).reshape(M, D)      # f32 residual path
    xb = x.astype(jnp.bfloat16)

    # ---- fused QKV projection: one lane-dense (M,D)x(D,3D) MXU matmul -----
    # 1/sqrt(Hd) is pre-folded into the Q columns of wqkv/bqkv.
    qkv = jnp.dot(xb, wqkv_ref[...],
                  preferred_element_type=jnp.float32) + bqkv_ref[...]  # (M,3D)

    def split_heads(base):
        # static lane slices -> (H*Bt, S, Hd); no broadcast/copy of x needed
        parts = [qkv[:, base + h * Hd: base + (h + 1) * Hd] for h in range(H)]
        return jnp.stack(parts, axis=0).reshape(H * Bt, S, Hd)

    qh = split_heads(0).astype(jnp.bfloat16)
    kh = split_heads(D).astype(jnp.bfloat16)
    vh = split_heads(2 * D).astype(jnp.bfloat16)

    # ---- scaled-dot-product attention, softmax kept in f32 -----------------
    # TODO(synk): flash-style KV tiling (m/l scratch) before production S so
    # only (tq, tk) score tiles live in VMEM (v7x has 64 MiB).
    s = jnp.einsum("bqd,bkd->bqk", qh, kh,
                   preferred_element_type=jnp.float32)     # (H*Bt, S, S)
    s = s - jnp.max(s, axis=-1, keepdims=True)
    p = jnp.exp(s)
    p = p * pl.reciprocal(jnp.sum(p, axis=-1, keepdims=True), approx=True)

    ctx = jnp.einsum("bqk,bkd->bqd", p.astype(jnp.bfloat16), vh,
                     preferred_element_type=jnp.float32)   # (H*Bt, S, Hd)

    # merge heads once (lane concat), then out_proj as ONE (M,D)x(D,D) matmul
    ctx = ctx.reshape(H, Bt, S, Hd)
    ctx_md = jnp.concatenate([ctx[h] for h in range(H)], axis=-1).reshape(M, D)
    attn = jnp.dot(ctx_md.astype(jnp.bfloat16), wo_ref[...],
                   preferred_element_type=jnp.float32) + bo_ref[...]   # (M, D)

    # ---- residual + LayerNorm (attn_norm), f32 -----------------------------
    h1 = attn + x
    mu1 = jnp.mean(h1, axis=-1, keepdims=True)
    var1 = jnp.mean((h1 - mu1) ** 2, axis=-1, keepdims=True)
    h1n = (h1 - mu1) * jax.lax.rsqrt(var1 + eps) * ga_ref[...] + ba_ref[...]

    # ---- FeedForward: Linear -> ReLU -> Linear (dropout = identity) --------
    # TODO(synk): tile over Dff (extra grid axis or emit_pipeline) before
    # production D so resident w1/w2 fit v7x's 64 MiB VMEM.
    f = jnp.dot(h1n.astype(jnp.bfloat16), w1_ref[...],
                preferred_element_type=jnp.float32) + b1_ref[...]
    f = jnp.maximum(f, 0.0)
    f = jnp.dot(f.astype(jnp.bfloat16), w2_ref[...],
                preferred_element_type=jnp.float32) + b2_ref[...]

    # ---- residual + LayerNorm (ffn_norm), f32 ------------------------------
    h2 = f + h1n
    mu2 = jnp.mean(h2, axis=-1, keepdims=True)
    var2 = jnp.mean((h2 - mu2) ** 2, axis=-1, keepdims=True)
    out = (h2 - mu2) * jax.lax.rsqrt(var2 + eps) * gf_ref[...] + bf_ref[...]

    o_ref[...] = out.reshape(Bt, S, D).astype(o_ref.dtype)


# ---------------- one-time weight preparation (hoisted + cached) ------------
def prepare_params(params, *, num_heads):
    """Rearrange / cast weights once (cache the result; NOT per forward call)."""
    D = params["wo"].shape[0]
    Hd = D // num_heads
    scale = 1.0 / math.sqrt(Hd)
    f32, bf16 = jnp.float32, jnp.bfloat16

    # fold 1/sqrt(Hd) into the Q third of the fused in_proj -> no in-kernel mul
    col_scale = jnp.concatenate(
        [jnp.full((1, D), scale, f32), jnp.ones((1, 2 * D), f32)], axis=1)
    wqkv = (params["wqkv"].astype(f32) * col_scale).astype(bf16)       # (D, 3D)
    bqkv = params["bqkv"].reshape(1, 3 * D).astype(f32) * col_scale    # (1, 3D)

    Dff = params["w1"].shape[1]
    return [
        wqkv, bqkv,
        params["wo"].astype(bf16),                       # (D, D)
        params["bo"].reshape(1, D).astype(f32),
        params["ga"].reshape(1, D).astype(f32),
        params["ba"].reshape(1, D).astype(f32),
        params["w1"].astype(bf16),                       # (D, Dff)
        params["b1"].reshape(1, Dff).astype(f32),
        params["w2"].astype(bf16),                       # (Dff, D)
        params["b2"].reshape(1, D).astype(f32),
        params["gf"].reshape(1, D).astype(f32),
        params["bf"].reshape(1, D).astype(f32),
    ]


def _pick_batch_tile(B, S, rows_target=256):
    """Sequences per grid step: target >= rows_target MXU rows (Bt*S), but keep
    >= 2 grid steps when B allows so 'parallel' can shard across v7x's 2 TCs."""
    divisors = [d for d in range(1, B + 1) if B % d == 0]
    cap = max(1, rows_target // max(S, 1))
    bt = max([d for d in divisors if d <= cap] or [1])
    if B // bt < 2 and B >= 2:
        bt = max(d for d in divisors if B // d >= 2)
    return bt


def _vmem_limit_bytes(plist, Bt, S, D, Dff, H, weight_buffers):
    weight_bytes = sum(int(p.size) * jnp.dtype(p.dtype).itemsize for p in plist)
    M = Bt * S
    io_bytes = 2 * 2 * (Bt * S * D * 4)                   # x + out, double-buffered
    act_bytes = 4 * (M * 3 * D                            # fused qkv (f32)
                     + 3 * M * D                          # per-head q/k/v views
                     + 2 * H * Bt * S * S                 # scores + probs (f32)
                     + 2 * M * D                          # ctx + attn
                     + 4 * M * D                          # residual / LN temps
                     + 2 * M * Dff)                       # FFN hidden
    est = weight_buffers * weight_bytes + io_bytes + 2 * act_bytes   # 2x headroom
    try:
        cap = pltpu.get_tpu_info().vmem_capacity_bytes    # 128 MiB v5e/v6e, 64 MiB v7x
    except Exception:
        cap = 64 << 20
    return int(min(max(est, 16 << 20), cap - (8 << 20)))


def transformer_block(x, prepared, *, num_heads, eps=1e-5):
    """x: (B, S, D) float32. `prepared`: cached output of prepare_params()."""
    B, S, D = x.shape
    if D % num_heads != 0:
        raise ValueError("encoder_dim must be divisible by num_heads")
    Hd = D // num_heads
    Dff = prepared[6].shape[1]
    Bt = _pick_batch_tile(B, S)
    grid = (B // Bt,)

    kernel = functools.partial(transformer_block_kernel,
                               num_heads=num_heads, head_dim=Hd, eps=eps)
    x_spec = pl.BlockSpec((Bt, S, D), lambda b: (b, 0, 0))
    out_spec = pl.BlockSpec((Bt, S, D), lambda b: (b, 0, 0))

    def call(single_buffer_weights):
        nbuf = 1 if single_buffer_weights else 2

        def weight_spec(a):
            nd = a.ndim
            if single_buffer_weights:
                # constant index_map across the grid -> one resident buffer
                return pl.BlockSpec(a.shape, lambda b, _nd=nd: (0,) * _nd,
                                    pipeline_mode=pl.Buffered(1))
            return pl.BlockSpec(a.shape, lambda b, _nd=nd: (0,) * _nd)

        return pl.pallas_call(
            kernel,
            out_shape=jax.ShapeDtypeStruct((B, S, D), x.dtype),
            grid=grid,
            in_specs=[x_spec] + [weight_spec(p) for p in prepared],
            out_specs=out_spec,
            compiler_params=pltpu.CompilerParams(
                dimension_semantics=("parallel",),   # batch blocks independent
                vmem_limit_bytes=_vmem_limit_bytes(
                    prepared, Bt, S, D, Dff, num_heads, nbuf)),
        )(x, *prepared)

    try:
        return call(True)
    except Exception:
        # pl.Buffered(1) not accepted by this jax version -> default buffering
        return call(False)


# ---------------- pure-JAX reference for correctness checking --------------
def reference_block(x, p, *, num_heads, eps=1e-5):
    B, S, D = x.shape
    Hd = D // num_heads
    qkv = x @ p["wqkv"] + p["bqkv"]
    q, k, v = qkv[..., :D], qkv[..., D:2 * D], qkv[..., 2 * D:]

    def heads(t):  # (B, S, D) -> (B, H, S, Hd)
        return t.reshape(B, S, num_heads, Hd).transpose(0, 2, 1, 3)

    qh, kh, vh = heads(q) / math.sqrt(Hd), heads(k), heads(v)
    s = jnp.einsum("bhqd,bhkd->bhqk", qh, kh)
    pmat = jax.nn.softmax(s, axis=-1)
    a = jnp.einsum("bhqk,bhkd->bhqd", pmat, vh).transpose(0, 2, 1, 3).reshape(B, S, D)
    a = a @ p["wo"] + p["bo"]

    def ln(t, g, b):
        mu = jnp.mean(t, axis=-1, keepdims=True)
        var = jnp.mean((t - mu) ** 2, axis=-1, keepdims=True)
        return (t - mu) * jax.lax.rsqrt(var + eps) * g + b

    h1 = ln(a + x, p["ga"], p["ba"])
    f = jnp.maximum(h1 @ p["w1"] + p["b1"], 0.0) @ p["w2"] + p["b2"]
    return ln(f + h1, p["gf"], p["bf"])


def make_params(key, D, ffn_expansion):
    Dff = D * ffn_expansion
    ks = jax.random.split(key, 8)
    std = 0.02
    return {
        # all projection weights stored as (in, out) = PyTorch W.T
        "wqkv": jax.random.normal(ks[0], (D, 3 * D), jnp.float32) * std,
        "bqkv": jax.random.normal(ks[1], (1, 3 * D), jnp.float32) * std,
        "wo":   jax.random.normal(ks[2], (D, D), jnp.float32) * std,
        "bo":   jax.random.normal(ks[3], (1, D), jnp.float32) * std,
        "ga":   jnp.ones((1, D), jnp.float32),
        "ba":   jnp.zeros((1, D), jnp.float32),
        "w1":   jax.random.normal(ks[4], (D, Dff), jnp.float32) * std,
        "b1":   jax.random.normal(ks[5], (1, Dff), jnp.float32) * std,
        "w2":   jax.random.normal(ks[6], (Dff, D), jnp.float32) * std,
        "b2":   jax.random.normal(ks[7], (1, D), jnp.float32) * std,
        "gf":   jnp.ones((1, D), jnp.float32),
        "bf":   jnp.zeros((1, D), jnp.float32),
    }


if __name__ == "__main__":
    # Small shapes consistent with the module: encoder_dim=64, heads=4, ffn x4.
    B, S, D = 4, 8, 64
    NUM_HEADS = 4
    FFN_EXPANSION = 4

    key = jax.random.PRNGKey(0)
    kx, kp = jax.random.split(key)
    x = jax.random.normal(kx, (B, S, D), jnp.float32)
    params = make_params(kp, D, FFN_EXPANSION)

    # Weight preparation is hoisted out of the forward path and cached.
    prepared = prepare_params(params, num_heads=NUM_HEADS)

    out = transformer_block(x, prepared, num_heads=NUM_HEADS)
    out = jax.block_until_ready(out)

    ref = reference_block(x, params, num_heads=NUM_HEADS)
    assert out.shape == (B, S, D)
    # Kernel uses bf16 matmul operands (f32 accumulation / softmax / LayerNorm),
    # so compare against the f32 reference with a bf16-appropriate tolerance.
    assert jnp.allclose(out, ref, rtol=2e-2, atol=2e-2), "mismatch vs JAX reference"
    print("KERNEL_OK")
</pallas_src>

<mosaic_0001>
module attributes {stable_mosaic.version = 11 : i64} {
  func.func @transformer_block_kernel(%arg0: i32, %arg1: memref<2x8x64xf32, #tpu.memory_space<vmem>>, %arg2: memref<64x192xbf16, #tpu.memory_space<vmem>>, %arg3: memref<1x192xf32, #tpu.memory_space<vmem>>, %arg4: memref<64x64xbf16, #tpu.memory_space<vmem>>, %arg5: memref<1x64xf32, #tpu.memory_space<vmem>>, %arg6: memref<1x64xf32, #tpu.memory_space<vmem>>, %arg7: memref<1x64xf32, #tpu.memory_space<vmem>>, %arg8: memref<64x256xbf16, #tpu.memory_space<vmem>>, %arg9: memref<1x256xf32, #tpu.memory_space<vmem>>, %arg10: memref<256x64xbf16, #tpu.memory_space<vmem>>, %arg11: memref<1x64xf32, #tpu.memory_space<vmem>>, %arg12: memref<1x64xf32, #tpu.memory_space<vmem>>, %arg13: memref<1x64xf32, #tpu.memory_space<vmem>>, %arg14: memref<2x8x64xf32, #tpu.memory_space<vmem>>) attributes {dimension_semantics = [#tpu.dimension_semantics<parallel>], iteration_bounds = array<i64: 2>, scalar_prefetch = 0 : i64, scratch_operands = 0 : i64, tpu.core_type = #tpu.core_type<tc>, window_params = [{transform_indices = @transform_0, window_bounds = array<i64: 2, 8, 64>}, {pipeline_mode = #tpu.pipeline_mode<synchronous>, transform_indices = @transform_1, window_bounds = array<i64: 64, 192>}, {pipeline_mode = #tpu.pipeline_mode<synchronous>, transform_indices = @transform_2, window_bounds = array<i64: 1, 192>}, {pipeline_mode = #tpu.pipeline_mode<synchronous>, transform_indices = @transform_3, window_bounds = array<i64: 64, 64>}, {pipeline_mode = #tpu.pipeline_mode<synchronous>, transform_indices = @transform_4, window_bounds = array<i64: 1, 64>}, {pipeline_mode = #tpu.pipeline_mode<synchronous>, transform_indices = @transform_5, window_bounds = array<i64: 1, 64>}, {pipeline_mode = #tpu.pipeline_mode<synchronous>, transform_indices = @transform_6, window_bounds = array<i64: 1, 64>}, {pipeline_mode = #tpu.pipeline_mode<synchronous>, transform_indices = @transform_7, window_bounds = array<i64: 64, 256>}, {pipeline_mode = #tpu.pipeline_mode<synchronous>, transform_indices = @transform_8, window_bounds = array<i64: 1, 256>}, {pipeline_mode = #tpu.pipeline_mode<synchronous>, transform_indices = @transform_9, window_bounds = array<i64: 256, 64>}, {pipeline_mode = #tpu.pipeline_mode<synchronous>, transform_indices = @transform_10, window_bounds = array<i64: 1, 64>}, {pipeline_mode = #tpu.pipeline_mode<synchronous>, transform_indices = @transform_11, window_bounds = array<i64: 1, 64>}, {pipeline_mode = #tpu.pipeline_mode<synchronous>, transform_indices = @transform_12, window_bounds = array<i64: 1, 64>}, {transform_indices = @transform_13, window_bounds = array<i64: 2, 8, 64>}]} {
    %c0 = arith.constant 0 : index
    %c0_0 = arith.constant 0 : index
    %c0_1 = arith.constant 0 : index
    %0 = vector.load %arg1[%c0, %c0_0, %c0_1] : memref<2x8x64xf32, #tpu.memory_space<vmem>>, vector<2x8x64xf32>
    %1 = vector.shape_cast %0 : vector<2x8x64xf32> to vector<16x64xf32>
    %2 = arith.truncf %1 : vector<16x64xf32> to vector<16x64xbf16>
    %c0_2 = arith.constant 0 : index
    %c0_3 = arith.constant 0 : index
    %3 = vector.load %arg2[%c0_2, %c0_3] : memref<64x192xbf16, #tpu.memory_space<vmem>>, vector<64x192xbf16>
    %cst = arith.constant dense<0.000000e+00> : vector<16x192xf32>
    %4 = tpu.matmul %2, %3, %cst {dimension_numbers = #tpu.dot_dimension_numbers<[1], [0], [0], [1], [0, 0, 1, 1], [], []>} : vector<16x64xbf16>, vector<64x192xbf16>, vector<16x192xf32> -> vector<16x192xf32>
    %c0_4 = arith.constant 0 : index
    %c0_5 = arith.constant 0 : index
    %5 = vector.load %arg3[%c0_4, %c0_5] : memref<1x192xf32, #tpu.memory_space<vmem>>, vector<1x192xf32>
    %6 = vector.broadcast %5 : vector<1x192xf32> to vector<16x192xf32>
    %7 = arith.addf %4, %6 : vector<16x192xf32>
    %8 = vector.extract_strided_slice %7 {offsets = [0, 0], sizes = [16, 16], strides = [1, 1]} : vector<16x192xf32> to vector<16x16xf32>
    %9 = vector.extract_strided_slice %7 {offsets = [0, 16], sizes = [16, 16], strides = [1, 1]} : vector<16x192xf32> to vector<16x16xf32>
    %10 = vector.extract_strided_slice %7 {offsets = [0, 32], sizes = [16, 16], strides = [1, 1]} : vector<16x192xf32> to vector<16x16xf32>
    %11 = vector.extract_strided_slice %7 {offsets = [0, 48], sizes = [16, 16], strides = [1, 1]} : vector<16x192xf32> to vector<16x16xf32>
    %12 = vector.shape_cast %8 : vector<16x16xf32> to vector<1x16x16xf32>
    %13 = vector.shape_cast %9 : vector<16x16xf32> to vector<1x16x16xf32>
    %14 = vector.shape_cast %10 : vector<16x16xf32> to vector<1x16x16xf32>
    %15 = vector.shape_cast %11 : vector<16x16xf32> to vector<1x16x16xf32>
    %16 = tpu.concatenate %12, %13, %14, %15 in 0 : vector<1x16x16xf32>, vector<1x16x16xf32>, vector<1x16x16xf32>, vector<1x16x16xf32> -> vector<4x16x16xf32>
    %17 = vector.shape_cast %16 : vector<4x16x16xf32> to vector<8x8x16xf32>
    %18 = arith.truncf %17 : vector<8x8x16xf32> to vector<8x8x16xbf16>
    %19 = vector.extract_strided_slice %7 {offsets = [0, 64], sizes = [16, 16], strides = [1, 1]} : vector<16x192xf32> to vector<16x16xf32>
    %20 = vector.extract_strided_slice %7 {offsets = [0, 80], sizes = [16, 16], strides = [1, 1]} : vector<16x192xf32> to vector<16x16xf32>
    %21 = vector.extract_strided_slice %7 {offsets = [0, 96], sizes = [16, 16], strides = [1, 1]} : vector<16x192xf32> to vector<16x16xf32>
    %22 = vector.extract_strided_slice %7 {offsets = [0, 112], sizes = [16, 16], strides = [1, 1]} : vector<16x192xf32> to vector<16x16xf32>
    %23 = vector.shape_cast %19 : vector<16x16xf32> to vector<1x16x16xf32>
    %24 = vector.shape_cast %20 : vector<16x16xf32> to vector<1x16x16xf32>
    %25 = vector.shape_cast %21 : vector<16x16xf32> to vector<1x16x16xf32>
    %26 = vector.shape_cast %22 : vector<16x16xf32> to vector<1x16x16xf32>
    %27 = tpu.concatenate %23, %24, %25, %26 in 0 : vector<1x16x16xf32>, vector<1x16x16xf32>, vector<1x16x16xf32>, vector<1x16x16xf32> -> vector<4x16x16xf32>
    %28 = vector.shape_cast %27 : vector<4x16x16xf32> to vector<8x8x16xf32>
    %29 = arith.truncf %28 : vector<8x8x16xf32> to vector<8x8x16xbf16>
    %30 = vector.extract_strided_slice %7 {offsets = [0, 128], sizes = [16, 16], strides = [1, 1]} : vector<16x192xf32> to vector<16x16xf32>
    %31 = vector.extract_strided_slice %7 {offsets = [0, 144], sizes = [16, 16], strides = [1, 1]} : vector<16x192xf32> to vector<16x16xf32>
    %32 = vector.extract_strided_slice %7 {offsets = [0, 160], sizes = [16, 16], strides = [1, 1]} : vector<16x192xf32> to vector<16x16xf32>
    %33 = vector.extract_strided_slice %7 {offsets = [0, 176], sizes = [16, 16], strides = [1, 1]} : vector<16x192xf32> to vector<16x16xf32>
    %34 = vector.shape_cast %30 : vector<16x16xf32> to vector<1x16x16xf32>
    %35 = vector.shape_cast %31 : vector<16x16xf32> to vector<1x16x16xf32>
    %36 = vector.shape_cast %32 : vector<16x16xf32> to vector<1x16x16xf32>
    %37 = vector.shape_cast %33 : vector<16x16xf32> to vector<1x16x16xf32>
    %38 = tpu.concatenate %34, %35, %36, %37 in 0 : vector<1x16x16xf32>, vector<1x16x16xf32>, vector<1x16x16xf32>, vector<1x16x16xf32> -> vector<4x16x16xf32>
    %39 = vector.shape_cast %38 : vector<4x16x16xf32> to vector<8x8x16xf32>
    %40 = arith.truncf %39 : vector<8x8x16xf32> to vector<8x8x16xbf16>
    "tpu.trace_start"() <{level = 10 : i32, message = "bqd,bkd->bqk"}> : () -> ()
    %cst_6 = arith.constant dense<0.000000e+00> : vector<8x8x8xf32>
    %41 = tpu.matmul %18, %29, %cst_6 {dimension_numbers = #tpu.dot_dimension_numbers<[2], [2], [1], [1], [0, 0, 0, 1, 1, 1], [0], [0]>} : vector<8x8x16xbf16>, vector<8x8x16xbf16>, vector<8x8x8xf32> -> vector<8x8x8xf32>
    "tpu.trace_stop"() : () -> ()
    %cst_7 = arith.constant dense<0xFF800000> : vector<8x8xf32>
    %42 = vector.multi_reduction <maximumf>, %41, %cst_7 [2] : vector<8x8x8xf32> to vector<8x8xf32>
    %43 = vector.shape_cast %42 : vector<8x8xf32> to vector<8x8x1xf32>
    %44 = vector.broadcast %43 : vector<8x8x1xf32> to vector<8x8x8xf32>
    %45 = arith.subf %41, %44 : vector<8x8x8xf32>
    %46 = math.exp %45 : vector<8x8x8xf32>
    %cst_8 = arith.constant dense<0.000000e+00> : vector<8x8xf32>
    %47 = vector.multi_reduction <add>, %46, %cst_8 [2] : vector<8x8x8xf32> to vector<8x8xf32>
    %48 = vector.shape_cast %47 : vector<8x8xf32> to vector<8x8x1xf32>
    %49 = tpu.reciprocal %48 {approx = true} : vector<8x8x1xf32> -> vector<8x8x1xf32>
    %50 = vector.broadcast %49 : vector<8x8x1xf32> to vector<8x8x8xf32>
    %51 = arith.mulf %46, %50 : vector<8x8x8xf32>
    %52 = arith.truncf %51 : vector<8x8x8xf32> to vector<8x8x8xbf16>
    "tpu.trace_start"() <{level = 10 : i32, message = "bqk,bkd->bqd"}> : () -> ()
    %cst_9 = arith.constant dense<0.000000e+00> : vector<8x8x16xf32>
    %53 = tpu.matmul %52, %40, %cst_9 {dimension_numbers = #tpu.dot_dimension_numbers<[2], [1], [1], [2], [0, 0, 0, 1, 1, 2], [0], [0]>} : vector<8x8x8xbf16>, vector<8x8x16xbf16>, vector<8x8x16xf32> -> vector<8x8x16xf32>
    "tpu.trace_stop"() : () -> ()
    %54 = vector.shape_cast %53 : vector<8x8x16xf32> to vector<4x2x8x16xf32>
    %55 = vector.extract_strided_slice %54 {offsets = [0, 0, 0, 0], sizes = [1, 2, 8, 16], strides = [1, 1, 1, 1]} : vector<4x2x8x16xf32> to vector<1x2x8x16xf32>
    %56 = vector.shape_cast %55 : vector<1x2x8x16xf32> to vector<2x8x16xf32>
    %57 = vector.extract_strided_slice %54 {offsets = [1, 0, 0, 0], sizes = [1, 2, 8, 16], strides = [1, 1, 1, 1]} : vector<4x2x8x16xf32> to vector<1x2x8x16xf32>
    %58 = vector.shape_cast %57 : vector<1x2x8x16xf32> to vector<2x8x16xf32>
    %59 = vector.extract_strided_slice %54 {offsets = [2, 0, 0, 0], sizes = [1, 2, 8, 16], strides = [1, 1, 1, 1]} : vector<4x2x8x16xf32> to vector<1x2x8x16xf32>
    %60 = vector.shape_cast %59 : vector<1x2x8x16xf32> to vector<2x8x16xf32>
    %61 = vector.extract_strided_slice %54 {offsets = [3, 0, 0, 0], sizes = [1, 2, 8, 16], strides = [1, 1, 1, 1]} : vector<4x2x8x16xf32> to vector<1x2x8x16xf32>
    %62 = vector.shape_cast %61 : vector<1x2x8x16xf32> to vector<2x8x16xf32>
    %63 = tpu.concatenate %56, %58, %60, %62 in 2 : vector<2x8x16xf32>, vector<2x8x16xf32>, vector<2x8x16xf32>, vector<2x8x16xf32> -> vector<2x8x64xf32>
    %64 = vector.shape_cast %63 : vector<2x8x64xf32> to vector<16x64xf32>
    %65 = arith.truncf %64 : vector<16x64xf32> to vector<16x64xbf16>
    %c0_10 = arith.constant 0 : index
    %c0_11 = arith.constant 0 : index
    %66 = vector.load %arg4[%c0_10, %c0_11] : memref<64x64xbf16, #tpu.memory_space<vmem>>, vector<64x64xbf16>
    %cst_12 = arith.constant dense<0.000000e+00> : vector<16x64xf32>
    %67 = tpu.matmul %65, %66, %cst_12 {dimension_numbers = #tpu.dot_dimension_numbers<[1], [0], [0], [1], [0, 0, 1, 1], [], []>} : vector<16x64xbf16>, vector<64x64xbf16>, vector<16x64xf32> -> vector<16x64xf32>
    %c0_13 = arith.constant 0 : index
    %c0_14 = arith.constant 0 : index
    %68 = vector.load %arg5[%c0_13, %c0_14] : memref<1x64xf32, #tpu.memory_space<vmem>>, vector<1x64xf32>
    %69 = vector.broadcast %68 : vector<1x64xf32> to vector<16x64xf32>
    %70 = arith.addf %67, %69 : vector<16x64xf32>
    %71 = arith.addf %70, %1 : vector<16x64xf32>
    %cst_15 = arith.constant dense<0.000000e+00> : vector<16xf32>
    %72 = vector.multi_reduction <add>, %71, %cst_15 [1] : vector<16x64xf32> to vector<16xf32>
    %73 = vector.shape_cast %72 : vector<16xf32> to vector<16x1xf32>
    %cst_16 = arith.constant 6.400000e+01 : f32
    %74 = vector.broadcast %cst_16 : f32 to vector<16x1xf32>
    %75 = arith.divf %73, %74 : vector<16x1xf32>
    %76 = vector.broadcast %75 : vector<16x1xf32> to vector<16x64xf32>
    %77 = arith.subf %71, %76 : vector<16x64xf32>
    %78 = arith.mulf %77, %77 : vector<16x64xf32>
    %cst_17 = arith.constant dense<0.000000e+00> : vector<16xf32>
    %79 = vector.multi_reduction <add>, %78, %cst_17 [1] : vector<16x64xf32> to vector<16xf32>
    %80 = vector.shape_cast %79 : vector<16xf32> to vector<16x1xf32>
    %cst_18 = arith.constant 6.400000e+01 : f32
    %81 = vector.broadcast %cst_18 : f32 to vector<16x1xf32>
    %82 = arith.divf %80, %81 : vector<16x1xf32>
    %83 = vector.broadcast %75 : vector<16x1xf32> to vector<16x64xf32>
    %84 = arith.subf %71, %83 : vector<16x64xf32>
    %cst_19 = arith.constant 9.99999974E-6 : f32
    %85 = vector.broadcast %cst_19 : f32 to vector<16x1xf32>
    %86 = arith.addf %82, %85 : vector<16x1xf32>
    %87 = math.rsqrt %86 : vector<16x1xf32>
    %88 = vector.broadcast %87 : vector<16x1xf32> to vector<16x64xf32>
    %89 = arith.mulf %84, %88 : vector<16x64xf32>
    %c0_20 = arith.constant 0 : index
    %c0_21 = arith.constant 0 : index
    %90 = vector.load %arg6[%c0_20, %c0_21] : memref<1x64xf32, #tpu.memory_space<vmem>>, vector<1x64xf32>
    %91 = vector.broadcast %90 : vector<1x64xf32> to vector<16x64xf32>
    %92 = arith.mulf %89, %91 : vector<16x64xf32>
    %c0_22 = arith.constant 0 : index
    %c0_23 = arith.constant 0 : index
    %93 = vector.load %arg7[%c0_22, %c0_23] : memref<1x64xf32, #tpu.memory_space<vmem>>, vector<1x64xf32>
    %94 = vector.broadcast %93 : vector<1x64xf32> to vector<16x64xf32>
    %95 = arith.addf %92, %94 : vector<16x64xf32>
    %96 = arith.truncf %95 : vector<16x64xf32> to vector<16x64xbf16>
    %c0_24 = arith.constant 0 : index
    %c0_25 = arith.constant 0 : index
    %97 = vector.load %arg8[%c0_24, %c0_25] : memref<64x256xbf16, #tpu.memory_space<vmem>>, vector<64x256xbf16>
    %cst_26 = arith.constant dense<0.000000e+00> : vector<16x256xf32>
    %98 = tpu.matmul %96, %97, %cst_26 {dimension_numbers = #tpu.dot_dimension_numbers<[1], [0], [0], [1], [0, 0, 1, 1], [], []>} : vector<16x64xbf16>, vector<64x256xbf16>, vector<16x256xf32> -> vector<16x256xf32>
    %c0_27 = arith.constant 0 : index
    %c0_28 = arith.constant 0 : index
    %99 = vector.load %arg9[%c0_27, %c0_28] : memref<1x256xf32, #tpu.memory_space<vmem>>, vector<1x256xf32>
    %100 = vector.broadcast %99 : vector<1x256xf32> to vector<16x256xf32>
    %101 = arith.addf %98, %100 : vector<16x256xf32>
    %cst_29 = arith.constant 0.000000e+00 : f32
    %102 = vector.broadcast %cst_29 : f32 to vector<16x256xf32>
    %103 = arith.maximumf %101, %102 : vector<16x256xf32>
    %104 = arith.truncf %103 : vector<16x256xf32> to vector<16x256xbf16>
    %c0_30 = arith.constant 0 : index
    %c0_31 = arith.constant 0 : index
    %105 = vector.load %arg10[%c0_30, %c0_31] : memref<256x64xbf16, #tpu.memory_space<vmem>>, vector<256x64xbf16>
    %cst_32 = arith.constant dense<0.000000e+00> : vector<16x64xf32>
    %106 = tpu.matmul %104, %105, %cst_32 {dimension_numbers = #tpu.dot_dimension_numbers<[1], [0], [0], [1], [0, 0, 1, 1], [], []>} : vector<16x256xbf16>, vector<256x64xbf16>, vector<16x64xf32> -> vector<16x64xf32>
    %c0_33 = arith.constant 0 : index
    %c0_34 = arith.constant 0 : index
    %107 = vector.load %arg11[%c0_33, %c0_34] : memref<1x64xf32, #tpu.memory_space<vmem>>, vector<1x64xf32>
    %108 = vector.broadcast %107 : vector<1x64xf32> to vector<16x64xf32>
    %109 = arith.addf %106, %108 : vector<16x64xf32>
    %110 = arith.addf %109, %95 : vector<16x64xf32>
    %cst_35 = arith.constant dense<0.000000e+00> : vector<16xf32>
    %111 = vector.multi_reduction <add>, %110, %cst_35 [1] : vector<16x64xf32> to vector<16xf32>
    %112 = vector.shape_cast %111 : vector<16xf32> to vector<16x1xf32>
    %cst_36 = arith.constant 6.400000e+01 : f32
    %113 = vector.broadcast %cst_36 : f32 to vector<16x1xf32>
    %114 = arith.divf %112, %113 : vector<16x1xf32>
    %115 = vector.broadcast %114 : vector<16x1xf32> to vector<16x64xf32>
    %116 = arith.subf %110, %115 : vector<16x64xf32>
    %117 = arith.mulf %116, %116 : vector<16x64xf32>
    %cst_37 = arith.constant dense<0.000000e+00> : vector<16xf32>
    %118 = vector.multi_reduction <add>, %117, %cst_37 [1] : vector<16x64xf32> to vector<16xf32>
    %119 = vector.shape_cast %118 : vector<16xf32> to vector<16x1xf32>
    %cst_38 = arith.constant 6.400000e+01 : f32
    %120 = vector.broadcast %cst_38 : f32 to vector<16x1xf32>
    %121 = arith.divf %119, %120 : vector<16x1xf32>
    %122 = vector.broadcast %114 : vector<16x1xf32> to vector<16x64xf32>
    %123 = arith.subf %110, %122 : vector<16x64xf32>
    %cst_39 = arith.constant 9.99999974E-6 : f32
    %124 = vector.broadcast %cst_39 : f32 to vector<16x1xf32>
    %125 = arith.addf %121, %124 : vector<16x1xf32>
    %126 = math.rsqrt %125 : vector<16x1xf32>
    %127 = vector.broadcast %126 : vector<16x1xf32> to vector<16x64xf32>
    %128 = arith.mulf %123, %127 : vector<16x64xf32>
    %c0_40 = arith.constant 0 : index
    %c0_41 = arith.constant 0 : index
    %129 = vector.load %arg12[%c0_40, %c0_41] : memref<1x64xf32, #tpu.memory_space<vmem>>, vector<1x64xf32>
    %130 = vector.broadcast %129 : vector<1x64xf32> to vector<16x64xf32>
    %131 = arith.mulf %128, %130 : vector<16x64xf32>
    %c0_42 = arith.constant 0 : index
    %c0_43 = arith.constant 0 : index
    %132 = vector.load %arg13[%c0_42, %c0_43] : memref<1x64xf32, #tpu.memory_space<vmem>>, vector<1x64xf32>
    %133 = vector.broadcast %132 : vector<1x64xf32> to vector<16x64xf32>
    %134 = arith.addf %131, %133 : vector<16x64xf32>
    %135 = vector.shape_cast %134 : vector<16x64xf32> to vector<2x8x64xf32>
    %c0_44 = arith.constant 0 : index
    %c0_45 = arith.constant 0 : index
    %c0_46 = arith.constant 0 : index
    %136 = vector.load %arg14[%c0_44, %c0_45, %c0_46] : memref<2x8x64xf32, #tpu.memory_space<vmem>>, vector<2x8x64xf32>
    tpu.vector_store %arg14[%c0_44, %c0_45, %c0_46], %135 {strides = array<i32>} : memref<2x8x64xf32, #tpu.memory_space<vmem>>, vector<2x8x64xf32>,
    return
  }
  func.func @transform_0(%arg0: i32) -> (i32, i32, i32) {
    %c0_i32 = arith.constant 0 : i32
    %c0_i32_0 = arith.constant 0 : i32
    %c0_i32_1 = arith.constant 0 : i32
    return %arg0, %c0_i32, %c0_i32_0 : i32, i32, i32
  }
  func.func @transform_1(%arg0: i32) -> (i32, i32) {
    %c0_i32 = arith.constant 0 : i32
    %c0_i32_0 = arith.constant 0 : i32
    %c0_i32_1 = arith.constant 0 : i32
    return %c0_i32, %c0_i32_0 : i32, i32
  }
  func.func @transform_2(%arg0: i32) -> (i32, i32) {
    %c0_i32 = arith.constant 0 : i32
    %c0_i32_0 = arith.constant 0 : i32
    %c0_i32_1 = arith.constant 0 : i32
    return %c0_i32, %c0_i32_0 : i32, i32
  }
  func.func @transform_3(%arg0: i32) -> (i32, i32) {
    %c0_i32 = arith.constant 0 : i32
    %c0_i32_0 = arith.constant 0 : i32
    %c0_i32_1 = arith.constant 0 : i32
    return %c0_i32, %c0_i32_0 : i32, i32
  }
  func.func @transform_4(%arg0: i32) -> (i32, i32) {
    %c0_i32 = arith.constant 0 : i32
    %c0_i32_0 = arith.constant 0 : i32
    %c0_i32_1 = arith.constant 0 : i32
    return %c0_i32, %c0_i32_0 : i32, i32
  }
  func.func @transform_5(%arg0: i32) -> (i32, i32) {
    %c0_i32 = arith.constant 0 : i32
    %c0_i32_0 = arith.constant 0 : i32
    %c0_i32_1 = arith.constant 0 : i32
    return %c0_i32, %c0_i32_0 : i32, i32
  }
  func.func @transform_6(%arg0: i32) -> (i32, i32) {
    %c0_i32 = arith.constant 0 : i32
    %c0_i32_0 = arith.constant 0 : i32
    %c0_i32_1 = arith.constant 0 : i32
    return %c0_i32, %c0_i32_0 : i32, i32
  }
  func.func @transform_7(%arg0: i32) -> (i32, i32) {
    %c0_i32 = arith.constant 0 : i32
    %c0_i32_0 = arith.constant 0 : i32
    %c0_i32_1 = arith.constant 0 : i32
    return %c0_i32, %c0_i32_0 : i32, i32
  }
  func.func @transform_8(%arg0: i32) -> (i32, i32) {
    %c0_i32 = arith.constant 0 : i32
    %c0_i32_0 = arith.constant 0 : i32
    %c0_i32_1 = arith.constant 0 : i32
    return %c0_i32, %c0_i32_0 : i32, i32
  }
  func.func @transform_9(%arg0: i32) -> (i32, i32) {
    %c0_i32 = arith.constant 0 : i32
    %c0_i32_0 = arith.constant 0 : i32
    %c0_i32_1 = arith.constant 0 : i32
    return %c0_i32, %c0_i32_0 : i32, i32
  }
  func.func @transform_10(%arg0: i32) -> (i32, i32) {
    %c0_i32 = arith.constant 0 : i32
    %c0_i32_0 = arith.constant 0 : i32
    %c0_i32_1 = arith.constant 0 : i32
    return %c0_i32, %c0_i32_0 : i32, i32
  }
  func.func @transform_11(%arg0: i32) -> (i32, i32) {
    %c0_i32 = arith.constant 0 : i32
    %c0_i32_0 = arith.constant 0 : i32
    %c0_i32_1 = arith.constant 0 : i32
    return %c0_i32, %c0_i32_0 : i32, i32
  }
  func.func @transform_12(%arg0: i32) -> (i32, i32) {
    %c0_i32 = arith.constant 0 : i32
    %c0_i32_0 = arith.constant 0 : i32
    %c0_i32_1 = arith.constant 0 : i32
    return %c0_i32, %c0_i32_0 : i32, i32
  }
  func.func @transform_13(%arg0: i32) -> (i32, i32, i32) {
    %c0_i32 = arith.constant 0 : i32
    %c0_i32_0 = arith.constant 0 : i32
    %c0_i32_1 = arith.constant 0 : i32
    return %arg0, %c0_i32, %c0_i32_0 : i32, i32, i32
  }
}

module attributes {stable_mosaic.version = 11 : i64} {
  func.func @transformer_block_kernel(%arg0: i32, %arg1: memref<2x8x64xf32, #tpu.memory_space<vmem>>, %arg2: memref<64x192xbf16, #tpu.memory_space<vmem>>, %arg3: memref<1x192xf32, #tpu.memory_space<vmem>>, %arg4: memref<64x64xbf16, #tpu.memory_space<vmem>>, %arg5: memref<1x64xf32, #tpu.memory_space<vmem>>, %arg6: memref<1x64xf32, #tpu.memory_space<vmem>>, %arg7: memref<1x64xf32, #tpu.memory_space<vmem>>, %arg8: memref<64x256xbf16, #tpu.memory_space<vmem>>, %arg9: memref<1x256xf32, #tpu.memory_space<vmem>>, %arg10: memref<256x64xbf16, #tpu.memory_space<vmem>>, %arg11: memref<1x64xf32, #tpu.memory_space<vmem>>, %arg12: memref<1x64xf32, #tpu.memory_space<vmem>>, %arg13: memref<1x64xf32, #tpu.memory_space<vmem>>, %arg14: memref<2x8x64xf32, #tpu.memory_space<vmem>>) attributes {dimension_semantics = [#tpu.dimension_semantics<parallel>], iteration_bounds = array<i64: 2>, scalar_prefetch = 0 : i64, scratch_operands = 0 : i64, tpu.core_type = #tpu.core_type<tc>, window_params = [{transform_indices = @transform_0, window_bounds = array<i64: 2, 8, 64>}, {pipeline_mode = #tpu.pipeline_mode<synchronous>, transform_indices = @transform_1, window_bounds = array<i64: 64, 192>}, {pipeline_mode = #tpu.pipeline_mode<synchronous>, transform_indices = @transform_2, window_bounds = array<i64: 1, 192>}, {pipeline_mode = #tpu.pipeline_mode<synchronous>, transform_indices = @transform_3, window_bounds = array<i64: 64, 64>}, {pipeline_mode = #tpu.pipeline_mode<synchronous>, transform_indices = @transform_4, window_bounds = array<i64: 1, 64>}, {pipeline_mode = #tpu.pipeline_mode<synchronous>, transform_indices = @transform_5, window_bounds = array<i64: 1, 64>}, {pipeline_mode = #tpu.pipeline_mode<synchronous>, transform_indices = @transform_6, window_bounds = array<i64: 1, 64>}, {pipeline_mode = #tpu.pipeline_mode<synchronous>, transform_indices = @transform_7, window_bounds = array<i64: 64, 256>}, {pipeline_mode = #tpu.pipeline_mode<synchronous>, transform_indices = @transform_8, window_bounds = array<i64: 1, 256>}, {pipeline_mode = #tpu.pipeline_mode<synchronous>, transform_indices = @transform_9, window_bounds = array<i64: 256, 64>}, {pipeline_mode = #tpu.pipeline_mode<synchronous>, transform_indices = @transform_10, window_bounds = array<i64: 1, 64>}, {pipeline_mode = #tpu.pipeline_mode<synchronous>, transform_indices = @transform_11, window_bounds = array<i64: 1, 64>}, {pipeline_mode = #tpu.pipeline_mode<synchronous>, transform_indices = @transform_12, window_bounds = array<i64: 1, 64>}, {transform_indices = @transform_13, window_bounds = array<i64: 2, 8, 64>}]} {
    %c0 = arith.constant 0 : index
    %c0_0 = arith.constant 0 : index
    %c0_1 = arith.constant 0 : index
    %0 = vector.load %arg1[%c0, %c0_0, %c0_1] : memref<2x8x64xf32, #tpu.memory_space<vmem>>, vector<2x8x64xf32>
    %1 = vector.shape_cast %0 : vector<2x8x64xf32> to vector<16x64xf32>
    %2 = arith.truncf %1 : vector<16x64xf32> to vector<16x64xbf16>
    %c0_2 = arith.constant 0 : index
    %c0_3 = arith.constant 0 : index
    %3 = vector.load %arg2[%c0_2, %c0_3] : memref<64x192xbf16, #tpu.memory_space<vmem>>, vector<64x192xbf16>
    %cst = arith.constant dense<0.000000e+00> : vector<16x192xf32>
    %4 = tpu.matmul %2, %3, %cst {dimension_numbers = #tpu.dot_dimension_numbers<[1], [0], [0], [1], [0, 0, 1, 1], [], []>} : vector<16x64xbf16>, vector<64x192xbf16>, vector<16x192xf32> -> vector<16x192xf32>
    %c0_4 = arith.constant 0 : index
    %c0_5 = arith.constant 0 : index
    %5 = vector.load %arg3[%c0_4, %c0_5] : memref<1x192xf32, #tpu.memory_space<vmem>>, vector<1x192xf32>
    %6 = vector.broadcast %5 : vector<1x192xf32> to vector<16x192xf32>
    %7 = arith.addf %4, %6 : vector<16x192xf32>
    %8 = vector.extract_strided_slice %7 {offsets = [0, 0], sizes = [16, 16], strides = [1, 1]} : vector<16x192xf32> to vector<16x16xf32>
    %9 = vector.extract_strided_slice %7 {offsets = [0, 16], sizes = [16, 16], strides = [1, 1]} : vector<16x192xf32> to vector<16x16xf32>
    %10 = vector.extract_strided_slice %7 {offsets = [0, 32], sizes = [16, 16], strides = [1, 1]} : vector<16x192xf32> to vector<16x16xf32>
    %11 = vector.extract_strided_slice %7 {offsets = [0, 48], sizes = [16, 16], strides = [1, 1]} : vector<16x192xf32> to vector<16x16xf32>
    %12 = vector.shape_cast %8 : vector<16x16xf32> to vector<1x16x16xf32>
    %13 = vector.shape_cast %9 : vector<16x16xf32> to vector<1x16x16xf32>
    %14 = vector.shape_cast %10 : vector<16x16xf32> to vector<1x16x16xf32>
    %15 = vector.shape_cast %11 : vector<16x16xf32> to vector<1x16x16xf32>
    %16 = tpu.concatenate %12, %13, %14, %15 in 0 : vector<1x16x16xf32>, vector<1x16x16xf32>, vector<1x16x16xf32>, vector<1x16x16xf32> -> vector<4x16x16xf32>
    %17 = vector.shape_cast %16 : vector<4x16x16xf32> to vector<8x8x16xf32>
    %18 = arith.truncf %17 : vector<8x8x16xf32> to vector<8x8x16xbf16>
    %19 = vector.extract_strided_slice %7 {offsets = [0, 64], sizes = [16, 16], strides = [1, 1]} : vector<16x192xf32> to vector<16x16xf32>
    %20 = vector.extract_strided_slice %7 {offsets = [0, 80], sizes = [16, 16], strides = [1, 1]} : vector<16x192xf32> to vector<16x16xf32>
    %21 = vector.extract_strided_slice %7 {offsets = [0, 96], sizes = [16, 16], strides = [1, 1]} : vector<16x192xf32> to vector<16x16xf32>
    %22 = vector.extract_strided_slice %7 {offsets = [0, 112], sizes = [16, 16], strides = [1, 1]} : vector<16x192xf32> to vector<16x16xf32>
    %23 = vector.shape_cast %19 : vector<16x16xf32> to vector<1x16x16xf32>
    %24 = vector.shape_cast %20 : vector<16x16xf32> to vector<1x16x16xf32>
    %25 = vector.shape_cast %21 : vector<16x16xf32> to vector<1x16x16xf32>
    %26 = vector.shape_cast %22 : vector<16x16xf32> to vector<1x16x16xf32>
    %27 = tpu.concatenate %23, %24, %25, %26 in 0 : vector<1x16x16xf32>, vector<1x16x16xf32>, vector<1x16x16xf32>, vector<1x16x16xf32> -> vector<4x16x16xf32>
    %28 = vector.shape_cast %27 : vector<4x16x16xf32> to vector<8x8x16xf32>
    %29 = arith.truncf %28 : vector<8x8x16xf32> to vector<8x8x16xbf16>
    %30 = vector.extract_strided_slice %7 {offsets = [0, 128], sizes = [16, 16], strides = [1, 1]} : vector<16x192xf32> to vector<16x16xf32>
    %31 = vector.extract_strided_slice %7 {offsets = [0, 144], sizes = [16, 16], strides = [1, 1]} : vector<16x192xf32> to vector<16x16xf32>
    %32 = vector.extract_strided_slice %7 {offsets = [0, 160], sizes = [16, 16], strides = [1, 1]} : vector<16x192xf32> to vector<16x16xf32>
    %33 = vector.extract_strided_slice %7 {offsets = [0, 176], sizes = [16, 16], strides = [1, 1]} : vector<16x192xf32> to vector<16x16xf32>
    %34 = vector.shape_cast %30 : vector<16x16xf32> to vector<1x16x16xf32>
    %35 = vector.shape_cast %31 : vector<16x16xf32> to vector<1x16x16xf32>
    %36 = vector.shape_cast %32 : vector<16x16xf32> to vector<1x16x16xf32>
    %37 = vector.shape_cast %33 : vector<16x16xf32> to vector<1x16x16xf32>
    %38 = tpu.concatenate %34, %35, %36, %37 in 0 : vector<1x16x16xf32>, vector<1x16x16xf32>, vector<1x16x16xf32>, vector<1x16x16xf32> -> vector<4x16x16xf32>
    %39 = vector.shape_cast %38 : vector<4x16x16xf32> to vector<8x8x16xf32>
    %40 = arith.truncf %39 : vector<8x8x16xf32> to vector<8x8x16xbf16>
    "tpu.trace_start"() <{level = 10 : i32, message = "bqd,bkd->bqk"}> : () -> ()
    %cst_6 = arith.constant dense<0.000000e+00> : vector<8x8x8xf32>
    %41 = tpu.matmul %18, %29, %cst_6 {dimension_numbers = #tpu.dot_dimension_numbers<[2], [2], [1], [1], [0, 0, 0, 1, 1, 1], [0], [0]>} : vector<8x8x16xbf16>, vector<8x8x16xbf16>, vector<8x8x8xf32> -> vector<8x8x8xf32>
    "tpu.trace_stop"() : () -> ()
    %cst_7 = arith.constant dense<0xFF800000> : vector<8x8xf32>
    %42 = vector.multi_reduction <maximumf>, %41, %cst_7 [2] : vector<8x8x8xf32> to vector<8x8xf32>
    %43 = vector.shape_cast %42 : vector<8x8xf32> to vector<8x8x1xf32>
    %44 = vector.broadcast %43 : vector<8x8x1xf32> to vector<8x8x8xf32>
    %45 = arith.subf %41, %44 : vector<8x8x8xf32>
    %46 = math.exp %45 : vector<8x8x8xf32>
    %cst_8 = arith.constant dense<0.000000e+00> : vector<8x8xf32>
    %47 = vector.multi_reduction <add>, %46, %cst_8 [2] : vector<8x8x8xf32> to vector<8x8xf32>
    %48 = vector.shape_cast %47 : vector<8x8xf32> to vector<8x8x1xf32>
    %49 = tpu.reciprocal %48 {approx = true} : vector<8x8x1xf32> -> vector<8x8x1xf32>
    %50 = vector.broadcast %49 : vector<8x8x1xf32> to vector<8x8x8xf32>
    %51 = arith.mulf %46, %50 : vector<8x8x8xf32>
    %52 = arith.truncf %51 : vector<8x8x8xf32> to vector<8x8x8xbf16>
    "tpu.trace_start"() <{level = 10 : i32, message = "bqk,bkd->bqd"}> : () -> ()
    %cst_9 = arith.constant dense<0.000000e+00> : vector<8x8x16xf32>
    %53 = tpu.matmul %52, %40, %cst_9 {dimension_numbers = #tpu.dot_dimension_numbers<[2], [1], [1], [2], [0, 0, 0, 1, 1, 2], [0], [0]>} : vector<8x8x8xbf16>, vector<8x8x16xbf16>, vector<8x8x16xf32> -> vector<8x8x16xf32>
    "tpu.trace_stop"() : () -> ()
    %54 = vector.shape_cast %53 : vector<8x8x16xf32> to vector<4x2x8x16xf32>
    %55 = vector.extract_strided_slice %54 {offsets = [0, 0, 0, 0], sizes = [1, 2, 8, 16], strides = [1, 1, 1, 1]} : vector<4x2x8x16xf32> to vector<1x2x8x16xf32>
    %56 = vector.shape_cast %55 : vector<1x2x8x16xf32> to vector<2x8x16xf32>
    %57 = vector.extract_strided_slice %54 {offsets = [1, 0, 0, 0], sizes = [1, 2, 8, 16], strides = [1, 1, 1, 1]} : vector<4x2x8x16xf32> to vector<1x2x8x16xf32>
    %58 = vector.shape_cast %57 : vector<1x2x8x16xf32> to vector<2x8x16xf32>
    %59 = vector.extract_strided_slice %54 {offsets = [2, 0, 0, 0], sizes = [1, 2, 8, 16], strides = [1, 1, 1, 1]} : vector<4x2x8x16xf32> to vector<1x2x8x16xf32>
    %60 = vector.shape_cast %59 : vector<1x2x8x16xf32> to vector<2x8x16xf32>
    %61 = vector.extract_strided_slice %54 {offsets = [3, 0, 0, 0], sizes = [1, 2, 8, 16], strides = [1, 1, 1, 1]} : vector<4x2x8x16xf32> to vector<1x2x8x16xf32>
    %62 = vector.shape_cast %61 : vector<1x2x8x16xf32> to vector<2x8x16xf32>
    %63 = tpu.concatenate %56, %58, %60, %62 in 2 : vector<2x8x16xf32>, vector<2x8x16xf32>, vector<2x8x16xf32>, vector<2x8x16xf32> -> vector<2x8x64xf32>
    %64 = vector.shape_cast %63 : vector<2x8x64xf32> to vector<16x64xf32>
    %65 = arith.truncf %64 : vector<16x64xf32> to vector<16x64xbf16>
    %c0_10 = arith.constant 0 : index
    %c0_11 = arith.constant 0 : index
    %66 = vector.load %arg4[%c0_10, %c0_11] : memref<64x64xbf16, #tpu.memory_space<vmem>>, vector<64x64xbf16>
    %cst_12 = arith.constant dense<0.000000e+00> : vector<16x64xf32>
    %67 = tpu.matmul %65, %66, %cst_12 {dimension_numbers = #tpu.dot_dimension_numbers<[1], [0], [0], [1], [0, 0, 1, 1], [], []>} : vector<16x64xbf16>, vector<64x64xbf16>, vector<16x64xf32> -> vector<16x64xf32>
    %c0_13 = arith.constant 0 : index
    %c0_14 = arith.constant 0 : index
    %68 = vector.load %arg5[%c0_13, %c0_14] : memref<1x64xf32, #tpu.memory_space<vmem>>, vector<1x64xf32>
    %69 = vector.broadcast %68 : vector<1x64xf32> to vector<16x64xf32>
    %70 = arith.addf %67, %69 : vector<16x64xf32>
    %71 = arith.addf %70, %1 : vector<16x64xf32>
    %cst_15 = arith.constant dense<0.000000e+00> : vector<16xf32>
    %72 = vector.multi_reduction <add>, %71, %cst_15 [1] : vector<16x64xf32> to vector<16xf32>
    %73 = vector.shape_cast %72 : vector<16xf32> to vector<16x1xf32>
    %cst_16 = arith.constant 6.400000e+01 : f32
    %74 = vector.broadcast %cst_16 : f32 to vector<16x1xf32>
    %75 = arith.divf %73, %74 : vector<16x1xf32>
    %76 = vector.broadcast %75 : vector<16x1xf32> to vector<16x64xf32>
    %77 = arith.subf %71, %76 : vector<16x64xf32>
    %78 = arith.mulf %77, %77 : vector<16x64xf32>
    %cst_17 = arith.constant dense<0.000000e+00> : vector<16xf32>
    %79 = vector.multi_reduction <add>, %78, %cst_17 [1] : vector<16x64xf32> to vector<16xf32>
    %80 = vector.shape_cast %79 : vector<16xf32> to vector<16x1xf32>
    %cst_18 = arith.constant 6.400000e+01 : f32
    %81 = vector.broadcast %cst_18 : f32 to vector<16x1xf32>
    %82 = arith.divf %80, %81 : vector<16x1xf32>
    %83 = vector.broadcast %75 : vector<16x1xf32> to vector<16x64xf32>
    %84 = arith.subf %71, %83 : vector<16x64xf32>
    %cst_19 = arith.constant 9.99999974E-6 : f32
    %85 = vector.broadcast %cst_19 : f32 to vector<16x1xf32>
    %86 = arith.addf %82, %85 : vector<16x1xf32>
    %87 = math.rsqrt %86 : vector<16x1xf32>
    %88 = vector.broadcast %87 : vector<16x1xf32> to vector<16x64xf32>
    %89 = arith.mulf %84, %88 : vector<16x64xf32>
    %c0_20 = arith.constant 0 : index
    %c0_21 = arith.constant 0 : index
    %90 = vector.load %arg6[%c0_20, %c0_21] : memref<1x64xf32, #tpu.memory_space<vmem>>, vector<1x64xf32>
    %91 = vector.broadcast %90 : vector<1x64xf32> to vector<16x64xf32>
    %92 = arith.mulf %89, %91 : vector<16x64xf32>
    %c0_22 = arith.constant 0 : index
    %c0_23 = arith.constant 0 : index
    %93 = vector.load %arg7[%c0_22, %c0_23] : memref<1x64xf32, #tpu.memory_space<vmem>>, vector<1x64xf32>
    %94 = vector.broadcast %93 : vector<1x64xf32> to vector<16x64xf32>
    %95 = arith.addf %92, %94 : vector<16x64xf32>
    %96 = arith.truncf %95 : vector<16x64xf32> to vector<16x64xbf16>
    %c0_24 = arith.constant 0 : index
    %c0_25 = arith.constant 0 : index
    %97 = vector.load %arg8[%c0_24, %c0_25] : memref<64x256xbf16, #tpu.memory_space<vmem>>, vector<64x256xbf16>
    %cst_26 = arith.constant dense<0.000000e+00> : vector<16x256xf32>
    %98 = tpu.matmul %96, %97, %cst_26 {dimension_numbers = #tpu.dot_dimension_numbers<[1], [0], [0], [1], [0, 0, 1, 1], [], []>} : vector<16x64xbf16>, vector<64x256xbf16>, vector<16x256xf32> -> vector<16x256xf32>
    %c0_27 = arith.constant 0 : index
    %c0_28 = arith.constant 0 : index
    %99 = vector.load %arg9[%c0_27, %c0_28] : memref<1x256xf32, #tpu.memory_space<vmem>>, vector<1x256xf32>
    %100 = vector.broadcast %99 : vector<1x256xf32> to vector<16x256xf32>
    %101 = arith.addf %98, %100 : vector<16x256xf32>
    %cst_29 = arith.constant 0.000000e+00 : f32
    %102 = vector.broadcast %cst_29 : f32 to vector<16x256xf32>
    %103 = arith.maximumf %101, %102 : vector<16x256xf32>
    %104 = arith.truncf %103 : vector<16x256xf32> to vector<16x256xbf16>
    %c0_30 = arith.constant 0 : index
    %c0_31 = arith.constant 0 : index
    %105 = vector.load %arg10[%c0_30, %c0_31] : memref<256x64xbf16, #tpu.memory_space<vmem>>, vector<256x64xbf16>
    %cst_32 = arith.constant dense<0.000000e+00> : vector<16x64xf32>
    %106 = tpu.matmul %104, %105, %cst_32 {dimension_numbers = #tpu.dot_dimension_numbers<[1], [0], [0], [1], [0, 0, 1, 1], [], []>} : vector<16x256xbf16>, vector<256x64xbf16>, vector<16x64xf32> -> vector<16x64xf32>
    %c0_33 = arith.constant 0 : index
    %c0_34 = arith.constant 0 : index
    %107 = vector.load %arg11[%c0_33, %c0_34] : memref<1x64xf32, #tpu.memory_space<vmem>>, vector<1x64xf32>
    %108 = vector.broadcast %107 : vector<1x64xf32> to vector<16x64xf32>
    %109 = arith.addf %106, %108 : vector<16x64xf32>
    %110 = arith.addf %109, %95 : vector<16x64xf32>
    %cst_35 = arith.constant dense<0.000000e+00> : vector<16xf32>
    %111 = vector.multi_reduction <add>, %110, %cst_35 [1] : vector<16x64xf32> to vector<16xf32>
    %112 = vector.shape_cast %111 : vector<16xf32> to vector<16x1xf32>
    %cst_36 = arith.constant 6.400000e+01 : f32
    %113 = vector.broadcast %cst_36 : f32 to vector<16x1xf32>
    %114 = arith.divf %112, %113 : vector<16x1xf32>
    %115 = vector.broadcast %114 : vector<16x1xf32> to vector<16x64xf32>
    %116 = arith.subf %110, %115 : vector<16x64xf32>
    %117 = arith.mulf %116, %116 : vector<16x64xf32>
    %cst_37 = arith.constant dense<0.000000e+00> : vector<16xf32>
    %118 = vector.multi_reduction <add>, %117, %cst_37 [1] : vector<16x64xf32> to vector<16xf32>
    %119 = vector.shape_cast %118 : vector<16xf32> to vector<16x1xf32>
    %cst_38 = arith.constant 6.400000e+01 : f32
    %120 = vector.broadcast %cst_38 : f32 to vector<16x1xf32>
    %121 = arith.divf %119, %120 : vector<16x1xf32>
    %122 = vector.broadcast %114 : vector<16x1xf32> to vector<16x64xf32>
    %123 = arith.subf %110, %122 : vector<16x64xf32>
    %cst_39 = arith.constant 9.99999974E-6 : f32
    %124 = vector.broadcast %cst_39 : f32 to vector<16x1xf32>
    %125 = arith.addf %121, %124 : vector<16x1xf32>
    %126 = math.rsqrt %125 : vector<16x1xf32>
    %127 = vector.broadcast %126 : vector<16x1xf32> to vector<16x64xf32>
    %128 = arith.mulf %123, %127 : vector<16x64xf32>
    %c0_40 = arith.constant 0 : index
    %c0_41 = arith.constant 0 : index
    %129 = vector.load %arg12[%c0_40, %c0_41] : memref<1x64xf32, #tpu.memory_space<vmem>>, vector<1x64xf32>
    %130 = vector.broadcast %129 : vector<1x64xf32> to vector<16x64xf32>
    %131 = arith.mulf %128, %130 : vector<16x64xf32>
    %c0_42 = arith.constant 0 : index
    %c0_43 = arith.constant 0 : index
    %132 = vector.load %arg13[%c0_42, %c0_43] : memref<1x64xf32, #tpu.memory_space<vmem>>, vector<1x64xf32>
    %133 = vector.broadcast %132 : vector<1x64xf32> to vector<16x64xf32>
    %134 = arith.addf %131, %133 : vector<16x64xf32>
    %135 = vector.shape_cast %134 : vector<16x64xf32> to vector<2x8x64xf32>
    %c0_44 = arith.constant 0 : index
    %c0_45 = arith.constant 0 : index
    %c0_46 = arith.constant 0 : index
    %136 = vector.load %arg14[%c0_44, %c0_45, %c0_46] : memref<2x8x64xf32, #tpu.memory_space<vmem>>, vector<2x8x64xf32>
    tpu.vector_store %arg14[%c0_44, %c0_45, %c0_46], %135 {strides = array<i32>} : memref<2x8x64xf32, #tpu.memory_space<vmem>>, vector<2x8x64xf32>,
    return
  }
  func.func @transform_0(%arg0: i32) -> (i32, i32, i32) {
    %c0_i32 = arith.constant 0 : i32
    %c0_i32_0 = arith.constant 0 : i32
    %c0_i32_1 = arith.constant 0 : i32
    return %arg0, %c0_i32, %c0_i32_0 : i32, i32, i32
  }
  func.func @transform_1(%arg0: i32) -> (i32, i32) {
    %c0_i32 = arith.constant 0 : i32
    %c0_i32_0 = arith.constant 0 : i32
    %c0_i32_1 = arith.constant 0 : i32
    return %c0_i32, %c0_i32_0 : i32, i32
  }
  func.func @transform_2(%arg0: i32) -> (i32, i32) {
    %c0_i32 = arith.constant 0 : i32
    %c0_i32_0 = arith.constant 0 : i32
    %c0_i32_1 = arith.constant 0 : i32
    return %c0_i32, %c0_i32_0 : i32, i32
  }
  func.func @transform_3(%arg0: i32) -> (i32, i32) {
    %c0_i32 = arith.constant 0 : i32
    %c0_i32_0 = arith.constant 0 : i32
    %c0_i32_1 = arith.constant 0 : i32
    return %c0_i32, %c0_i32_0 : i32, i32
  }
  func.func @transform_4(%arg0: i32) -> (i32, i32) {
    %c0_i32 = arith.constant 0 : i32
    %c0_i32_0 = arith.constant 0 : i32
    %c0_i32_1 = arith.constant 0 : i32
    return %c0_i32, %c0_i32_0 : i32, i32
  }
  func.func @transform_5(%arg0: i32) -> (i32, i32) {
    %c0_i32 = arith.constant 0 : i32
    %c0_i32_0 = arith.constant 0 : i32
    %c0_i32_1 = arith.constant 0 : i32
    return %c0_i32, %c0_i32_0 : i32, i32
  }
  func.func @transform_6(%arg0: i32) -> (i32, i32) {
    %c0_i32 = arith.constant 0 : i32
    %c0_i32_0 = arith.constant 0 : i32
    %c0_i32_1 = arith.constant 0 : i32
    return %c0_i32, %c0_i32_0 : i32, i32
  }
  func.func @transform_7(%arg0: i32) -> (i32, i32) {
    %c0_i32 = arith.constant 0 : i32
    %c0_i32_0 = arith.constant 0 : i32
    %c0_i32_1 = arith.constant 0 : i32
    return %c0_i32, %c0_i32_0 : i32, i32
  }
  func.func @transform_8(%arg0: i32) -> (i32, i32) {
    %c0_i32 = arith.constant 0 : i32
    %c0_i32_0 = arith.constant 0 : i32
    %c0_i32_1 = arith.constant 0 : i32
    return %c0_i32, %c0_i32_0 : i32, i32
  }
  func.func @transform_9(%arg0: i32) -> (i32, i32) {
    %c0_i32 = arith.constant 0 : i32
    %c0_i32_0 = arith.constant 0 : i32
    %c0_i32_1 = arith.constant 0 : i32
    return %c0_i32, %c0_i32_0 : i32, i32
  }
  func.func @transform_10(%arg0: i32) -> (i32, i32) {
    %c0_i32 = arith.constant 0 : i32
    %c0_i32_0 = arith.constant 0 : i32
    %c0_i32_1 = arith.constant 0 : i32
    return %c0_i32, %c0_i32_0 : i32, i32
  }
  func.func @transform_11(%arg0: i32) -> (i32, i32) {
    %c0_i32 = arith.constant 0 : i32
    %c0_i32_0 = arith.constant 0 : i32
    %c0_i32_1 = arith.constant 0 : i32
    return %c0_i32, %c0_i32_0 : i32, i32
  }
  func.func @transform_12(%arg0: i32) -> (i32, i32) {
    %c0_i32 = arith.constant 0 : i32
    %c0_i32_0 = arith.constant 0 : i32
    %c0_i32_1 = arith.constant 0 : i32
    return %c0_i32, %c0_i32_0 : i32, i32
  }
  func.func @transform_13(%arg0: i32) -> (i32, i32, i32) {
    %c0_i32 = arith.constant 0 : i32
    %c0_i32_0 = arith.constant 0 : i32
    %c0_i32_1 = arith.constant 0 : i32
    return %arg0, %c0_i32, %c0_i32_0 : i32, i32, i32
  }
}

</mosaic_0001>

<llo_original>
// kernel: tpu_custom_call.1
$region0: #{tpu_custom_call.1}
  #allocation0 [shape = 'u32[]', space=smem, size = 0x4, offset = 0x4, fixed_abs, tag = 'smem constant byte address 0x4 - core index']
  #allocation1 [shape = 'u32[144,128]{1,0:T(1,128)}', space=vmem, size = 0x12000, scoped, tag = 'internal scratch']
  %s0 = inlined_call_operand.vmem [shape: f32[4,8,64], index: 0, kind: input, shape index: {}]
  %s1 = inlined_call_operand.vmem [shape: bf16[64,192], index: 1, kind: input, shape index: {}]
  %s2 = inlined_call_operand.vmem [shape: f32[1,192], index: 2, kind: input, shape index: {}]
  %s3 = inlined_call_operand.vmem [shape: bf16[64,64], index: 3, kind: input, shape index: {}]
  %s4 = inlined_call_operand.vmem [shape: f32[1,64], index: 4, kind: input, shape index: {}]
  %s5 = inlined_call_operand.vmem [shape: f32[1,64], index: 5, kind: input, shape index: {}]
  %s6 = inlined_call_operand.vmem [shape: f32[1,64], index: 6, kind: input, shape index: {}]
  %s7 = inlined_call_operand.vmem [shape: bf16[64,256], index: 7, kind: input, shape index: {}]
  %s8 = inlined_call_operand.vmem [shape: f32[1,256], index: 8, kind: input, shape index: {}]
  %s9 = inlined_call_operand.vmem [shape: bf16[256,64], index: 9, kind: input, shape index: {}]
  %s10 = inlined_call_operand.vmem [shape: f32[1,64], index: 10, kind: input, shape index: {}]
  %s11 = inlined_call_operand.vmem [shape: f32[1,64], index: 11, kind: input, shape index: {}]
  %s12 = inlined_call_operand.vmem [shape: f32[1,64], index: 12, kind: input, shape index: {}]
  %s13 = inlined_call_operand.hbm [shape: f32[4,8,64], index: 13, kind: output, shape index: {}]
  %s14 = sld [smem:[#allocation0]]
  $region85: #{tpu_custom_call.1} parent=0
    _
  %s16 = ssub.s32 1, %s14
  %s17 = scalar_select 0, %s16, %s14
  $region1: #{tpu_custom_call.1} parent=0
    #allocation2 [shape = 'u8[16384]{0}', space=vmem, size = 0x4000, scoped, tag = 'output window, operand 0']
    #allocation3 [shape = 's32[2]{0}', space=sflag, size = 0x8, scoped, tag = 'scoped memory for tpu_custom_call.1']
    %18 = vsyncpa [#allocation3], 0
    %s19 = scalar_lea.sflag [#allocation3], 1
    %20 = vsyncpa %s19, 0
    loop: start=0, step=1, limit=4
    $region2: #{tpu_custom_call.1} parent=1 // loop_pre_header
      _
    $region3: #{tpu_custom_call.1} parent=1 // loop_header
      %s22 = sphi 0, %s26
      %p23 = scmp.ge.s32.totalorder %s22, 4
      %s32 = sphi 0, %s34
      %s35 = sphi 0, %s32
      %s36 = sphi 0, %s35
      %s52 = sphi 0, %s36
      %s56 = sphi 0, %s56
      %s58 = sphi 0, %s56
      %s59 = sphi 0, %s58
      %s73 = sphi 0, %s59
      %s77 = sphi 0, %s77
      %s79 = sphi 0, %s77
      %s80 = sphi 0, %s79
      %s94 = sphi 0, %s80
      %s98 = sphi 0, %s98
      %s100 = sphi 0, %s98
      %s101 = sphi 0, %s100
      %s115 = sphi 0, %s101
      %s119 = sphi 0, %s119
      %s121 = sphi 0, %s119
      %s122 = sphi 0, %s121
      %s136 = sphi 0, %s122
      %s140 = sphi 0, %s140
      %s142 = sphi 0, %s140
      %s143 = sphi 0, %s142
      %s157 = sphi 0, %s143
      %s161 = sphi 0, %s161
      %s163 = sphi 0, %s161
      %s164 = sphi 0, %s163
      %s178 = sphi 0, %s164
      %s182 = sphi 0, %s182
      %s184 = sphi 0, %s182
      %s185 = sphi 0, %s184
      %s199 = sphi 0, %s185
      %s203 = sphi 0, %s203
      %s205 = sphi 0, %s203
      %s206 = sphi 0, %s205
      %s220 = sphi 0, %s206
      %s224 = sphi 0, %s224
      %s226 = sphi 0, %s224
      %s227 = sphi 0, %s226
      %s241 = sphi 0, %s227
      %s245 = sphi 0, %s245
      %s247 = sphi 0, %s245
      %s248 = sphi 0, %s247
      %s262 = sphi 0, %s248
      %s266 = sphi 0, %s266
      %s268 = sphi 0, %s266
      %s269 = sphi 0, %s268
      %s283 = sphi 0, %s269
      %s287 = sphi 0, %s287
      %s289 = sphi 0, %s287
      %s290 = sphi 0, %s289
      %s304 = sphi 0, %s290
      %s310 = sphi 0, %s312
      %s313 = sphi 0, %s310
      %s314 = sphi 0, %s313
      %s330 = sphi 0, %s314
    $region4: #{tpu_custom_call.1} parent=1 // loop_header_branch
      %25 = sbr.rel (%p23) target = $region8
    $region5: #{tpu_custom_call.1} parent=1 // loop_body
      %s27 = ssub.s32 %s22, 1
      %s28 = ssub.s32 %s22, 2
      %s29 = sadd.s32 %s22, 1
      %s30 = ssub.s32 %s22, %s29
      %p31 = scmp.eq.s32.totalorder %s30, 0
      %s33 = sadd.s32 %s32, 1
      %s34 = scalar_select %p31, %s32, %s33
      %p37 = pneg %p31
      %p38 = scmp.eq.s32.totalorder %s22, 1
      %p39 = por %p37, %p38
      %p40 = scmp.ne.s32.totalorder %s32, %s35
      %p41 = scmp.eq.s32.totalorder %s22, 0
      %p42 = por %p40, %p41
      %p43 = scmp.ne.s32.totalorder %s32, %s35
      %p44 = scmp.eq.s32.totalorder %s27, 1
      %p45 = por %p43, %p44
      %p46 = scmp.ne.s32.totalorder %s35, %s36
      %p47 = scmp.eq.s32.totalorder %s27, 0
      %p48 = por %p46, %p47
      %p49 = scmp.ne.s32.totalorder %s35, %s36
      %p50 = scmp.eq.s32.totalorder %s28, 1
      %p51 = por %p49, %p50
      %p53 = scmp.ne.s32.totalorder %s36, %s52
      %p54 = scmp.eq.s32.totalorder %s28, 0
      %p55 = por %p53, %p54
      %s57 = sadd.s32 %s56, 1
      %p60 = scmp.eq.s32.totalorder %s22, 1
      %p61 = scmp.ne.s32.totalorder %s56, %s58
      %p62 = scmp.eq.s32.totalorder %s22, 0
      %p63 = por %p61, %p62
      %p64 = scmp.ne.s32.totalorder %s56, %s58
      %p65 = scmp.eq.s32.totalorder %s27, 1
      %p66 = por %p64, %p65
      %p67 = scmp.ne.s32.totalorder %s58, %s59
      %p68 = scmp.eq.s32.totalorder %s27, 0
      %p69 = por %p67, %p68
      %p70 = scmp.ne.s32.totalorder %s58, %s59
      %p71 = scmp.eq.s32.totalorder %s28, 1
      %p72 = por %p70, %p71
      %p74 = scmp.ne.s32.totalorder %s59, %s73
      %p75 = scmp.eq.s32.totalorder %s28, 0
      %p76 = por %p74, %p75
      %s78 = sadd.s32 %s77, 1
      %p81 = scmp.eq.s32.totalorder %s22, 1
      %p82 = scmp.ne.s32.totalorder %s77, %s79
      %p83 = scmp.eq.s32.totalorder %s22, 0
      %p84 = por %p82, %p83
      %p85 = scmp.ne.s32.totalorder %s77, %s79
      %p86 = scmp.eq.s32.totalorder %s27, 1
      %p87 = por %p85, %p86
      %p88 = scmp.ne.s32.totalorder %s79, %s80
      %p89 = scmp.eq.s32.totalorder %s27, 0
      %p90 = por %p88, %p89
      %p91 = scmp.ne.s32.totalorder %s79, %s80
      %p92 = scmp.eq.s32.totalorder %s28, 1
      %p93 = por %p91, %p92
      %p95 = scmp.ne.s32.totalorder %s80, %s94
      %p96 = scmp.eq.s32.totalorder %s28, 0
      %p97 = por %p95, %p96
      %s99 = sadd.s32 %s98, 1
      %p102 = scmp.eq.s32.totalorder %s22, 1
      %p103 = scmp.ne.s32.totalorder %s98, %s100
      %p104 = scmp.eq.s32.totalorder %s22, 0
      %p105 = por %p103, %p104
      %p106 = scmp.ne.s32.totalorder %s98, %s100
      %p107 = scmp.eq.s32.totalorder %s27, 1
      %p108 = por %p106, %p107
      %p109 = scmp.ne.s32.totalorder %s100, %s101
      %p110 = scmp.eq.s32.totalorder %s27, 0
      %p111 = por %p109, %p110
      %p112 = scmp.ne.s32.totalorder %s100, %s101
      %p113 = scmp.eq.s32.totalorder %s28, 1
      %p114 = por %p112, %p113
      %p116 = scmp.ne.s32.totalorder %s101, %s115
      %p117 = scmp.eq.s32.totalorder %s28, 0
      %p118 = por %p116, %p117
      %s120 = sadd.s32 %s119, 1
      %p123 = scmp.eq.s32.totalorder %s22, 1
      %p124 = scmp.ne.s32.totalorder %s119, %s121
      %p125 = scmp.eq.s32.totalorder %s22, 0
      %p126 = por %p124, %p125
      %p127 = scmp.ne.s32.totalorder %s119, %s121
      %p128 = scmp.eq.s32.totalorder %s27, 1
      %p129 = por %p127, %p128
      %p130 = scmp.ne.s32.totalorder %s121, %s122
      %p131 = scmp.eq.s32.totalorder %s27, 0
      %p132 = por %p130, %p131
      %p133 = scmp.ne.s32.totalorder %s121, %s122
      %p134 = scmp.eq.s32.totalorder %s28, 1
      %p135 = por %p133, %p134
      %p137 = scmp.ne.s32.totalorder %s122, %s136
      %p138 = scmp.eq.s32.totalorder %s28, 0
      %p139 = por %p137, %p138
      %s141 = sadd.s32 %s140, 1
      %p144 = scmp.eq.s32.totalorder %s22, 1
      %p145 = scmp.ne.s32.totalorder %s140, %s142
      %p146 = scmp.eq.s32.totalorder %s22, 0
      %p147 = por %p145, %p146
      %p148 = scmp.ne.s32.totalorder %s140, %s142
      %p149 = scmp.eq.s32.totalorder %s27, 1
      %p150 = por %p148, %p149
      %p151 = scmp.ne.s32.totalorder %s142, %s143
      %p152 = scmp.eq.s32.totalorder %s27, 0
      %p153 = por %p151, %p152
      %p154 = scmp.ne.s32.totalorder %s142, %s143
      %p155 = scmp.eq.s32.totalorder %s28, 1
      %p156 = por %p154, %p155
      %p158 = scmp.ne.s32.totalorder %s143, %s157
      %p159 = scmp.eq.s32.totalorder %s28, 0
      %p160 = por %p158, %p159
      %s162 = sadd.s32 %s161, 1
      %p165 = scmp.eq.s32.totalorder %s22, 1
      %p166 = scmp.ne.s32.totalorder %s161, %s163
      %p167 = scmp.eq.s32.totalorder %s22, 0
      %p168 = por %p166, %p167
      %p169 = scmp.ne.s32.totalorder %s161, %s163
      %p170 = scmp.eq.s32.totalorder %s27, 1
      %p171 = por %p169, %p170
      %p172 = scmp.ne.s32.totalorder %s163, %s164
      %p173 = scmp.eq.s32.totalorder %s27, 0
      %p174 = por %p172, %p173
      %p175 = scmp.ne.s32.totalorder %s163, %s164
      %p176 = scmp.eq.s32.totalorder %s28, 1
      %p177 = por %p175, %p176
      %p179 = scmp.ne.s32.totalorder %s164, %s178
      %p180 = scmp.eq.s32.totalorder %s28, 0
      %p181 = por %p179, %p180
      %s183 = sadd.s32 %s182, 1
      %p186 = scmp.eq.s32.totalorder %s22, 1
      %p187 = scmp.ne.s32.totalorder %s182, %s184
      %p188 = scmp.eq.s32.totalorder %s22, 0
      %p189 = por %p187, %p188
      %p190 = scmp.ne.s32.totalorder %s182, %s184
      %p191 = scmp.eq.s32.totalorder %s27, 1
      %p192 = por %p190, %p191
      %p193 = scmp.ne.s32.totalorder %s184, %s185
      %p194 = scmp.eq.s32.totalorder %s27, 0
      %p195 = por %p193, %p194
      %p196 = scmp.ne.s32.totalorder %s184, %s185
      %p197 = scmp.eq.s32.totalorder %s28, 1
      %p198 = por %p196, %p197
      %p200 = scmp.ne.s32.totalorder %s185, %s199
      %p201 = scmp.eq.s32.totalorder %s28, 0
      %p202 = por %p200, %p201
      %s204 = sadd.s32 %s203, 1
      %p207 = scmp.eq.s32.totalorder %s22, 1
      %p208 = scmp.ne.s32.totalorder %s203, %s205
      %p209 = scmp.eq.s32.totalorder %s22, 0
      %p210 = por %p208, %p209
      %p211 = scmp.ne.s32.totalorder %s203, %s205
      %p212 = scmp.eq.s32.totalorder %s27, 1
      %p213 = por %p211, %p212
      %p214 = scmp.ne.s32.totalorder %s205, %s206
      %p215 = scmp.eq.s32.totalorder %s27, 0
      %p216 = por %p214, %p215
      %p217 = scmp.ne.s32.totalorder %s205, %s206
      %p218 = scmp.eq.s32.totalorder %s28, 1
      %p219 = por %p217, %p218
      %p221 = scmp.ne.s32.totalorder %s206, %s220
      %p222 = scmp.eq.s32.totalorder %s28, 0
      %p223 = por %p221, %p222
      %s225 = sadd.s32 %s224, 1
      %p228 = scmp.eq.s32.totalorder %s22, 1
      %p229 = scmp.ne.s32.totalorder %s224, %s226
      %p230 = scmp.eq.s32.totalorder %s22, 0
      %p231 = por %p229, %p230
      %p232 = scmp.ne.s32.totalorder %s224, %s226
      %p233 = scmp.eq.s32.totalorder %s27, 1
      %p234 = por %p232, %p233
      %p235 = scmp.ne.s32.totalorder %s226, %s227
      %p236 = scmp.eq.s32.totalorder %s27, 0
      %p237 = por %p235, %p236
      %p238 = scmp.ne.s32.totalorder %s226, %s227
      %p239 = scmp.eq.s32.totalorder %s28, 1
      %p240 = por %p238, %p239
      %p242 = scmp.ne.s32.totalorder %s227, %s241
      %p243 = scmp.eq.s32.totalorder %s28, 0
      %p244 = por %p242, %p243
      %s246 = sadd.s32 %s245, 1
      %p249 = scmp.eq.s32.totalorder %s22, 1
      %p250 = scmp.ne.s32.totalorder %s245, %s247
      %p251 = scmp.eq.s32.totalorder %s22, 0
      %p252 = por %p250, %p251
      %p253 = scmp.ne.s32.totalorder %s245, %s247
      %p254 = scmp.eq.s32.totalorder %s27, 1
      %p255 = por %p253, %p254
      %p256 = scmp.ne.s32.totalorder %s247, %s248
      %p257 = scmp.eq.s32.totalorder %s27, 0
      %p258 = por %p256, %p257
      %p259 = scmp.ne.s32.totalorder %s247, %s248
      %p260 = scmp.eq.s32.totalorder %s28, 1
      %p261 = por %p259, %p260
      %p263 = scmp.ne.s32.totalorder %s248, %s262
      %p264 = scmp.eq.s32.totalorder %s28, 0
      %p265 = por %p263, %p264
      %s267 = sadd.s32 %s266, 1
      %p270 = scmp.eq.s32.totalorder %s22, 1
      %p271 = scmp.ne.s32.totalorder %s266, %s268
      %p272 = scmp.eq.s32.totalorder %s22, 0
      %p273 = por %p271, %p272
      %p274 = scmp.ne.s32.totalorder %s266, %s268
      %p275 = scmp.eq.s32.totalorder %s27, 1
      %p276 = por %p274, %p275
      %p277 = scmp.ne.s32.totalorder %s268, %s269
      %p278 = scmp.eq.s32.totalorder %s27, 0
      %p279 = por %p277, %p278
      %p280 = scmp.ne.s32.totalorder %s268, %s269
      %p281 = scmp.eq.s32.totalorder %s28, 1
      %p282 = por %p280, %p281
      %p284 = scmp.ne.s32.totalorder %s269, %s283
      %p285 = scmp.eq.s32.totalorder %s28, 0
      %p286 = por %p284, %p285
      %s288 = sadd.s32 %s287, 1
      %p291 = scmp.eq.s32.totalorder %s22, 1
      %p292 = scmp.ne.s32.totalorder %s287, %s289
      %p293 = scmp.eq.s32.totalorder %s22, 0
      %p294 = por %p292, %p293
      %p295 = scmp.ne.s32.totalorder %s287, %s289
      %p296 = scmp.eq.s32.totalorder %s27, 1
      %p297 = por %p295, %p296
      %p298 = scmp.ne.s32.totalorder %s289, %s290
      %p299 = scmp.eq.s32.totalorder %s27, 0
      %p300 = por %p298, %p299
      %p301 = scmp.ne.s32.totalorder %s289, %s290
      %p302 = scmp.eq.s32.totalorder %s28, 1
      %p303 = por %p301, %p302
      %p305 = scmp.ne.s32.totalorder %s290, %s304
      %p306 = scmp.eq.s32.totalorder %s28, 0
      %p307 = por %p305, %p306
      %s308 = ssub.s32 %s22, %s29
      %p309 = scmp.eq.s32.totalorder %s308, 0
      %s311 = sadd.s32 %s310, 1
      %s312 = scalar_select %p309, %s310, %s311
      %p315 = pneg %p309
      %p316 = scmp.eq.s32.totalorder %s22, 1
      %p317 = por %p315, %p316
      %p318 = scmp.ne.s32.totalorder %s310, %s313
      %p319 = scmp.eq.s32.totalorder %s22, 0
      %p320 = por %p318, %p319
      %p321 = scmp.ne.s32.totalorder %s310, %s313
      %p322 = scmp.eq.s32.totalorder %s27, 1
      %p323 = por %p321, %p322
      %p324 = scmp.ne.s32.totalorder %s313, %s314
      %p325 = scmp.eq.s32.totalorder %s27, 0
      %p326 = por %p324, %p325
      %p327 = scmp.ne.s32.totalorder %s313, %s314
      %p328 = scmp.eq.s32.totalorder %s28, 1
      %p329 = por %p327, %p328
      %p331 = scmp.ne.s32.totalorder %s314, %s330
      %p332 = scmp.eq.s32.totalorder %s28, 0
      %p333 = por %p331, %p332
      %p334 = scmp.le.s32.totalorder 1, %s22
      %p335 = scmp.lt.s32.totalorder %s22, 3
      %p336 = pnand %p334, %p335
      %p337 = pneg %p336
      // Predicated region
      $region9: #{tpu_custom_call.1} parent=5 // pred_check
        _
      $region10: #{tpu_custom_call.1} parent=5 // pred_check_branch
        %339 = sbr.rel (%p336) target = $region12
      $region11: #{tpu_custom_call.1} parent=5 // pred_region
        %s340 = ssub.s32 %s22, 1
        // Predicated region
        $region13: #{tpu_custom_call.1} parent=11 // pred_check
          %p341 = pneg %p69
        $region14: #{tpu_custom_call.1} parent=11 // pred_check_branch
          %343 = sbr.rel (%p341) target = $region16
        $region15: #{tpu_custom_call.1} parent=11 // pred_region
          _
        $region16: #{tpu_custom_call.1} parent=11 // pred_fallthru
          _
        // Predicated region
        $region17: #{tpu_custom_call.1} parent=11 // pred_check
          %p344 = pneg %p90
        $region18: #{tpu_custom_call.1} parent=11 // pred_check_branch
          %346 = sbr.rel (%p344) target = $region20
        $region19: #{tpu_custom_call.1} parent=11 // pred_region
          _
        $region20: #{tpu_custom_call.1} parent=11 // pred_fallthru
          _
        // Predicated region
        $region21: #{tpu_custom_call.1} parent=11 // pred_check
          %p347 = pneg %p111
        $region22: #{tpu_custom_call.1} parent=11 // pred_check_branch
          %349 = sbr.rel (%p347) target = $region24
        $region23: #{tpu_custom_call.1} parent=11 // pred_region
          _
        $region24: #{tpu_custom_call.1} parent=11 // pred_fallthru
          _
        // Predicated region
        $region25: #{tpu_custom_call.1} parent=11 // pred_check
          %p350 = pneg %p132
        $region26: #{tpu_custom_call.1} parent=11 // pred_check_branch
          %352 = sbr.rel (%p350) target = $region28
        $region27: #{tpu_custom_call.1} parent=11 // pred_region
          _
        $region28: #{tpu_custom_call.1} parent=11 // pred_fallthru
          _
        // Predicated region
        $region29: #{tpu_custom_call.1} parent=11 // pred_check
          %p353 = pneg %p153
        $region30: #{tpu_custom_call.1} parent=11 // pred_check_branch
          %355 = sbr.rel (%p353) target = $region32
        $region31: #{tpu_custom_call.1} parent=11 // pred_region
          _
        $region32: #{tpu_custom_call.1} parent=11 // pred_fallthru
          _
        // Predicated region
        $region33: #{tpu_custom_call.1} parent=11 // pred_check
          %p356 = pneg %p174
        $region34: #{tpu_custom_call.1} parent=11 // pred_check_branch
          %358 = sbr.rel (%p356) target = $region36
        $region35: #{tpu_custom_call.1} parent=11 // pred_region
          _
        $region36: #{tpu_custom_call.1} parent=11 // pred_fallthru
          _
        // Predicated region
        $region37: #{tpu_custom_call.1} parent=11 // pred_check
          %p359 = pneg %p195
        $region38: #{tpu_custom_call.1} parent=11 // pred_check_branch
          %361 = sbr.rel (%p359) target = $region40
        $region39: #{tpu_custom_call.1} parent=11 // pred_region
          _
        $region40: #{tpu_custom_call.1} parent=11 // pred_fallthru
          _
        // Predicated region
        $region41: #{tpu_custom_call.1} parent=11 // pred_check
          %p362 = pneg %p216
        $region42: #{tpu_custom_call.1} parent=11 // pred_check_branch
          %364 = sbr.rel (%p362) target = $region44
        $region43: #{tpu_custom_call.1} parent=11 // pred_region
          _
        $region44: #{tpu_custom_call.1} parent=11 // pred_fallthru
          _
        // Predicated region
        $region45: #{tpu_custom_call.1} parent=11 // pred_check
          %p365 = pneg %p237
        $region46: #{tpu_custom_call.1} parent=11 // pred_check_branch
          %367 = sbr.rel (%p365) target = $region48
        $region47: #{tpu_custom_call.1} parent=11 // pred_region
          _
        $region48: #{tpu_custom_call.1} parent=11 // pred_fallthru
          _
        // Predicated region
        $region49: #{tpu_custom_call.1} parent=11 // pred_check
          %p368 = pneg %p258
        $region50: #{tpu_custom_call.1} parent=11 // pred_check_branch
          %370 = sbr.rel (%p368) target = $region52
        $region51: #{tpu_custom_call.1} parent=11 // pred_region
          _
        $region52: #{tpu_custom_call.1} parent=11 // pred_fallthru
          _
        // Predicated region
        $region53: #{tpu_custom_call.1} parent=11 // pred_check
          %p371 = pneg %p279
        $region54: #{tpu_custom_call.1} parent=11 // pred_check_branch
          %373 = sbr.rel (%p371) target = $region56
        $region55: #{tpu_custom_call.1} parent=11 // pred_region
          _
        $region56: #{tpu_custom_call.1} parent=11 // pred_fallthru
          _
        // Predicated region
        $region57: #{tpu_custom_call.1} parent=11 // pred_check
          %p374 = pneg %p300
        $region58: #{tpu_custom_call.1} parent=11 // pred_check_branch
          %376 = sbr.rel (%p374) target = $region60
        $region59: #{tpu_custom_call.1} parent=11 // pred_region
          _
        $region60: #{tpu_custom_call.1} parent=11 // pred_fallthru
          _
      $region12: #{tpu_custom_call.1} parent=5 // pred_fallthru
        _
      %p377 = scmp.lt.s32.totalorder %s22, 2
      // Predicated region
      $region61: #{tpu_custom_call.1} parent=5 // pred_check
        %p378 = pneg %p377
      $region62: #{tpu_custom_call.1} parent=5 // pred_check_branch
        %380 = sbr.rel (%p378) target = $region64
      $region63: #{tpu_custom_call.1} parent=5 // pred_region
        // Predicated region
        $region65: #{tpu_custom_call.1} parent=63 // pred_check
          %p381 = pneg %p42
        $region66: #{tpu_custom_call.1} parent=63 // pred_check_branch
          %383 = sbr.rel (%p381) target = $region68
        $region67: #{tpu_custom_call.1} parent=63 // pred_region
          %s384 = smul.u32 2, %s22
          %p385 = scmp.lt.s32.totalorder %s384, 3
          %s386 = scalar_select %p385, %s384, 3
          %s387 = smul.addr %s386, 8
          %s388 = scalar_lea.vmem %s0, %s387
          %s389 = smul.u32 2, %s22
        $region68: #{tpu_custom_call.1} parent=63 // pred_fallthru
          _
      $region64: #{tpu_custom_call.1} parent=5 // pred_fallthru
        _
      %p390 = scmp.le.s32.totalorder 1, %s22
      %p391 = scmp.lt.s32.totalorder %s22, 3
      %p392 = pnand %p390, %p391
      %p393 = pneg %p392
      // Predicated region
      $region69: #{tpu_custom_call.1} parent=5 // pred_check
        _
      $region70: #{tpu_custom_call.1} parent=5 // pred_check_branch
        %395 = sbr.rel (%p392) target = $region72
      $region71: #{tpu_custom_call.1} parent=5 // pred_region
        %s396 = ssub.s32 %s22, 1
        %s397 = smul.u32 2, %s27
        %p398 = scmp.lt.s32.totalorder %s397, 3
        %s399 = scalar_select %p398, %s397, 3
        %s400 = smul.addr %s399, 8
        %s401 = scalar_lea.vmem %s0, %s400
        %p402 = pneg %p48
        %p403 = pneg %p45
        %p404 = pneg %p69
        %p405 = pneg %p66
        %p406 = pneg %p90
        %p407 = pneg %p87
        %p408 = pneg %p111
        %p409 = pneg %p108
        %p410 = pneg %p132
        %p411 = pneg %p129
        %p412 = pneg %p153
        %p413 = pneg %p150
        %p414 = pneg %p174
        %p415 = pneg %p171
        %p416 = pneg %p195
        %p417 = pneg %p192
        %p418 = pneg %p216
        %p419 = pneg %p213
        %p420 = pneg %p237
        %p421 = pneg %p234
        %p422 = pneg %p258
        %p423 = pneg %p255
        %p424 = pneg %p279
        %p425 = pneg %p276
        %p426 = pneg %p300
        %p427 = pneg %p297
        %p428 = pneg %p326
        %p429 = pneg %p323
        %s430 = sand.u32 %s313, 1
        %s431 = scalar_lea.sflag [#allocation3], %s430
        %s432 = sand.u32 %s313, 1
        %s433 = smul.addr %s432, 16
        %s434 = scalar_lea.vmem [#allocation2], %s433
        %s435 = smul.u32 2, %s27
        %p436 = scmp.lt.s32.totalorder %s435, 3
        %s437 = scalar_select %p436, %s435, 3
        %s438 = smul.addr %s437, 8
        %s439 = scalar_lea.vmem %s0, %s438
        %s440 = smul.u32 2, %s27
        %s441 = smul.u32 2, %s27
        %v443 = vld [vmem:[%s439] sm:$0xff]
        %v444 = vld [vmem:[%s439 + $0x8] sm:$0xff]
        %v445 = vpack.c.bf16 %v444, %v443
        %v446 = vld [vmem:[%s1] sm:$0xff]
        %v447 = vld [vmem:[%s1 + $0x8] sm:$0xff]
        %v448 = vld [vmem:[%s1 + $0x10] sm:$0xff]
        %v449 = vld [vmem:[%s1 + $0x18] sm:$0xff]
        %v450 = vld [vmem:[%s1 + $0x20] sm:$0xff]
        %v451 = vld [vmem:[%s1 + $0x28] sm:$0xff]
        %v452 = vld [vmem:[%s1 + $0x30] sm:$0xff]
        %v453 = vld [vmem:[%s1 + $0x38] sm:$0xff]
        %v454 = vld [vmem:[%s2] sm:$0x3]
        %v456 = vlaneseq
        %v457 = vshrl.u32 %v456, 7
        %v458 = vsub.s32 0, %v457
        %v459 = vrot.slane %v454, %v458
        %v460 = vlaneseq
        %v461 = vshrl.u32 %v460, 7
        %v462 = vsub.s32 1, %v461
        %v463 = vrot.slane %v454, %v462
        %v474 = vunpack.c.l.b16 %v446
        %v475 = vunpack.c.h.b16 %v446
        %v476 = vunpack.c.l.b16 %v447
        %v477 = vunpack.c.h.b16 %v447
        %v478 = vunpack.c.l.b16 %v448
        %v479 = vunpack.c.h.b16 %v448
        %v480 = vunpack.c.l.b16 %v449
        %v481 = vunpack.c.h.b16 %v449
        %v482 = vunpack.c.l.b16 %v450
        %v483 = vunpack.c.h.b16 %v450
        %v484 = vunpack.c.l.b16 %v451
        %v485 = vunpack.c.h.b16 %v451
        %v486 = vunpack.c.l.b16 %v452
        %v487 = vunpack.c.h.b16 %v452
        %v488 = vunpack.c.l.b16 %v453
        %v489 = vunpack.c.h.b16 %v453
        %v490 = vpack.c.b16 %v476, %v474
        %v491 = vpack.c.b16 %v477, %v475
        %v492 = vpack.c.b16 %v480, %v478
        %v493 = vpack.c.b16 %v481, %v479
        %v494 = vpack.c.b16 %v484, %v482
        %v495 = vpack.c.b16 %v485, %v483
        %v496 = vpack.c.b16 %v488, %v486
        %v497 = vpack.c.b16 %v489, %v487
        %vm506 = vcmask 523264
        %v508 = vsel %vm506, %v445, 0
        %510 = vmatprep.subr.bf16.mxu0 0
        %511 = vmatpush1.bf16.msra.mxu0 0
        %512 = vmatprep.subr.bf16.mxu0 0
        %513 = vmatpush1.bf16.msra.mxu0 0
        %514 = vmatprep.subr.bf16.mxu0 0
        %515 = vmatpush1.bf16.msra.mxu0 0
        %516 = vmatprep.subr.bf16.mxu0 0
        %517 = vmatpush1.bf16.msra.mxu0 0
        %518 = vmatprep.subr.bf16.mxu0 %v497
        %519 = vmatpush1.bf16.msra.mxu0 %v496
        %520 = vmatprep.subr.bf16.mxu0 %v495
        %521 = vmatpush1.bf16.msra.mxu0 %v494
        %522 = vmatprep.subr.bf16.mxu0 %v493
        %523 = vmatpush1.bf16.msra.mxu0 %v492
        %524 = vmatprep.subr.bf16.mxu0 %v491
        %525 = vmatpush1.bf16.msra.mxu0 %v490
        %526 = vmatprep.subr.bf16.mxu0 0
        %527 = vmatpush2.bf16.msra.mxu0 0
        %528 = vmatprep.subr.bf16.mxu0 0
        %529 = vmatpush2.bf16.msra.mxu0 0
        %530 = vmatprep.subr.bf16.mxu0 0
        %531 = vmatpush2.bf16.msra.mxu0 0
        %532 = vmatprep.subr.bf16.mxu0 0
        %533 = vmatpush2.bf16.msra.mxu0 0
        %534 = vmatprep.subr.bf16.mxu0 0
        %535 = vmatpush2.bf16.msra.mxu0 0
        %536 = vmatprep.subr.bf16.mxu0 0
        %537 = vmatpush2.bf16.msra.mxu0 0
        %538 = vmatprep.subr.bf16.mxu0 0
        %539 = vmatpush2.bf16.msra.mxu0 0
        %540 = vmatprep.subr.bf16.mxu0 0
        %541 = vmatpush2.bf16.msra.mxu0 0
        %542 = vmatprep.mubr.bf16.mxu0 0
        %543 = vmatmul.mubr.bf16.gmra.mxu0 %v508
        %v544 = vpop.f32.mrf.mxu0
        %v545 = vadd.f32 %v459, %v544
        %v546 = vpop.f32.mrf.mxu0
        %v547 = vadd.f32 %v463, %v546
        %v548 = vpop.f32.mrf.mxu0
        %v549 = vadd.f32 %v459, %v548
        %v550 = vpop.f32.mrf.mxu0
        %v551 = vadd.f32 %v463, %v550
        %552 = vdwg.mxu0
        %555 = vrot.lane.b32.xlu0 %v545, 112
        %v556 = vpop.permute.xlu0 %555
        %557 = vrot.lane.b32.xlu0 %v549, 112
        %v558 = vpop.permute.xlu0 %557
        %561 = vrot.lane.b32.xlu0 %v545, 96
        %v562 = vpop.permute.xlu0 %561
        %563 = vrot.lane.b32.xlu0 %v549, 96
        %v564 = vpop.permute.xlu0 %563
        %567 = vrot.lane.b32.xlu0 %v545, 80
        %v568 = vpop.permute.xlu0 %567
        %569 = vrot.lane.b32.xlu0 %v549, 80
        %v570 = vpop.permute.xlu0 %569
        %v573 = vpack.c.bf16 %v545, %v545
        %v574 = vpack.c.bf16 %v549, %v549
        %v575 = vpack.c.bf16 %v556, %v556
        %v576 = vpack.c.bf16 %v558, %v558
        %v577 = vpack.c.bf16 %v562, %v562
        %v578 = vpack.c.bf16 %v564, %v564
        %v579 = vpack.c.bf16 %v568, %v568
        %v580 = vpack.c.bf16 %v570, %v570
        %583 = vrot.lane.b32.xlu0 %v547, 112
        %v584 = vpop.permute.xlu0 %583
        %585 = vrot.lane.b32.xlu0 %v551, 112
        %v586 = vpop.permute.xlu0 %585
        %589 = vrot.lane.b32.xlu0 %v547, 96
        %v590 = vpop.permute.xlu0 %589
        %591 = vrot.lane.b32.xlu0 %v551, 96
        %v592 = vpop.permute.xlu0 %591
        %595 = vrot.lane.b32.xlu0 %v547, 80
        %v596 = vpop.permute.xlu0 %595
        %597 = vrot.lane.b32.xlu0 %v551, 80
        %v598 = vpop.permute.xlu0 %597
        %v601 = vpack.c.bf16 %v547, %v547
        %v602 = vpack.c.bf16 %v551, %v551
        %v603 = vpack.c.bf16 %v584, %v584
        %v604 = vpack.c.bf16 %v586, %v586
        %v605 = vpack.c.bf16 %v590, %v590
        %v606 = vpack.c.bf16 %v592, %v592
        %v607 = vpack.c.bf16 %v596, %v596
        %v608 = vpack.c.bf16 %v598, %v598
        %610 = vrot.lane.b32.xlu0 %v573, 64
        %v611 = vpop.permute.xlu0 %610
        %vm612 = vcmask 130048
        %v614 = vsel %vm612, %v573, 0
        %v617 = vsel %vm612, %v611, 0
        %619 = vmatprep.subr.bf16.mxu0 0
        %620 = vmatpush1.bf16.xpose.msra.mxu0 0
        %621 = vmatprep.subr.bf16.mxu0 0
        %622 = vmatpush1.bf16.xpose.msra.mxu0 0
        %623 = vmatprep.subr.bf16.mxu0 0
        %624 = vmatpush1.bf16.xpose.msra.mxu0 0
        %625 = vmatprep.subr.bf16.mxu0 0
        %626 = vmatpush1.bf16.xpose.msra.mxu0 0
        %627 = vmatprep.subr.bf16.mxu0 0
        %628 = vmatpush1.bf16.xpose.msra.mxu0 0
        %629 = vmatprep.subr.bf16.mxu0 0
        %630 = vmatpush1.bf16.xpose.msra.mxu0 0
        %631 = vmatprep.subr.bf16.mxu0 0
        %632 = vmatpush1.bf16.xpose.msra.mxu0 0
        %633 = vmatprep.subr.bf16.mxu0 0
        %634 = vmatpush1.bf16.xpose.msra.mxu0 %v617
        %635 = vmatprep.subr.bf16.mxu0 0
        %636 = vmatpush2.bf16.xpose.msra.mxu0 0
        %637 = vmatprep.subr.bf16.mxu0 0
        %638 = vmatpush2.bf16.xpose.msra.mxu0 0
        %639 = vmatprep.subr.bf16.mxu0 0
        %640 = vmatpush2.bf16.xpose.msra.mxu0 0
        %641 = vmatprep.subr.bf16.mxu0 0
        %642 = vmatpush2.bf16.xpose.msra.mxu0 0
        %643 = vmatprep.subr.bf16.mxu0 0
        %644 = vmatpush2.bf16.xpose.msra.mxu0 0
        %645 = vmatprep.subr.bf16.mxu0 0
        %646 = vmatpush2.bf16.xpose.msra.mxu0 0
        %647 = vmatprep.subr.bf16.mxu0 0
        %648 = vmatpush2.bf16.xpose.msra.mxu0 0
        %649 = vmatprep.subr.bf16.mxu0 0
        %650 = vmatpush2.bf16.xpose.msra.mxu0 0
        %651 = vmatprep.mubr.bf16.mxu0 0
        %652 = vmatmul.mubr.bf16.gmra.mxu0 %v614
        %v653 = vpop.f32.mrf.mxu0
        %v654 = vadd.f32 0.0, %v653
        %v655 = vpop.f32.mrf.mxu0
        %v656 = vpop.f32.mrf.mxu0
        %v657 = vpop.f32.mrf.mxu0
        %658 = vdwg.mxu0
        %660 = vrot.lane.b32.xlu0 %v574, 64
        %v661 = vpop.permute.xlu0 %660
        %v663 = vsel %vm612, %v574, 0
        %v666 = vsel %vm612, %v661, 0
        %668 = vmatprep.subr.bf16.mxu0 0
        %669 = vmatpush1.bf16.xpose.msra.mxu0 0
        %670 = vmatprep.subr.bf16.mxu0 0
        %671 = vmatpush1.bf16.xpose.msra.mxu0 0
        %672 = vmatprep.subr.bf16.mxu0 0
        %673 = vmatpush1.bf16.xpose.msra.mxu0 0
        %674 = vmatprep.subr.bf16.mxu0 0
        %675 = vmatpush1.bf16.xpose.msra.mxu0 0
        %676 = vmatprep.subr.bf16.mxu0 0
        %677 = vmatpush1.bf16.xpose.msra.mxu0 0
        %678 = vmatprep.subr.bf16.mxu0 0
        %679 = vmatpush1.bf16.xpose.msra.mxu0 0
        %680 = vmatprep.subr.bf16.mxu0 0
        %681 = vmatpush1.bf16.xpose.msra.mxu0 0
        %682 = vmatprep.subr.bf16.mxu0 0
        %683 = vmatpush1.bf16.xpose.msra.mxu0 %v666
        %684 = vmatprep.subr.bf16.mxu0 0
        %685 = vmatpush2.bf16.xpose.msra.mxu0 0
        %686 = vmatprep.subr.bf16.mxu0 0
        %687 = vmatpush2.bf16.xpose.msra.mxu0 0
        %688 = vmatprep.subr.bf16.mxu0 0
        %689 = vmatpush2.bf16.xpose.msra.mxu0 0
        %690 = vmatprep.subr.bf16.mxu0 0
        %691 = vmatpush2.bf16.xpose.msra.mxu0 0
        %692 = vmatprep.subr.bf16.mxu0 0
        %693 = vmatpush2.bf16.xpose.msra.mxu0 0
        %694 = vmatprep.subr.bf16.mxu0 0
        %695 = vmatpush2.bf16.xpose.msra.mxu0 0
        %696 = vmatprep.subr.bf16.mxu0 0
        %697 = vmatpush2.bf16.xpose.msra.mxu0 0
        %698 = vmatprep.subr.bf16.mxu0 0
        %699 = vmatpush2.bf16.xpose.msra.mxu0 0
        %700 = vmatprep.mubr.bf16.mxu0 0
        %701 = vmatmul.mubr.bf16.gmra.mxu0 %v663
        %v702 = vpop.f32.mrf.mxu0
        %v703 = vadd.f32 0.0, %v702
        %v704 = vpop.f32.mrf.mxu0
        %v705 = vpop.f32.mrf.mxu0
        %v706 = vpop.f32.mrf.mxu0
        %707 = vdwg.mxu0
        %709 = vrot.lane.b32.xlu0 %v575, 64
        %v710 = vpop.permute.xlu0 %709
        %v712 = vsel %vm612, %v575, 0
        %v715 = vsel %vm612, %v710, 0
        %717 = vmatprep.subr.bf16.mxu0 0
        %718 = vmatpush1.bf16.xpose.msra.mxu0 0
        %719 = vmatprep.subr.bf16.mxu0 0
        %720 = vmatpush1.bf16.xpose.msra.mxu0 0
        %721 = vmatprep.subr.bf16.mxu0 0
        %722 = vmatpush1.bf16.xpose.msra.mxu0 0
        %723 = vmatprep.subr.bf16.mxu0 0
        %724 = vmatpush1.bf16.xpose.msra.mxu0 0
        %725 = vmatprep.subr.bf16.mxu0 0
        %726 = vmatpush1.bf16.xpose.msra.mxu0 0
        %727 = vmatprep.subr.bf16.mxu0 0
        %728 = vmatpush1.bf16.xpose.msra.mxu0 0
        %729 = vmatprep.subr.bf16.mxu0 0
        %730 = vmatpush1.bf16.xpose.msra.mxu0 0
        %731 = vmatprep.subr.bf16.mxu0 0
        %732 = vmatpush1.bf16.xpose.msra.mxu0 %v715
        %733 = vmatprep.subr.bf16.mxu0 0
        %734 = vmatpush2.bf16.xpose.msra.mxu0 0
        %735 = vmatprep.subr.bf16.mxu0 0
        %736 = vmatpush2.bf16.xpose.msra.mxu0 0
        %737 = vmatprep.subr.bf16.mxu0 0
        %738 = vmatpush2.bf16.xpose.msra.mxu0 0
        %739 = vmatprep.subr.bf16.mxu0 0
        %740 = vmatpush2.bf16.xpose.msra.mxu0 0
        %741 = vmatprep.subr.bf16.mxu0 0
        %742 = vmatpush2.bf16.xpose.msra.mxu0 0
        %743 = vmatprep.subr.bf16.mxu0 0
        %744 = vmatpush2.bf16.xpose.msra.mxu0 0
        %745 = vmatprep.subr.bf16.mxu0 0
        %746 = vmatpush2.bf16.xpose.msra.mxu0 0
        %747 = vmatprep.subr.bf16.mxu0 0
        %748 = vmatpush2.bf16.xpose.msra.mxu0 0
        %749 = vmatprep.mubr.bf16.mxu0 0
        %750 = vmatmul.mubr.bf16.gmra.mxu0 %v712
        %v751 = vpop.f32.mrf.mxu0
        %v752 = vadd.f32 0.0, %v751
        %v753 = vpop.f32.mrf.mxu0
        %v754 = vpop.f32.mrf.mxu0
        %v755 = vpop.f32.mrf.mxu0
        %756 = vdwg.mxu0
        %758 = vrot.lane.b32.xlu0 %v576, 64
        %v759 = vpop.permute.xlu0 %758
        %v761 = vsel %vm612, %v576, 0
        %v764 = vsel %vm612, %v759, 0
        %766 = vmatprep.subr.bf16.mxu0 0
        %767 = vmatpush1.bf16.xpose.msra.mxu0 0
        %768 = vmatprep.subr.bf16.mxu0 0
        %769 = vmatpush1.bf16.xpose.msra.mxu0 0
        %770 = vmatprep.subr.bf16.mxu0 0
        %771 = vmatpush1.bf16.xpose.msra.mxu0 0
        %772 = vmatprep.subr.bf16.mxu0 0
        %773 = vmatpush1.bf16.xpose.msra.mxu0 0
        %774 = vmatprep.subr.bf16.mxu0 0
        %775 = vmatpush1.bf16.xpose.msra.mxu0 0
        %776 = vmatprep.subr.bf16.mxu0 0
        %777 = vmatpush1.bf16.xpose.msra.mxu0 0
        %778 = vmatprep.subr.bf16.mxu0 0
        %779 = vmatpush1.bf16.xpose.msra.mxu0 0
        %780 = vmatprep.subr.bf16.mxu0 0
        %781 = vmatpush1.bf16.xpose.msra.mxu0 %v764
        %782 = vmatprep.subr.bf16.mxu0 0
        %783 = vmatpush2.bf16.xpose.msra.mxu0 0
        %784 = vmatprep.subr.bf16.mxu0 0
        %785 = vmatpush2.bf16.xpose.msra.mxu0 0
        %786 = vmatprep.subr.bf16.mxu0 0
        %787 = vmatpush2.bf16.xpose.msra.mxu0 0
        %788 = vmatprep.subr.bf16.mxu0 0
        %789 = vmatpush2.bf16.xpose.msra.mxu0 0
        %790 = vmatprep.subr.bf16.mxu0 0
        %791 = vmatpush2.bf16.xpose.msra.mxu0 0
        %792 = vmatprep.subr.bf16.mxu0 0
        %793 = vmatpush2.bf16.xpose.msra.mxu0 0
        %794 = vmatprep.subr.bf16.mxu0 0
        %795 = vmatpush2.bf16.xpose.msra.mxu0 0
        %796 = vmatprep.subr.bf16.mxu0 0
        %797 = vmatpush2.bf16.xpose.msra.mxu0 0
        %798 = vmatprep.mubr.bf16.mxu0 0
        %799 = vmatmul.mubr.bf16.gmra.mxu0 %v761
        %v800 = vpop.f32.mrf.mxu0
        %v801 = vadd.f32 0.0, %v800
        %v802 = vpop.f32.mrf.mxu0
        %v803 = vpop.f32.mrf.mxu0
        %v804 = vpop.f32.mrf.mxu0
        %805 = vdwg.mxu0
        %807 = vrot.lane.b32.xlu0 %v577, 64
        %v808 = vpop.permute.xlu0 %807
        %v810 = vsel %vm612, %v577, 0
        %v813 = vsel %vm612, %v808, 0
        %815 = vmatprep.subr.bf16.mxu0 0
        %816 = vmatpush1.bf16.xpose.msra.mxu0 0
        %817 = vmatprep.subr.bf16.mxu0 0
        %818 = vmatpush1.bf16.xpose.msra.mxu0 0
        %819 = vmatprep.subr.bf16.mxu0 0
        %820 = vmatpush1.bf16.xpose.msra.mxu0 0
        %821 = vmatprep.subr.bf16.mxu0 0
        %822 = vmatpush1.bf16.xpose.msra.mxu0 0
        %823 = vmatprep.subr.bf16.mxu0 0
        %824 = vmatpush1.bf16.xpose.msra.mxu0 0
        %825 = vmatprep.subr.bf16.mxu0 0
        %826 = vmatpush1.bf16.xpose.msra.mxu0 0
        %827 = vmatprep.subr.bf16.mxu0 0
        %828 = vmatpush1.bf16.xpose.msra.mxu0 0
        %829 = vmatprep.subr.bf16.mxu0 0
        %830 = vmatpush1.bf16.xpose.msra.mxu0 %v813
        %831 = vmatprep.subr.bf16.mxu0 0
        %832 = vmatpush2.bf16.xpose.msra.mxu0 0
        %833 = vmatprep.subr.bf16.mxu0 0
        %834 = vmatpush2.bf16.xpose.msra.mxu0 0
        %835 = vmatprep.subr.bf16.mxu0 0
        %836 = vmatpush2.bf16.xpose.msra.mxu0 0
        %837 = vmatprep.subr.bf16.mxu0 0
        %838 = vmatpush2.bf16.xpose.msra.mxu0 0
        %839 = vmatprep.subr.bf16.mxu0 0
        %840 = vmatpush2.bf16.xpose.msra.mxu0 0
        %841 = vmatprep.subr.bf16.mxu0 0
        %842 = vmatpush2.bf16.xpose.msra.mxu0 0
        %843 = vmatprep.subr.bf16.mxu0 0
        %844 = vmatpush2.bf16.xpose.msra.mxu0 0
        %845 = vmatprep.subr.bf16.mxu0 0
        %846 = vmatpush2.bf16.xpose.msra.mxu0 0
        %847 = vmatprep.mubr.bf16.mxu0 0
        %848 = vmatmul.mubr.bf16.gmra.mxu0 %v810
        %v849 = vpop.f32.mrf.mxu0
        %v850 = vadd.f32 0.0, %v849
        %v851 = vpop.f32.mrf.mxu0
        %v852 = vpop.f32.mrf.mxu0
        %v853 = vpop.f32.mrf.mxu0
        %854 = vdwg.mxu0
        %856 = vrot.lane.b32.xlu0 %v578, 64
        %v857 = vpop.permute.xlu0 %856
        %v859 = vsel %vm612, %v578, 0
        %v862 = vsel %vm612, %v857, 0
        %864 = vmatprep.subr.bf16.mxu0 0
        %865 = vmatpush1.bf16.xpose.msra.mxu0 0
        %866 = vmatprep.subr.bf16.mxu0 0
        %867 = vmatpush1.bf16.xpose.msra.mxu0 0
        %868 = vmatprep.subr.bf16.mxu0 0
        %869 = vmatpush1.bf16.xpose.msra.mxu0 0
        %870 = vmatprep.subr.bf16.mxu0 0
        %871 = vmatpush1.bf16.xpose.msra.mxu0 0
        %872 = vmatprep.subr.bf16.mxu0 0
        %873 = vmatpush1.bf16.xpose.msra.mxu0 0
        %874 = vmatprep.subr.bf16.mxu0 0
        %875 = vmatpush1.bf16.xpose.msra.mxu0 0
        %876 = vmatprep.subr.bf16.mxu0 0
        %877 = vmatpush1.bf16.xpose.msra.mxu0 0
        %878 = vmatprep.subr.bf16.mxu0 0
        %879 = vmatpush1.bf16.xpose.msra.mxu0 %v862
        %880 = vmatprep.subr.bf16.mxu0 0
        %881 = vmatpush2.bf16.xpose.msra.mxu0 0
        %882 = vmatprep.subr.bf16.mxu0 0
        %883 = vmatpush2.bf16.xpose.msra.mxu0 0
        %884 = vmatprep.subr.bf16.mxu0 0
        %885 = vmatpush2.bf16.xpose.msra.mxu0 0
        %886 = vmatprep.subr.bf16.mxu0 0
        %887 = vmatpush2.bf16.xpose.msra.mxu0 0
        %888 = vmatprep.subr.bf16.mxu0 0
        %889 = vmatpush2.bf16.xpose.msra.mxu0 0
        %890 = vmatprep.subr.bf16.mxu0 0
        %891 = vmatpush2.bf16.xpose.msra.mxu0 0
        %892 = vmatprep.subr.bf16.mxu0 0
        %893 = vmatpush2.bf16.xpose.msra.mxu0 0
        %894 = vmatprep.subr.bf16.mxu0 0
        %895 = vmatpush2.bf16.xpose.msra.mxu0 0
        %896 = vmatprep.mubr.bf16.mxu0 0
        %897 = vmatmul.mubr.bf16.gmra.mxu0 %v859
        %v898 = vpop.f32.mrf.mxu0
        %v899 = vadd.f32 0.0, %v898
        %v900 = vpop.f32.mrf.mxu0
        %v901 = vpop.f32.mrf.mxu0
        %v902 = vpop.f32.mrf.mxu0
        %903 = vdwg.mxu0
        %905 = vrot.lane.b32.xlu0 %v579, 64
        %v906 = vpop.permute.xlu0 %905
        %v908 = vsel %vm612, %v579, 0
        %v911 = vsel %vm612, %v906, 0
        %913 = vmatprep.subr.bf16.mxu0 0
        %914 = vmatpush1.bf16.xpose.msra.mxu0 0
        %915 = vmatprep.subr.bf16.mxu0 0
        %916 = vmatpush1.bf16.xpose.msra.mxu0 0
        %917 = vmatprep.subr.bf16.mxu0 0
        %918 = vmatpush1.bf16.xpose.msra.mxu0 0
        %919 = vmatprep.subr.bf16.mxu0 0
        %920 = vmatpush1.bf16.xpose.msra.mxu0 0
        %921 = vmatprep.subr.bf16.mxu0 0
        %922 = vmatpush1.bf16.xpose.msra.mxu0 0
        %923 = vmatprep.subr.bf16.mxu0 0
        %924 = vmatpush1.bf16.xpose.msra.mxu0 0
        %925 = vmatprep.subr.bf16.mxu0 0
        %926 = vmatpush1.bf16.xpose.msra.mxu0 0
        %927 = vmatprep.subr.bf16.mxu0 0
        %928 = vmatpush1.bf16.xpose.msra.mxu0 %v911
        %929 = vmatprep.subr.bf16.mxu0 0
        %930 = vmatpush2.bf16.xpose.msra.mxu0 0
        %931 = vmatprep.subr.bf16.mxu0 0
        %932 = vmatpush2.bf16.xpose.msra.mxu0 0
        %933 = vmatprep.subr.bf16.mxu0 0
        %934 = vmatpush2.bf16.xpose.msra.mxu0 0
        %935 = vmatprep.subr.bf16.mxu0 0
        %936 = vmatpush2.bf16.xpose.msra.mxu0 0
        %937 = vmatprep.subr.bf16.mxu0 0
        %938 = vmatpush2.bf16.xpose.msra.mxu0 0
        %939 = vmatprep.subr.bf16.mxu0 0
        %940 = vmatpush2.bf16.xpose.msra.mxu0 0
        %941 = vmatprep.subr.bf16.mxu0 0
        %942 = vmatpush2.bf16.xpose.msra.mxu0 0
        %943 = vmatprep.subr.bf16.mxu0 0
        %944 = vmatpush2.bf16.xpose.msra.mxu0 0
        %945 = vmatprep.mubr.bf16.mxu0 0
        %946 = vmatmul.mubr.bf16.gmra.mxu0 %v908
        %v947 = vpop.f32.mrf.mxu0
        %v948 = vadd.f32 0.0, %v947
        %v949 = vpop.f32.mrf.mxu0
        %v950 = vpop.f32.mrf.mxu0
        %v951 = vpop.f32.mrf.mxu0
        %952 = vdwg.mxu0
        %954 = vrot.lane.b32.xlu0 %v580, 64
        %v955 = vpop.permute.xlu0 %954
        %v957 = vsel %vm612, %v580, 0
        %v960 = vsel %vm612, %v955, 0
        %962 = vmatprep.subr.bf16.mxu0 0
        %963 = vmatpush1.bf16.xpose.msra.mxu0 0
        %964 = vmatprep.subr.bf16.mxu0 0
        %965 = vmatpush1.bf16.xpose.msra.mxu0 0
        %966 = vmatprep.subr.bf16.mxu0 0
        %967 = vmatpush1.bf16.xpose.msra.mxu0 0
        %968 = vmatprep.subr.bf16.mxu0 0
        %969 = vmatpush1.bf16.xpose.msra.mxu0 0
        %970 = vmatprep.subr.bf16.mxu0 0
        %971 = vmatpush1.bf16.xpose.msra.mxu0 0
        %972 = vmatprep.subr.bf16.mxu0 0
        %973 = vmatpush1.bf16.xpose.msra.mxu0 0
        %974 = vmatprep.subr.bf16.mxu0 0
        %975 = vmatpush1.bf16.xpose.msra.mxu0 0
        %976 = vmatprep.subr.bf16.mxu0 0
        %977 = vmatpush1.bf16.xpose.msra.mxu0 %v960
        %978 = vmatprep.subr.bf16.mxu0 0
        %979 = vmatpush2.bf16.xpose.msra.mxu0 0
        %980 = vmatprep.subr.bf16.mxu0 0
        %981 = vmatpush2.bf16.xpose.msra.mxu0 0
        %982 = vmatprep.subr.bf16.mxu0 0
        %983 = vmatpush2.bf16.xpose.msra.mxu0 0
        %984 = vmatprep.subr.bf16.mxu0 0
        %985 = vmatpush2.bf16.xpose.msra.mxu0 0
        %986 = vmatprep.subr.bf16.mxu0 0
        %987 = vmatpush2.bf16.xpose.msra.mxu0 0
        %988 = vmatprep.subr.bf16.mxu0 0
        %989 = vmatpush2.bf16.xpose.msra.mxu0 0
        %990 = vmatprep.subr.bf16.mxu0 0
        %991 = vmatpush2.bf16.xpose.msra.mxu0 0
        %992 = vmatprep.subr.bf16.mxu0 0
        %993 = vmatpush2.bf16.xpose.msra.mxu0 0
        %994 = vmatprep.mubr.bf16.mxu0 0
        %995 = vmatmul.mubr.bf16.gmra.mxu0 %v957
        %v996 = vpop.f32.mrf.mxu0
        %v997 = vadd.f32 0.0, %v996
        %v998 = vpop.f32.mrf.mxu0
        %v999 = vpop.f32.mrf.mxu0
        %v1000 = vpop.f32.mrf.mxu0
        %1001 = vdwg.mxu0
        %vm1002 = vcmask 64512
        %v1003 = vsel %vm1002, %v654, -inf
        %1004 = vmax.xlane.f32.xlu0 %v1003
        %v1005 = vpop.xlane.xlu0 %1004
        %v1006 = vsel %vm1002, %v703, -inf
        %1007 = vmax.xlane.f32.xlu0 %v1006
        %v1008 = vpop.xlane.xlu0 %1007
        %v1009 = vsel %vm1002, %v752, -inf
        %1010 = vmax.xlane.f32.xlu0 %v1009
        %v1011 = vpop.xlane.xlu0 %1010
        %v1012 = vsel %vm1002, %v801, -inf
        %1013 = vmax.xlane.f32.xlu0 %v1012
        %v1014 = vpop.xlane.xlu0 %1013
        %v1015 = vsel %vm1002, %v850, -inf
        %1016 = vmax.xlane.f32.xlu0 %v1015
        %v1017 = vpop.xlane.xlu0 %1016
        %v1018 = vsel %vm1002, %v899, -inf
        %1019 = vmax.xlane.f32.xlu0 %v1018
        %v1020 = vpop.xlane.xlu0 %1019
        %v1021 = vsel %vm1002, %v948, -inf
        %1022 = vmax.xlane.f32.xlu0 %v1021
        %v1023 = vpop.xlane.xlu0 %1022
        %v1024 = vsel %vm1002, %v997, -inf
        %1025 = vmax.xlane.f32.xlu0 %v1024
        %v1026 = vpop.xlane.xlu0 %1025
        %v1027 = vsub.f32 %v654, %v1005
        %v1028 = vsub.f32 %v703, %v1008
        %v1029 = vsub.f32 %v752, %v1011
        %v1030 = vsub.f32 %v801, %v1014
        %v1031 = vsub.f32 %v850, %v1017
        %v1032 = vsub.f32 %v899, %v1020
        %v1033 = vsub.f32 %v948, %v1023
        %v1034 = vsub.f32 %v997, %v1026
        %v1035 = vmul.f32 %v1027, 1.442695
        %v1036 = vpow.pop %v1035
        %v1037 = vmul.f32 %v1028, 1.442695
        %v1038 = vpow.pop %v1037
        %v1039 = vmul.f32 %v1029, 1.442695
        %v1040 = vpow.pop %v1039
        %v1041 = vmul.f32 %v1030, 1.442695
        %v1042 = vpow.pop %v1041
        %v1043 = vmul.f32 %v1031, 1.442695
        %v1044 = vpow.pop %v1043
        %v1045 = vmul.f32 %v1032, 1.442695
        %v1046 = vpow.pop %v1045
        %v1047 = vmul.f32 %v1033, 1.442695
        %v1048 = vpow.pop %v1047
        %v1049 = vmul.f32 %v1034, 1.442695
        %v1050 = vpow.pop %v1049
        %v1051 = vsel %vm1002, %v1036, 0.0
        %1052 = vadd.xlane.f32.xlu0 %v1051
        %v1053 = vpop.xlane.xlu0 %1052
        %v1054 = vsel %vm1002, %v1038, 0.0
        %1055 = vadd.xlane.f32.xlu0 %v1054
        %v1056 = vpop.xlane.xlu0 %1055
        %v1057 = vsel %vm1002, %v1040, 0.0
        %1058 = vadd.xlane.f32.xlu0 %v1057
        %v1059 = vpop.xlane.xlu0 %1058
        %v1060 = vsel %vm1002, %v1042, 0.0
        %1061 = vadd.xlane.f32.xlu0 %v1060
        %v1062 = vpop.xlane.xlu0 %1061
        %v1063 = vsel %vm1002, %v1044, 0.0
        %1064 = vadd.xlane.f32.xlu0 %v1063
        %v1065 = vpop.xlane.xlu0 %1064
        %v1066 = vsel %vm1002, %v1046, 0.0
        %1067 = vadd.xlane.f32.xlu0 %v1066
        %v1068 = vpop.xlane.xlu0 %1067
        %v1069 = vsel %vm1002, %v1048, 0.0
        %1070 = vadd.xlane.f32.xlu0 %v1069
        %v1071 = vpop.xlane.xlu0 %1070
        %v1072 = vsel %vm1002, %v1050, 0.0
        %1073 = vadd.xlane.f32.xlu0 %v1072
        %v1074 = vpop.xlane.xlu0 %1073
        %v1075 = vrcp.pop %v1053
        %v1076 = vrcp.pop %v1056
        %v1077 = vrcp.pop %v1059
        %v1078 = vrcp.pop %v1062
        %v1079 = vrcp.pop %v1065
        %v1080 = vrcp.pop %v1068
        %v1081 = vrcp.pop %v1071
        %v1082 = vrcp.pop %v1074
        %v1083 = vmul.f32 %v1036, %v1075
        %v1084 = vmul.f32 %v1038, %v1076
        %v1085 = vmul.f32 %v1040, %v1077
        %v1086 = vmul.f32 %v1042, %v1078
        %v1087 = vmul.f32 %v1044, %v1079
        %v1088 = vmul.f32 %v1046, %v1080
        %v1089 = vmul.f32 %v1048, %v1081
        %v1090 = vmul.f32 %v1050, %v1082
        %v1091 = vpack.c.bf16 %v1083, %v1083
        %v1092 = vpack.c.bf16 %v1084, %v1084
        %v1093 = vpack.c.bf16 %v1085, %v1085
        %v1094 = vpack.c.bf16 %v1086, %v1086
        %v1095 = vpack.c.bf16 %v1087, %v1087
        %v1096 = vpack.c.bf16 %v1088, %v1088
        %v1097 = vpack.c.bf16 %v1089, %v1089
        %v1098 = vpack.c.bf16 %v1090, %v1090
        %v1100 = vsel %vm1002, %v1091, 0
        %vm1102 = vcmask 1043456
        %v1104 = vsel %vm1102, %v601, 0
        %1106 = vmatprep.subr.bf16.mxu0 0
        %1107 = vmatpush1.bf16.msra.mxu0 0
        %1108 = vmatprep.subr.bf16.mxu0 0
        %1109 = vmatpush1.bf16.msra.mxu0 0
        %1110 = vmatprep.subr.bf16.mxu0 0
        %1111 = vmatpush1.bf16.msra.mxu0 0
        %1112 = vmatprep.subr.bf16.mxu0 0
        %1113 = vmatpush1.bf16.msra.mxu0 0
        %1114 = vmatprep.subr.bf16.mxu0 0
        %1115 = vmatpush1.bf16.msra.mxu0 0
        %1116 = vmatprep.subr.bf16.mxu0 0
        %1117 = vmatpush1.bf16.msra.mxu0 0
        %1118 = vmatprep.subr.bf16.mxu0 0
        %1119 = vmatpush1.bf16.msra.mxu0 0
        %1120 = vmatprep.subr.bf16.mxu0 0
        %1121 = vmatpush1.bf16.msra.mxu0 %v1104
        %1122 = vmatprep.subr.bf16.mxu0 0
        %1123 = vmatpush2.bf16.msra.mxu0 0
        %1124 = vmatprep.subr.bf16.mxu0 0
        %1125 = vmatpush2.bf16.msra.mxu0 0
        %1126 = vmatprep.subr.bf16.mxu0 0
        %1127 = vmatpush2.bf16.msra.mxu0 0
        %1128 = vmatprep.subr.bf16.mxu0 0
        %1129 = vmatpush2.bf16.msra.mxu0 0
        %1130 = vmatprep.subr.bf16.mxu0 0
        %1131 = vmatpush2.bf16.msra.mxu0 0
        %1132 = vmatprep.subr.bf16.mxu0 0
        %1133 = vmatpush2.bf16.msra.mxu0 0
        %1134 = vmatprep.subr.bf16.mxu0 0
        %1135 = vmatpush2.bf16.msra.mxu0 0
        %1136 = vmatprep.subr.bf16.mxu0 0
        %1137 = vmatpush2.bf16.msra.mxu0 0
        %1138 = vmatprep.mubr.bf16.mxu0 0
        %1139 = vmatmul.mubr.bf16.gmra.mxu0 %v1100
        %v1140 = vpop.f32.mrf.mxu0
        %v1141 = vadd.f32 0.0, %v1140
        %v1142 = vpop.f32.mrf.mxu0
        %v1143 = vpop.f32.mrf.mxu0
        %v1144 = vpop.f32.mrf.mxu0
        %1145 = vdwg.mxu0
        %v1147 = vsel %vm1002, %v1092, 0
        %v1150 = vsel %vm1102, %v602, 0
        %1152 = vmatprep.subr.bf16.mxu0 0
        %1153 = vmatpush1.bf16.msra.mxu0 0
        %1154 = vmatprep.subr.bf16.mxu0 0
        %1155 = vmatpush1.bf16.msra.mxu0 0
        %1156 = vmatprep.subr.bf16.mxu0 0
        %1157 = vmatpush1.bf16.msra.mxu0 0
        %1158 = vmatprep.subr.bf16.mxu0 0
        %1159 = vmatpush1.bf16.msra.mxu0 0
        %1160 = vmatprep.subr.bf16.mxu0 0
        %1161 = vmatpush1.bf16.msra.mxu0 0
        %1162 = vmatprep.subr.bf16.mxu0 0
        %1163 = vmatpush1.bf16.msra.mxu0 0
        %1164 = vmatprep.subr.bf16.mxu0 0
        %1165 = vmatpush1.bf16.msra.mxu0 0
        %1166 = vmatprep.subr.bf16.mxu0 0
        %1167 = vmatpush1.bf16.msra.mxu0 %v1150
        %1168 = vmatprep.subr.bf16.mxu0 0
        %1169 = vmatpush2.bf16.msra.mxu0 0
        %1170 = vmatprep.subr.bf16.mxu0 0
        %1171 = vmatpush2.bf16.msra.mxu0 0
        %1172 = vmatprep.subr.bf16.mxu0 0
        %1173 = vmatpush2.bf16.msra.mxu0 0
        %1174 = vmatprep.subr.bf16.mxu0 0
        %1175 = vmatpush2.bf16.msra.mxu0 0
        %1176 = vmatprep.subr.bf16.mxu0 0
        %1177 = vmatpush2.bf16.msra.mxu0 0
        %1178 = vmatprep.subr.bf16.mxu0 0
        %1179 = vmatpush2.bf16.msra.mxu0 0
        %1180 = vmatprep.subr.bf16.mxu0 0
        %1181 = vmatpush2.bf16.msra.mxu0 0
        %1182 = vmatprep.subr.bf16.mxu0 0
        %1183 = vmatpush2.bf16.msra.mxu0 0
        %1184 = vmatprep.mubr.bf16.mxu0 0
        %1185 = vmatmul.mubr.bf16.gmra.mxu0 %v1147
        %v1186 = vpop.f32.mrf.mxu0
        %v1187 = vadd.f32 0.0, %v1186
        %v1188 = vpop.f32.mrf.mxu0
        %v1189 = vpop.f32.mrf.mxu0
        %v1190 = vpop.f32.mrf.mxu0
        %1191 = vdwg.mxu0
        %v1193 = vsel %vm1002, %v1093, 0
        %v1196 = vsel %vm1102, %v603, 0
        %1198 = vmatprep.subr.bf16.mxu0 0
        %1199 = vmatpush1.bf16.msra.mxu0 0
        %1200 = vmatprep.subr.bf16.mxu0 0
        %1201 = vmatpush1.bf16.msra.mxu0 0
        %1202 = vmatprep.subr.bf16.mxu0 0
        %1203 = vmatpush1.bf16.msra.mxu0 0
        %1204 = vmatprep.subr.bf16.mxu0 0
        %1205 = vmatpush1.bf16.msra.mxu0 0
        %1206 = vmatprep.subr.bf16.mxu0 0
        %1207 = vmatpush1.bf16.msra.mxu0 0
        %1208 = vmatprep.subr.bf16.mxu0 0
        %1209 = vmatpush1.bf16.msra.mxu0 0
        %1210 = vmatprep.subr.bf16.mxu0 0
        %1211 = vmatpush1.bf16.msra.mxu0 0
        %1212 = vmatprep.subr.bf16.mxu0 0
        %1213 = vmatpush1.bf16.msra.mxu0 %v1196
        %1214 = vmatprep.subr.bf16.mxu0 0
        %1215 = vmatpush2.bf16.msra.mxu0 0
        %1216 = vmatprep.subr.bf16.mxu0 0
        %1217 = vmatpush2.bf16.msra.mxu0 0
        %1218 = vmatprep.subr.bf16.mxu0 0
        %1219 = vmatpush2.bf16.msra.mxu0 0
        %1220 = vmatprep.subr.bf16.mxu0 0
        %1221 = vmatpush2.bf16.msra.mxu0 0
        %1222 = vmatprep.subr.bf16.mxu0 0
        %1223 = vmatpush2.bf16.msra.mxu0 0
        %1224 = vmatprep.subr.bf16.mxu0 0
        %1225 = vmatpush2.bf16.msra.mxu0 0
        %1226 = vmatprep.subr.bf16.mxu0 0
        %1227 = vmatpush2.bf16.msra.mxu0 0
        %1228 = vmatprep.subr.bf16.mxu0 0
        %1229 = vmatpush2.bf16.msra.mxu0 0
        %1230 = vmatprep.mubr.bf16.mxu0 0
        %1231 = vmatmul.mubr.bf16.gmra.mxu0 %v1193
        %v1232 = vpop.f32.mrf.mxu0
        %v1233 = vadd.f32 0.0, %v1232
        %v1234 = vpop.f32.mrf.mxu0
        %v1235 = vpop.f32.mrf.mxu0
        %v1236 = vpop.f32.mrf.mxu0
        %1237 = vdwg.mxu0
        %v1239 = vsel %vm1002, %v1094, 0
        %v1242 = vsel %vm1102, %v604, 0
        %1244 = vmatprep.subr.bf16.mxu0 0
        %1245 = vmatpush1.bf16.msra.mxu0 0
        %1246 = vmatprep.subr.bf16.mxu0 0
        %1247 = vmatpush1.bf16.msra.mxu0 0
        %1248 = vmatprep.subr.bf16.mxu0 0
        %1249 = vmatpush1.bf16.msra.mxu0 0
        %1250 = vmatprep.subr.bf16.mxu0 0
        %1251 = vmatpush1.bf16.msra.mxu0 0
        %1252 = vmatprep.subr.bf16.mxu0 0
        %1253 = vmatpush1.bf16.msra.mxu0 0
        %1254 = vmatprep.subr.bf16.mxu0 0
        %1255 = vmatpush1.bf16.msra.mxu0 0
        %1256 = vmatprep.subr.bf16.mxu0 0
        %1257 = vmatpush1.bf16.msra.mxu0 0
        %1258 = vmatprep.subr.bf16.mxu0 0
        %1259 = vmatpush1.bf16.msra.mxu0 %v1242
        %1260 = vmatprep.subr.bf16.mxu0 0
        %1261 = vmatpush2.bf16.msra.mxu0 0
        %1262 = vmatprep.subr.bf16.mxu0 0
        %1263 = vmatpush2.bf16.msra.mxu0 0
        %1264 = vmatprep.subr.bf16.mxu0 0
        %1265 = vmatpush2.bf16.msra.mxu0 0
        %1266 = vmatprep.subr.bf16.mxu0 0
        %1267 = vmatpush2.bf16.msra.mxu0 0
        %1268 = vmatprep.subr.bf16.mxu0 0
        %1269 = vmatpush2.bf16.msra.mxu0 0
        %1270 = vmatprep.subr.bf16.mxu0 0
        %1271 = vmatpush2.bf16.msra.mxu0 0
        %1272 = vmatprep.subr.bf16.mxu0 0
        %1273 = vmatpush2.bf16.msra.mxu0 0
        %1274 = vmatprep.subr.bf16.mxu0 0
        %1275 = vmatpush2.bf16.msra.mxu0 0
        %1276 = vmatprep.mubr.bf16.mxu0 0
        %1277 = vmatmul.mubr.bf16.gmra.mxu0 %v1239
        %v1278 = vpop.f32.mrf.mxu0
        %v1279 = vadd.f32 0.0, %v1278
        %v1280 = vpop.f32.mrf.mxu0
        %v1281 = vpop.f32.mrf.mxu0
        %v1282 = vpop.f32.mrf.mxu0
        %1283 = vdwg.mxu0
        %v1285 = vsel %vm1002, %v1095, 0
        %v1288 = vsel %vm1102, %v605, 0
        %1290 = vmatprep.subr.bf16.mxu0 0
        %1291 = vmatpush1.bf16.msra.mxu0 0
        %1292 = vmatprep.subr.bf16.mxu0 0
        %1293 = vmatpush1.bf16.msra.mxu0 0
        %1294 = vmatprep.subr.bf16.mxu0 0
        %1295 = vmatpush1.bf16.msra.mxu0 0
        %1296 = vmatprep.subr.bf16.mxu0 0
        %1297 = vmatpush1.bf16.msra.mxu0 0
        %1298 = vmatprep.subr.bf16.mxu0 0
        %1299 = vmatpush1.bf16.msra.mxu0 0
        %1300 = vmatprep.subr.bf16.mxu0 0
        %1301 = vmatpush1.bf16.msra.mxu0 0
        %1302 = vmatprep.subr.bf16.mxu0 0
        %1303 = vmatpush1.bf16.msra.mxu0 0
        %1304 = vmatprep.subr.bf16.mxu0 0
        %1305 = vmatpush1.bf16.msra.mxu0 %v1288
        %1306 = vmatprep.subr.bf16.mxu0 0
        %1307 = vmatpush2.bf16.msra.mxu0 0
        %1308 = vmatprep.subr.bf16.mxu0 0
        %1309 = vmatpush2.bf16.msra.mxu0 0
        %1310 = vmatprep.subr.bf16.mxu0 0
        %1311 = vmatpush2.bf16.msra.mxu0 0
        %1312 = vmatprep.subr.bf16.mxu0 0
        %1313 = vmatpush2.bf16.msra.mxu0 0
        %1314 = vmatprep.subr.bf16.mxu0 0
        %1315 = vmatpush2.bf16.msra.mxu0 0
        %1316 = vmatprep.subr.bf16.mxu0 0
        %1317 = vmatpush2.bf16.msra.mxu0 0
        %1318 = vmatprep.subr.bf16.mxu0 0
        %1319 = vmatpush2.bf16.msra.mxu0 0
        %1320 = vmatprep.subr.bf16.mxu0 0
        %1321 = vmatpush2.bf16.msra.mxu0 0
        %1322 = vmatprep.mubr.bf16.mxu0 0
        %1323 = vmatmul.mubr.bf16.gmra.mxu0 %v1285
        %v1324 = vpop.f32.mrf.mxu0
        %v1325 = vadd.f32 0.0, %v1324
        %v1326 = vpop.f32.mrf.mxu0
        %v1327 = vpop.f32.mrf.mxu0
        %v1328 = vpop.f32.mrf.mxu0
        %1329 = vdwg.mxu0
        %v1331 = vsel %vm1002, %v1096, 0
        %v1334 = vsel %vm1102, %v606, 0
        %1336 = vmatprep.subr.bf16.mxu0 0
        %1337 = vmatpush1.bf16.msra.mxu0 0
        %1338 = vmatprep.subr.bf16.mxu0 0
        %1339 = vmatpush1.bf16.msra.mxu0 0
        %1340 = vmatprep.subr.bf16.mxu0 0
        %1341 = vmatpush1.bf16.msra.mxu0 0
        %1342 = vmatprep.subr.bf16.mxu0 0
        %1343 = vmatpush1.bf16.msra.mxu0 0
        %1344 = vmatprep.subr.bf16.mxu0 0
        %1345 = vmatpush1.bf16.msra.mxu0 0
        %1346 = vmatprep.subr.bf16.mxu0 0
        %1347 = vmatpush1.bf16.msra.mxu0 0
        %1348 = vmatprep.subr.bf16.mxu0 0
        %1349 = vmatpush1.bf16.msra.mxu0 0
        %1350 = vmatprep.subr.bf16.mxu0 0
        %1351 = vmatpush1.bf16.msra.mxu0 %v1334
        %1352 = vmatprep.subr.bf16.mxu0 0
        %1353 = vmatpush2.bf16.msra.mxu0 0
        %1354 = vmatprep.subr.bf16.mxu0 0
        %1355 = vmatpush2.bf16.msra.mxu0 0
        %1356 = vmatprep.subr.bf16.mxu0 0
        %1357 = vmatpush2.bf16.msra.mxu0 0
        %1358 = vmatprep.subr.bf16.mxu0 0
        %1359 = vmatpush2.bf16.msra.mxu0 0
        %1360 = vmatprep.subr.bf16.mxu0 0
        %1361 = vmatpush2.bf16.msra.mxu0 0
        %1362 = vmatprep.subr.bf16.mxu0 0
        %1363 = vmatpush2.bf16.msra.mxu0 0
        %1364 = vmatprep.subr.bf16.mxu0 0
        %1365 = vmatpush2.bf16.msra.mxu0 0
        %1366 = vmatprep.subr.bf16.mxu0 0
        %1367 = vmatpush2.bf16.msra.mxu0 0
        %1368 = vmatprep.mubr.bf16.mxu0 0
        %1369 = vmatmul.mubr.bf16.gmra.mxu0 %v1331
        %v1370 = vpop.f32.mrf.mxu0
        %v1371 = vadd.f32 0.0, %v1370
        %v1372 = vpop.f32.mrf.mxu0
        %v1373 = vpop.f32.mrf.mxu0
        %v1374 = vpop.f32.mrf.mxu0
        %1375 = vdwg.mxu0
        %v1377 = vsel %vm1002, %v1097, 0
        %v1380 = vsel %vm1102, %v607, 0
        %1382 = vmatprep.subr.bf16.mxu0 0
        %1383 = vmatpush1.bf16.msra.mxu0 0
        %1384 = vmatprep.subr.bf16.mxu0 0
        %1385 = vmatpush1.bf16.msra.mxu0 0
        %1386 = vmatprep.subr.bf16.mxu0 0
        %1387 = vmatpush1.bf16.msra.mxu0 0
        %1388 = vmatprep.subr.bf16.mxu0 0
        %1389 = vmatpush1.bf16.msra.mxu0 0
        %1390 = vmatprep.subr.bf16.mxu0 0
        %1391 = vmatpush1.bf16.msra.mxu0 0
        %1392 = vmatprep.subr.bf16.mxu0 0
        %1393 = vmatpush1.bf16.msra.mxu0 0
        %1394 = vmatprep.subr.bf16.mxu0 0
        %1395 = vmatpush1.bf16.msra.mxu0 0
        %1396 = vmatprep.subr.bf16.mxu0 0
        %1397 = vmatpush1.bf16.msra.mxu0 %v1380
        %1398 = vmatprep.subr.bf16.mxu0 0
        %1399 = vmatpush2.bf16.msra.mxu0 0
        %1400 = vmatprep.subr.bf16.mxu0 0
        %1401 = vmatpush2.bf16.msra.mxu0 0
        %1402 = vmatprep.subr.bf16.mxu0 0
        %1403 = vmatpush2.bf16.msra.mxu0 0
        %1404 = vmatprep.subr.bf16.mxu0 0
        %1405 = vmatpush2.bf16.msra.mxu0 0
        %1406 = vmatprep.subr.bf16.mxu0 0
        %1407 = vmatpush2.bf16.msra.mxu0 0
        %1408 = vmatprep.subr.bf16.mxu0 0
        %1409 = vmatpush2.bf16.msra.mxu0 0
        %1410 = vmatprep.subr.bf16.mxu0 0
        %1411 = vmatpush2.bf16.msra.mxu0 0
        %1412 = vmatprep.subr.bf16.mxu0 0
        %1413 = vmatpush2.bf16.msra.mxu0 0
        %1414 = vmatprep.mubr.bf16.mxu0 0
        %1415 = vmatmul.mubr.bf16.gmra.mxu0 %v1377
        %v1416 = vpop.f32.mrf.mxu0
        %v1417 = vadd.f32 0.0, %v1416
        %v1418 = vpop.f32.mrf.mxu0
        %v1419 = vpop.f32.mrf.mxu0
        %v1420 = vpop.f32.mrf.mxu0
        %1421 = vdwg.mxu0
        %v1423 = vsel %vm1002, %v1098, 0
        %v1426 = vsel %vm1102, %v608, 0
        %1428 = vmatprep.subr.bf16.mxu0 0
        %1429 = vmatpush1.bf16.msra.mxu0 0
        %1430 = vmatprep.subr.bf16.mxu0 0
        %1431 = vmatpush1.bf16.msra.mxu0 0
        %1432 = vmatprep.subr.bf16.mxu0 0
        %1433 = vmatpush1.bf16.msra.mxu0 0
        %1434 = vmatprep.subr.bf16.mxu0 0
        %1435 = vmatpush1.bf16.msra.mxu0 0
        %1436 = vmatprep.subr.bf16.mxu0 0
        %1437 = vmatpush1.bf16.msra.mxu0 0
        %1438 = vmatprep.subr.bf16.mxu0 0
        %1439 = vmatpush1.bf16.msra.mxu0 0
        %1440 = vmatprep.subr.bf16.mxu0 0
        %1441 = vmatpush1.bf16.msra.mxu0 0
        %1442 = vmatprep.subr.bf16.mxu0 0
        %1443 = vmatpush1.bf16.msra.mxu0 %v1426
        %1444 = vmatprep.subr.bf16.mxu0 0
        %1445 = vmatpush2.bf16.msra.mxu0 0
        %1446 = vmatprep.subr.bf16.mxu0 0
        %1447 = vmatpush2.bf16.msra.mxu0 0
        %1448 = vmatprep.subr.bf16.mxu0 0
        %1449 = vmatpush2.bf16.msra.mxu0 0
        %1450 = vmatprep.subr.bf16.mxu0 0
        %1451 = vmatpush2.bf16.msra.mxu0 0
        %1452 = vmatprep.subr.bf16.mxu0 0
        %1453 = vmatpush2.bf16.msra.mxu0 0
        %1454 = vmatprep.subr.bf16.mxu0 0
        %1455 = vmatpush2.bf16.msra.mxu0 0
        %1456 = vmatprep.subr.bf16.mxu0 0
        %1457 = vmatpush2.bf16.msra.mxu0 0
        %1458 = vmatprep.subr.bf16.mxu0 0
        %1459 = vmatpush2.bf16.msra.mxu0 0
        %1460 = vmatprep.mubr.bf16.mxu0 0
        %1461 = vmatmul.mubr.bf16.gmra.mxu0 %v1423
        %v1462 = vpop.f32.mrf.mxu0
        %v1463 = vadd.f32 0.0, %v1462
        %v1464 = vpop.f32.mrf.mxu0
        %v1465 = vpop.f32.mrf.mxu0
        %v1466 = vpop.f32.mrf.mxu0
        %1467 = vdwg.mxu0
        %1470 = vrot.lane.b32.xlu0 %v1233, 16
        %v1471 = vpop.permute.xlu0 %1470
        %1472 = vrot.lane.b32.xlu0 %v1279, 16
        %v1473 = vpop.permute.xlu0 %1472
        %1478 = vrot.lane.b32.xlu0 %v1325, 32
        %v1479 = vpop.permute.xlu0 %1478
        %1480 = vrot.lane.b32.xlu0 %v1371, 32
        %v1481 = vpop.permute.xlu0 %1480
        %1486 = vrot.lane.b32.xlu0 %v1417, 48
        %v1487 = vpop.permute.xlu0 %1486
        %1488 = vrot.lane.b32.xlu0 %v1463, 48
        %v1489 = vpop.permute.xlu0 %1488
        %v1492 = vsel %vm612, %v1141, %v1471
        %v1493 = vsel %vm612, %v1187, %v1473
        %vm1494 = vcmask 261120
        %v1495 = vsel %vm1494, %v1492, %v1479
        %v1496 = vsel %vm1494, %v1493, %v1481
        %vm1497 = vcmask 392192
        %v1498 = vsel %vm1497, %v1495, %v1487
        %v1499 = vsel %vm1497, %v1496, %v1489
        %v1500 = vpack.c.bf16 %v1499, %v1498
        %v1501 = vld [vmem:[%s3] sm:$0xf]
        %v1502 = vld [vmem:[%s3 + $0x4] sm:$0xf]
        %v1503 = vld [vmem:[%s3 + $0x8] sm:$0xf]
        %v1504 = vld [vmem:[%s3 + $0xc] sm:$0xf]
        %v1505 = vld [vmem:[%s3 + $0x10] sm:$0xf]
        %v1506 = vld [vmem:[%s3 + $0x14] sm:$0xf]
        %v1507 = vld [vmem:[%s3 + $0x18] sm:$0xf]
        %v1508 = vld [vmem:[%s3 + $0x1c] sm:$0xf]
        %v1509 = vld [vmem:[%s4] sm:$0x1]
        %v1511 = vlaneseq
        %v1512 = vshrl.u32 %v1511, 7
        %v1513 = vsub.s32 0, %v1512
        %v1514 = vrot.slane %v1509, %v1513
        %v1524 = vunpack.c.l.b16 %v1501
        %v1525 = vunpack.c.l.b16 %v1502
        %v1526 = vunpack.c.l.b16 %v1503
        %v1527 = vunpack.c.l.b16 %v1504
        %v1528 = vunpack.c.l.b16 %v1505
        %v1529 = vunpack.c.l.b16 %v1506
        %v1530 = vunpack.c.l.b16 %v1507
        %v1531 = vunpack.c.l.b16 %v1508
        %v1532 = vpack.c.b16 %v1525, %v1524
        %v1533 = vpack.c.b16 %v1527, %v1526
        %v1534 = vpack.c.b16 %v1529, %v1528
        %v1535 = vpack.c.b16 %v1531, %v1530
        %v1541 = vsel %vm506, %v1500, 0
        %1543 = vmatprep.subr.bf16.mxu0 0
        %1544 = vmatpush1.bf16.msra.mxu0 0
        %1545 = vmatprep.subr.bf16.mxu0 0
        %1546 = vmatpush1.bf16.msra.mxu0 0
        %1547 = vmatprep.subr.bf16.mxu0 0
        %1548 = vmatpush1.bf16.msra.mxu0 0
        %1549 = vmatprep.subr.bf16.mxu0 0
        %1550 = vmatpush1.bf16.msra.mxu0 0
        %1551 = vmatprep.subr.bf16.mxu0 0
        %1552 = vmatpush1.bf16.msra.mxu0 %v1535
        %1553 = vmatprep.subr.bf16.mxu0 0
        %1554 = vmatpush1.bf16.msra.mxu0 %v1534
        %1555 = vmatprep.subr.bf16.mxu0 0
        %1556 = vmatpush1.bf16.msra.mxu0 %v1533
        %1557 = vmatprep.subr.bf16.mxu0 0
        %1558 = vmatpush1.bf16.msra.mxu0 %v1532
        %1559 = vmatprep.subr.bf16.mxu0 0
        %1560 = vmatpush2.bf16.msra.mxu0 0
        %1561 = vmatprep.subr.bf16.mxu0 0
        %1562 = vmatpush2.bf16.msra.mxu0 0
        %1563 = vmatprep.subr.bf16.mxu0 0
        %1564 = vmatpush2.bf16.msra.mxu0 0
        %1565 = vmatprep.subr.bf16.mxu0 0
        %1566 = vmatpush2.bf16.msra.mxu0 0
        %1567 = vmatprep.subr.bf16.mxu0 0
        %1568 = vmatpush2.bf16.msra.mxu0 0
        %1569 = vmatprep.subr.bf16.mxu0 0
        %1570 = vmatpush2.bf16.msra.mxu0 0
        %1571 = vmatprep.subr.bf16.mxu0 0
        %1572 = vmatpush2.bf16.msra.mxu0 0
        %1573 = vmatprep.subr.bf16.mxu0 0
        %1574 = vmatpush2.bf16.msra.mxu0 0
        %1575 = vmatprep.mubr.bf16.mxu0 0
        %1576 = vmatmul.mubr.bf16.gmra.mxu0 %v1541
        %v1577 = vpop.f32.mrf.mxu0
        %v1578 = vadd.f32 %v1514, %v1577
        %v1579 = vpop.f32.mrf.mxu0
        %v1580 = vpop.f32.mrf.mxu0
        %v1581 = vadd.f32 %v1514, %v1580
        %v1582 = vpop.f32.mrf.mxu0
        %1583 = vdwg.mxu0
        %v1584 = vadd.f32 %v1578, %v443
        %v1585 = vadd.f32 %v1581, %v444
        %v1586 = vsel %vm506, %v1584, 0.0
        %1587 = vadd.xlane.f32.xlu0 %v1586
        %v1588 = vpop.xlane.xlu0 %1587
        %v1589 = vsel %vm506, %v1585, 0.0
        %1590 = vadd.xlane.f32.xlu0 %v1589
        %v1591 = vpop.xlane.xlu0 %1590
        %v1592 = vrcp.pop 64.0
        %v1593 = vmul.f32 %v1588, %v1592
        %v1594 = vmul.f32 %v1591, %v1592
        %v1595 = vsub.f32 %v1584, %v1593
        %v1596 = vsub.f32 %v1585, %v1594
        %v1597 = vmul.f32 %v1595, %v1595
        %v1598 = vmul.f32 %v1596, %v1596
        %v1599 = vsel %vm506, %v1597, 0.0
        %1600 = vadd.xlane.f32.xlu0 %v1599
        %v1601 = vpop.xlane.xlu0 %1600
        %v1602 = vsel %vm506, %v1598, 0.0
        %1603 = vadd.xlane.f32.xlu0 %v1602
        %v1604 = vpop.xlane.xlu0 %1603
        %v1605 = vmul.f32 %v1601, %v1592
        %v1606 = vmul.f32 %v1604, %v1592
        %v1607 = vadd.f32 %v1605, 1e-05
        %v1608 = vadd.f32 %v1606, 1e-05
        %v1609 = vrsqrt.pop %v1607
        %v1610 = vrsqrt.pop %v1608
        %v1611 = vmul.f32 %v1595, %v1609
        %v1612 = vmul.f32 %v1596, %v1610
        %v1613 = vld [vmem:[%s5] sm:$0x1]
        %v1615 = vlaneseq
        %v1616 = vshrl.u32 %v1615, 7
        %v1617 = vsub.s32 0, %v1616
        %v1618 = vrot.slane %v1613, %v1617
        %v1620 = vmul.f32 %v1611, %v1618
        %v1621 = vmul.f32 %v1612, %v1618
        %v1622 = vld [vmem:[%s6] sm:$0x1]
        %v1624 = vlaneseq
        %v1625 = vshrl.u32 %v1624, 7
        %v1626 = vsub.s32 0, %v1625
        %v1627 = vrot.slane %v1622, %v1626
        %v1629 = vadd.f32 %v1620, %v1627
        %v1630 = vadd.f32 %v1621, %v1627
        %v1631 = vpack.c.bf16 %v1630, %v1629
        %v1632 = vld [vmem:[%s7] sm:$0xff]
        %v1633 = vld [vmem:[%s7 + $0x8] sm:$0xff]
        %v1634 = vld [vmem:[%s7 + $0x10] sm:$0xff]
        %v1635 = vld [vmem:[%s7 + $0x18] sm:$0xff]
        %v1636 = vld [vmem:[%s7 + $0x20] sm:$0xff]
        %v1637 = vld [vmem:[%s7 + $0x28] sm:$0xff]
        %v1638 = vld [vmem:[%s7 + $0x30] sm:$0xff]
        %v1639 = vld [vmem:[%s7 + $0x38] sm:$0xff]
        %v1640 = vld [vmem:[%s8] sm:$0x3]
        %v1642 = vlaneseq
        %v1643 = vshrl.u32 %v1642, 7
        %v1644 = vsub.s32 0, %v1643
        %v1645 = vrot.slane %v1640, %v1644
        %v1646 = vlaneseq
        %v1647 = vshrl.u32 %v1646, 7
        %v1648 = vsub.s32 1, %v1647
        %v1649 = vrot.slane %v1640, %v1648
        %v1660 = vunpack.c.l.b16 %v1632
        %v1661 = vunpack.c.h.b16 %v1632
        %v1662 = vunpack.c.l.b16 %v1633
        %v1663 = vunpack.c.h.b16 %v1633
        %v1664 = vunpack.c.l.b16 %v1634
        %v1665 = vunpack.c.h.b16 %v1634
        %v1666 = vunpack.c.l.b16 %v1635
        %v1667 = vunpack.c.h.b16 %v1635
        %v1668 = vunpack.c.l.b16 %v1636
        %v1669 = vunpack.c.h.b16 %v1636
        %v1670 = vunpack.c.l.b16 %v1637
        %v1671 = vunpack.c.h.b16 %v1637
        %v1672 = vunpack.c.l.b16 %v1638
        %v1673 = vunpack.c.h.b16 %v1638
        %v1674 = vunpack.c.l.b16 %v1639
        %v1675 = vunpack.c.h.b16 %v1639
        %v1676 = vpack.c.b16 %v1662, %v1660
        %v1677 = vpack.c.b16 %v1663, %v1661
        %v1678 = vpack.c.b16 %v1666, %v1664
        %v1679 = vpack.c.b16 %v1667, %v1665
        %v1680 = vpack.c.b16 %v1670, %v1668
        %v1681 = vpack.c.b16 %v1671, %v1669
        %v1682 = vpack.c.b16 %v1674, %v1672
        %v1683 = vpack.c.b16 %v1675, %v1673
        %v1693 = vsel %vm506, %v1631, 0
        %1695 = vmatprep.subr.bf16.mxu0 0
        %1696 = vmatpush1.bf16.msra.mxu0 0
        %1697 = vmatprep.subr.bf16.mxu0 0
        %1698 = vmatpush1.bf16.msra.mxu0 0
        %1699 = vmatprep.subr.bf16.mxu0 0
        %1700 = vmatpush1.bf16.msra.mxu0 0
        %1701 = vmatprep.subr.bf16.mxu0 0
        %1702 = vmatpush1.bf16.msra.mxu0 0
        %1703 = vmatprep.subr.bf16.mxu0 %v1683
        %1704 = vmatpush1.bf16.msra.mxu0 %v1682
        %1705 = vmatprep.subr.bf16.mxu0 %v1681
        %1706 = vmatpush1.bf16.msra.mxu0 %v1680
        %1707 = vmatprep.subr.bf16.mxu0 %v1679
        %1708 = vmatpush1.bf16.msra.mxu0 %v1678
        %1709 = vmatprep.subr.bf16.mxu0 %v1677
        %1710 = vmatpush1.bf16.msra.mxu0 %v1676
        %1711 = vmatprep.subr.bf16.mxu0 0
        %1712 = vmatpush2.bf16.msra.mxu0 0
        %1713 = vmatprep.subr.bf16.mxu0 0
        %1714 = vmatpush2.bf16.msra.mxu0 0
        %1715 = vmatprep.subr.bf16.mxu0 0
        %1716 = vmatpush2.bf16.msra.mxu0 0
        %1717 = vmatprep.subr.bf16.mxu0 0
        %1718 = vmatpush2.bf16.msra.mxu0 0
        %1719 = vmatprep.subr.bf16.mxu0 0
        %1720 = vmatpush2.bf16.msra.mxu0 0
        %1721 = vmatprep.subr.bf16.mxu0 0
        %1722 = vmatpush2.bf16.msra.mxu0 0
        %1723 = vmatprep.subr.bf16.mxu0 0
        %1724 = vmatpush2.bf16.msra.mxu0 0
        %1725 = vmatprep.subr.bf16.mxu0 0
        %1726 = vmatpush2.bf16.msra.mxu0 0
        %1727 = vmatprep.mubr.bf16.mxu0 0
        %1728 = vmatmul.mubr.bf16.gmra.mxu0 %v1693
        %v1729 = vpop.f32.mrf.mxu0
        %v1730 = vadd.f32 %v1645, %v1729
        %v1731 = vpop.f32.mrf.mxu0
        %v1732 = vadd.f32 %v1649, %v1731
        %v1733 = vpop.f32.mrf.mxu0
        %v1734 = vadd.f32 %v1645, %v1733
        %v1735 = vpop.f32.mrf.mxu0
        %v1736 = vadd.f32 %v1649, %v1735
        %1737 = vdwg.mxu0
        %v1738 = vmax.f32 %v1730, 0.0
        %v1739 = vmax.f32 %v1732, 0.0
        %v1740 = vmax.f32 %v1734, 0.0
        %v1741 = vmax.f32 %v1736, 0.0
        %v1742 = vpack.c.bf16 %v1740, %v1738
        %v1743 = vpack.c.bf16 %v1741, %v1739
        %v1744 = vld [vmem:[%s9] sm:$0xf]
        %v1745 = vld [vmem:[%s9 + $0x4] sm:$0xf]
        %v1746 = vld [vmem:[%s9 + $0x8] sm:$0xf]
        %v1747 = vld [vmem:[%s9 + $0xc] sm:$0xf]
        %v1748 = vld [vmem:[%s9 + $0x10] sm:$0xf]
        %v1749 = vld [vmem:[%s9 + $0x14] sm:$0xf]
        %v1750 = vld [vmem:[%s9 + $0x18] sm:$0xf]
        %v1751 = vld [vmem:[%s9 + $0x1c] sm:$0xf]
        %v1752 = vld [vmem:[%s9 + $0x20] sm:$0xf]
        %v1753 = vld [vmem:[%s9 + $0x24] sm:$0xf]
        %v1754 = vld [vmem:[%s9 + $0x28] sm:$0xf]
        %v1755 = vld [vmem:[%s9 + $0x2c] sm:$0xf]
        %v1756 = vld [vmem:[%s9 + $0x30] sm:$0xf]
        %v1757 = vld [vmem:[%s9 + $0x34] sm:$0xf]
        %v1758 = vld [vmem:[%s9 + $0x38] sm:$0xf]
        %v1759 = vld [vmem:[%s9 + $0x3c] sm:$0xf]
        %v1760 = vld [vmem:[%s9 + $0x40] sm:$0xf]
        %v1761 = vld [vmem:[%s9 + $0x44] sm:$0xf]
        %v1762 = vld [vmem:[%s9 + $0x48] sm:$0xf]
        %v1763 = vld [vmem:[%s9 + $0x4c] sm:$0xf]
        %v1764 = vld [vmem:[%s9 + $0x50] sm:$0xf]
        %v1765 = vld [vmem:[%s9 + $0x54] sm:$0xf]
        %v1766 = vld [vmem:[%s9 + $0x58] sm:$0xf]
        %v1767 = vld [vmem:[%s9 + $0x5c] sm:$0xf]
        %v1768 = vld [vmem:[%s9 + $0x60] sm:$0xf]
        %v1769 = vld [vmem:[%s9 + $0x64] sm:$0xf]
        %v1770 = vld [vmem:[%s9 + $0x68] sm:$0xf]
        %v1771 = vld [vmem:[%s9 + $0x6c] sm:$0xf]
        %v1772 = vld [vmem:[%s9 + $0x70] sm:$0xf]
        %v1773 = vld [vmem:[%s9 + $0x74] sm:$0xf]
        %v1774 = vld [vmem:[%s9 + $0x78] sm:$0xf]
        %v1775 = vld [vmem:[%s9 + $0x7c] sm:$0xf]
        %v1776 = vld [vmem:[%s10] sm:$0x1]
        %v1778 = vlaneseq
        %v1779 = vshrl.u32 %v1778, 7
        %v1780 = vsub.s32 0, %v1779
        %v1781 = vrot.slane %v1776, %v1780
        %v1815 = vunpack.c.l.b16 %v1744
        %v1816 = vunpack.c.l.b16 %v1745
        %v1817 = vunpack.c.l.b16 %v1746
        %v1818 = vunpack.c.l.b16 %v1747
        %v1819 = vunpack.c.l.b16 %v1748
        %v1820 = vunpack.c.l.b16 %v1749
        %v1821 = vunpack.c.l.b16 %v1750
        %v1822 = vunpack.c.l.b16 %v1751
        %v1823 = vunpack.c.l.b16 %v1752
        %v1824 = vunpack.c.l.b16 %v1753
        %v1825 = vunpack.c.l.b16 %v1754
        %v1826 = vunpack.c.l.b16 %v1755
        %v1827 = vunpack.c.l.b16 %v1756
        %v1828 = vunpack.c.l.b16 %v1757
        %v1829 = vunpack.c.l.b16 %v1758
        %v1830 = vunpack.c.l.b16 %v1759
        %v1831 = vunpack.c.l.b16 %v1760
        %v1832 = vunpack.c.l.b16 %v1761
        %v1833 = vunpack.c.l.b16 %v1762
        %v1834 = vunpack.c.l.b16 %v1763
        %v1835 = vunpack.c.l.b16 %v1764
        %v1836 = vunpack.c.l.b16 %v1765
        %v1837 = vunpack.c.l.b16 %v1766
        %v1838 = vunpack.c.l.b16 %v1767
        %v1839 = vunpack.c.l.b16 %v1768
        %v1840 = vunpack.c.l.b16 %v1769
        %v1841 = vunpack.c.l.b16 %v1770
        %v1842 = vunpack.c.l.b16 %v1771
        %v1843 = vunpack.c.l.b16 %v1772
        %v1844 = vunpack.c.l.b16 %v1773
        %v1845 = vunpack.c.l.b16 %v1774
        %v1846 = vunpack.c.l.b16 %v1775
        %v1847 = vpack.c.b16 %v1816, %v1815
        %v1848 = vpack.c.b16 %v1818, %v1817
        %v1849 = vpack.c.b16 %v1820, %v1819
        %v1850 = vpack.c.b16 %v1822, %v1821
        %v1851 = vpack.c.b16 %v1824, %v1823
        %v1852 = vpack.c.b16 %v1826, %v1825
        %v1853 = vpack.c.b16 %v1828, %v1827
        %v1854 = vpack.c.b16 %v1830, %v1829
        %v1855 = vpack.c.b16 %v1832, %v1831
        %v1856 = vpack.c.b16 %v1834, %v1833
        %v1857 = vpack.c.b16 %v1836, %v1835
        %v1858 = vpack.c.b16 %v1838, %v1837
        %v1859 = vpack.c.b16 %v1840, %v1839
        %v1860 = vpack.c.b16 %v1842, %v1841
        %v1861 = vpack.c.b16 %v1844, %v1843
        %v1862 = vpack.c.b16 %v1846, %v1845
        %1879 = vmatprep.subr.bf16.mxu0 0
        %1880 = vmatpush1.bf16.msra.mxu0 %v1854
        %1881 = vmatprep.subr.bf16.mxu0 0
        %1882 = vmatpush1.bf16.msra.mxu0 %v1853
        %1883 = vmatprep.subr.bf16.mxu0 0
        %1884 = vmatpush1.bf16.msra.mxu0 %v1852
        %1885 = vmatprep.subr.bf16.mxu0 0
        %1886 = vmatpush1.bf16.msra.mxu0 %v1851
        %1887 = vmatprep.subr.bf16.mxu0 0
        %1888 = vmatpush1.bf16.msra.mxu0 %v1850
        %1889 = vmatprep.subr.bf16.mxu0 0
        %1890 = vmatpush1.bf16.msra.mxu0 %v1849
        %1891 = vmatprep.subr.bf16.mxu0 0
        %1892 = vmatpush1.bf16.msra.mxu0 %v1848
        %1893 = vmatprep.subr.bf16.mxu0 0
        %1894 = vmatpush1.bf16.msra.mxu0 %v1847
        %1895 = vmatprep.subr.bf16.mxu0 0
        %1896 = vmatpush2.bf16.msra.mxu0 %v1862
        %1897 = vmatprep.subr.bf16.mxu0 0
        %1898 = vmatpush2.bf16.msra.mxu0 %v1861
        %1899 = vmatprep.subr.bf16.mxu0 0
        %1900 = vmatpush2.bf16.msra.mxu0 %v1860
        %1901 = vmatprep.subr.bf16.mxu0 0
        %1902 = vmatpush2.bf16.msra.mxu0 %v1859
        %1903 = vmatprep.subr.bf16.mxu0 0
        %1904 = vmatpush2.bf16.msra.mxu0 %v1858
        %1905 = vmatprep.subr.bf16.mxu0 0
        %1906 = vmatpush2.bf16.msra.mxu0 %v1857
        %1907 = vmatprep.subr.bf16.mxu0 0
        %1908 = vmatpush2.bf16.msra.mxu0 %v1856
        %1909 = vmatprep.subr.bf16.mxu0 0
        %1910 = vmatpush2.bf16.msra.mxu0 %v1855
        %1911 = vmatprep.mubr.bf16.mxu0 %v1743
        %1912 = vmatmul.mubr.bf16.gmra.mxu0 %v1742
        %v1913 = vpop.f32.mrf.mxu0
        %v1914 = vadd.f32 %v1781, %v1913
        %v1915 = vpop.f32.mrf.mxu0
        %v1916 = vpop.f32.mrf.mxu0
        %v1917 = vadd.f32 %v1781, %v1916
        %v1918 = vpop.f32.mrf.mxu0
        %1919 = vdwg.mxu0
        %v1920 = vadd.f32 %v1914, %v1629
        %v1921 = vadd.f32 %v1917, %v1630
        %v1922 = vsel %vm506, %v1920, 0.0
        %1923 = vadd.xlane.f32.xlu0 %v1922
        %v1924 = vpop.xlane.xlu0 %1923
        %v1925 = vsel %vm506, %v1921, 0.0
        %1926 = vadd.xlane.f32.xlu0 %v1925
        %v1927 = vpop.xlane.xlu0 %1926
        %v1928 = vmul.f32 %v1924, %v1592
        %v1929 = vmul.f32 %v1927, %v1592
        %v1930 = vsub.f32 %v1920, %v1928
        %v1931 = vsub.f32 %v1921, %v1929
        %v1932 = vmul.f32 %v1930, %v1930
        %v1933 = vmul.f32 %v1931, %v1931
        %v1934 = vsel %vm506, %v1932, 0.0
        %1935 = vadd.xlane.f32.xlu0 %v1934
        %v1936 = vpop.xlane.xlu0 %1935
        %v1937 = vsel %vm506, %v1933, 0.0
        %1938 = vadd.xlane.f32.xlu0 %v1937
        %v1939 = vpop.xlane.xlu0 %1938
        %v1940 = vmul.f32 %v1936, %v1592
        %v1941 = vmul.f32 %v1939, %v1592
        %v1942 = vadd.f32 %v1940, 1e-05
        %v1943 = vadd.f32 %v1941, 1e-05
        %v1944 = vrsqrt.pop %v1942
        %v1945 = vrsqrt.pop %v1943
        %v1946 = vmul.f32 %v1930, %v1944
        %v1947 = vmul.f32 %v1931, %v1945
        %v1948 = vld [vmem:[%s11] sm:$0x1]
        %v1950 = vlaneseq
        %v1951 = vshrl.u32 %v1950, 7
        %v1952 = vsub.s32 0, %v1951
        %v1953 = vrot.slane %v1948, %v1952
        %v1955 = vmul.f32 %v1946, %v1953
        %v1956 = vmul.f32 %v1947, %v1953
        %v1957 = vld [vmem:[%s12] sm:$0x1]
        %v1959 = vlaneseq
        %v1960 = vshrl.u32 %v1959, 7
        %v1961 = vsub.s32 0, %v1960
        %v1962 = vrot.slane %v1957, %v1961
        %v1964 = vadd.f32 %v1955, %v1962
        %v1965 = vadd.f32 %v1956, %v1962
        %1966 = vst.msk [vmem:[%s434] sm:$0xff] %vm506, %v1964
        %1967 = vst.msk [vmem:[%s434 + $0x8] sm:$0xff] %vm506, %v1965
        %s1968 = sand.u32 %s313, 1
        %s1969 = scalar_lea.sflag [#allocation3], %s1968
        %s1970 = sand.u32 %s313, 1
        %s1971 = smul.addr %s1970, 16
        %s1972 = scalar_lea.vmem [#allocation2], %s1971
        // Predicated region
        $region73: #{tpu_custom_call.1} parent=71 // pred_check
          %p1973 = pneg %p323
        $region74: #{tpu_custom_call.1} parent=71 // pred_check_branch
          %1975 = sbr.rel (%p1973) target = $region76
        $region75: #{tpu_custom_call.1} parent=71 // pred_region
          %s1976 = smul.u32 2, %s27
          %s1978 = ssub.s32 256, 256
          %1979 = vsyncadd %s1969, %s1978
          %s1980 = smul.addr %s1976, 128
          %s1981 = scalar_lea.hbm %s13, %s1980
          %s1982 = sshll.u32 %s1972, 4
          %s1983 = int_to_ptr.vmem [resolvable:$true] %s1982
          %1988 = dma.vmem_to_hbm [thread:$0]  %s1983, 256, %s1981, %s1969, 128, 128, 8
        $region76: #{tpu_custom_call.1} parent=71 // pred_fallthru
          _
      $region72: #{tpu_custom_call.1} parent=5 // pred_fallthru
        _
      %p1989 = scmp.le.s32.totalorder 2, %s22
      // Predicated region
      $region77: #{tpu_custom_call.1} parent=5 // pred_check
        %p1990 = pneg %p1989
      $region78: #{tpu_custom_call.1} parent=5 // pred_check_branch
        %1992 = sbr.rel (%p1990) target = $region80
      $region79: #{tpu_custom_call.1} parent=5 // pred_region
        %s1993 = ssub.s32 %s22, 2
        // Predicated region
        $region81: #{tpu_custom_call.1} parent=79 // pred_check
          %p1994 = pneg %p329
        $region82: #{tpu_custom_call.1} parent=79 // pred_check_branch
          %1996 = sbr.rel (%p1994) target = $region84
        $region83: #{tpu_custom_call.1} parent=79 // pred_region
          %s1997 = sand.u32 %s314, 1
          %s1998 = scalar_lea.sflag [#allocation3], %s1997
          %s1999 = sand.u32 %s314, 1
          %s2000 = smul.addr %s1999, 16
          %s2001 = scalar_lea.vmem [#allocation2], %s2000
          %2002 = dma.done %s1998, 256
        $region84: #{tpu_custom_call.1} parent=79 // pred_fallthru
          _
      $region80: #{tpu_custom_call.1} parent=5 // pred_fallthru
        _
    $region6: #{tpu_custom_call.1} parent=1 // loop_footer
      %s26 = sadd.s32 1, %s22
    $region7: #{tpu_custom_call.1} parent=1 // loop_footer_branch
      %21 = sbr.rel target = $region3
    $region8: #{tpu_custom_call.1} parent=1 // loop_exit
      _
    %2003 = vsyncpa [#allocation3], 1
    %s2004 = scalar_lea.sflag [#allocation3], 1
    %2005 = vsyncpa %s2004, 1

// kernel: tpu_custom_call.1
$region0: #{tpu_custom_call.1}
  #allocation0 [shape = 'u32[]', space=smem, size = 0x4, offset = 0x4, fixed_abs, tag = 'smem constant byte address 0x4 - core index']
  #allocation1 [shape = 'u32[144,128]{1,0:T(1,128)}', space=vmem, size = 0x12000, scoped, tag = 'internal scratch']
  %s0 = inlined_call_operand.vmem [shape: f32[4,8,64], index: 0, kind: input, shape index: {}]
  %s1 = inlined_call_operand.vmem [shape: bf16[64,192], index: 1, kind: input, shape index: {}]
  %s2 = inlined_call_operand.vmem [shape: f32[1,192], index: 2, kind: input, shape index: {}]
  %s3 = inlined_call_operand.vmem [shape: bf16[64,64], index: 3, kind: input, shape index: {}]
  %s4 = inlined_call_operand.vmem [shape: f32[1,64], index: 4, kind: input, shape index: {}]
  %s5 = inlined_call_operand.vmem [shape: f32[1,64], index: 5, kind: input, shape index: {}]
  %s6 = inlined_call_operand.vmem [shape: f32[1,64], index: 6, kind: input, shape index: {}]
  %s7 = inlined_call_operand.vmem [shape: bf16[64,256], index: 7, kind: input, shape index: {}]
  %s8 = inlined_call_operand.vmem [shape: f32[1,256], index: 8, kind: input, shape index: {}]
  %s9 = inlined_call_operand.vmem [shape: bf16[256,64], index: 9, kind: input, shape index: {}]
  %s10 = inlined_call_operand.vmem [shape: f32[1,64], index: 10, kind: input, shape index: {}]
  %s11 = inlined_call_operand.vmem [shape: f32[1,64], index: 11, kind: input, shape index: {}]
  %s12 = inlined_call_operand.vmem [shape: f32[1,64], index: 12, kind: input, shape index: {}]
  %s13 = inlined_call_operand.hbm [shape: f32[4,8,64], index: 13, kind: output, shape index: {}]
  %s14 = sld [smem:[#allocation0]]
  $region85: #{tpu_custom_call.1} parent=0
    _
  %s16 = ssub.s32 1, %s14
  %s17 = scalar_select 0, %s16, %s14
  $region1: #{tpu_custom_call.1} parent=0
    #allocation2 [shape = 'u8[16384]{0}', space=vmem, size = 0x4000, scoped, tag = 'output window, operand 0']
    #allocation3 [shape = 's32[2]{0}', space=sflag, size = 0x8, scoped, tag = 'scoped memory for tpu_custom_call.1']
    %18 = vsyncpa [#allocation3], 0
    %s19 = scalar_lea.sflag [#allocation3], 1
    %20 = vsyncpa %s19, 0
    loop: start=0, step=1, limit=4
    $region2: #{tpu_custom_call.1} parent=1 // loop_pre_header
      _
    $region3: #{tpu_custom_call.1} parent=1 // loop_header
      %s22 = sphi 0, %s26
      %p23 = scmp.ge.s32.totalorder %s22, 4
      %s32 = sphi 0, %s34
      %s35 = sphi 0, %s32
      %s36 = sphi 0, %s35
      %s52 = sphi 0, %s36
      %s56 = sphi 0, %s56
      %s58 = sphi 0, %s56
      %s59 = sphi 0, %s58
      %s73 = sphi 0, %s59
      %s77 = sphi 0, %s77
      %s79 = sphi 0, %s77
      %s80 = sphi 0, %s79
      %s94 = sphi 0, %s80
      %s98 = sphi 0, %s98
      %s100 = sphi 0, %s98
      %s101 = sphi 0, %s100
      %s115 = sphi 0, %s101
      %s119 = sphi 0, %s119
      %s121 = sphi 0, %s119
      %s122 = sphi 0, %s121
      %s136 = sphi 0, %s122
      %s140 = sphi 0, %s140
      %s142 = sphi 0, %s140
      %s143 = sphi 0, %s142
      %s157 = sphi 0, %s143
      %s161 = sphi 0, %s161
      %s163 = sphi 0, %s161
      %s164 = sphi 0, %s163
      %s178 = sphi 0, %s164
      %s182 = sphi 0, %s182
      %s184 = sphi 0, %s182
      %s185 = sphi 0, %s184
      %s199 = sphi 0, %s185
      %s203 = sphi 0, %s203
      %s205 = sphi 0, %s203
      %s206 = sphi 0, %s205
      %s220 = sphi 0, %s206
      %s224 = sphi 0, %s224
      %s226 = sphi 0, %s224
      %s227 = sphi 0, %s226
      %s241 = sphi 0, %s227
      %s245 = sphi 0, %s245
      %s247 = sphi 0, %s245
      %s248 = sphi 0, %s247
      %s262 = sphi 0, %s248
      %s266 = sphi 0, %s266
      %s268 = sphi 0, %s266
      %s269 = sphi 0, %s268
      %s283 = sphi 0, %s269
      %s287 = sphi 0, %s287
      %s289 = sphi 0, %s287
      %s290 = sphi 0, %s289
      %s304 = sphi 0, %s290
      %s310 = sphi 0, %s312
      %s313 = sphi 0, %s310
      %s314 = sphi 0, %s313
      %s330 = sphi 0, %s314
    $region4: #{tpu_custom_call.1} parent=1 // loop_header_branch
      %25 = sbr.rel (%p23) target = $region8
    $region5: #{tpu_custom_call.1} parent=1 // loop_body
      %s27 = ssub.s32 %s22, 1
      %s28 = ssub.s32 %s22, 2
      %s29 = sadd.s32 %s22, 1
      %s30 = ssub.s32 %s22, %s29
      %p31 = scmp.eq.s32.totalorder %s30, 0
      %s33 = sadd.s32 %s32, 1
      %s34 = scalar_select %p31, %s32, %s33
      %p37 = pneg %p31
      %p38 = scmp.eq.s32.totalorder %s22, 1
      %p39 = por %p37, %p38
      %p40 = scmp.ne.s32.totalorder %s32, %s35
      %p41 = scmp.eq.s32.totalorder %s22, 0
      %p42 = por %p40, %p41
      %p43 = scmp.ne.s32.totalorder %s32, %s35
      %p44 = scmp.eq.s32.totalorder %s27, 1
      %p45 = por %p43, %p44
      %p46 = scmp.ne.s32.totalorder %s35, %s36
      %p47 = scmp.eq.s32.totalorder %s27, 0
      %p48 = por %p46, %p47
      %p49 = scmp.ne.s32.totalorder %s35, %s36
      %p50 = scmp.eq.s32.totalorder %s28, 1
      %p51 = por %p49, %p50
      %p53 = scmp.ne.s32.totalorder %s36, %s52
      %p54 = scmp.eq.s32.totalorder %s28, 0
      %p55 = por %p53, %p54
      %s57 = sadd.s32 %s56, 1
      %p60 = scmp.eq.s32.totalorder %s22, 1
      %p61 = scmp.ne.s32.totalorder %s56, %s58
      %p62 = scmp.eq.s32.totalorder %s22, 0
      %p63 = por %p61, %p62
      %p64 = scmp.ne.s32.totalorder %s56, %s58
      %p65 = scmp.eq.s32.totalorder %s27, 1
      %p66 = por %p64, %p65
      %p67 = scmp.ne.s32.totalorder %s58, %s59
      %p68 = scmp.eq.s32.totalorder %s27, 0
      %p69 = por %p67, %p68
      %p70 = scmp.ne.s32.totalorder %s58, %s59
      %p71 = scmp.eq.s32.totalorder %s28, 1
      %p72 = por %p70, %p71
      %p74 = scmp.ne.s32.totalorder %s59, %s73
      %p75 = scmp.eq.s32.totalorder %s28, 0
      %p76 = por %p74, %p75
      %s78 = sadd.s32 %s77, 1
      %p81 = scmp.eq.s32.totalorder %s22, 1
      %p82 = scmp.ne.s32.totalorder %s77, %s79
      %p83 = scmp.eq.s32.totalorder %s22, 0
      %p84 = por %p82, %p83
      %p85 = scmp.ne.s32.totalorder %s77, %s79
      %p86 = scmp.eq.s32.totalorder %s27, 1
      %p87 = por %p85, %p86
      %p88 = scmp.ne.s32.totalorder %s79, %s80
      %p89 = scmp.eq.s32.totalorder %s27, 0
      %p90 = por %p88, %p89
      %p91 = scmp.ne.s32.totalorder %s79, %s80
      %p92 = scmp.eq.s32.totalorder %s28, 1
      %p93 = por %p91, %p92
      %p95 = scmp.ne.s32.totalorder %s80, %s94
      %p96 = scmp.eq.s32.totalorder %s28, 0
      %p97 = por %p95, %p96
      %s99 = sadd.s32 %s98, 1
      %p102 = scmp.eq.s32.totalorder %s22, 1
      %p103 = scmp.ne.s32.totalorder %s98, %s100
      %p104 = scmp.eq.s32.totalorder %s22, 0
      %p105 = por %p103, %p104
      %p106 = scmp.ne.s32.totalorder %s98, %s100
      %p107 = scmp.eq.s32.totalorder %s27, 1
      %p108 = por %p106, %p107
      %p109 = scmp.ne.s32.totalorder %s100, %s101
      %p110 = scmp.eq.s32.totalorder %s27, 0
      %p111 = por %p109, %p110
      %p112 = scmp.ne.s32.totalorder %s100, %s101
      %p113 = scmp.eq.s32.totalorder %s28, 1
      %p114 = por %p112, %p113
      %p116 = scmp.ne.s32.totalorder %s101, %s115
      %p117 = scmp.eq.s32.totalorder %s28, 0
      %p118 = por %p116, %p117
      %s120 = sadd.s32 %s119, 1
      %p123 = scmp.eq.s32.totalorder %s22, 1
      %p124 = scmp.ne.s32.totalorder %s119, %s121
      %p125 = scmp.eq.s32.totalorder %s22, 0
      %p126 = por %p124, %p125
      %p127 = scmp.ne.s32.totalorder %s119, %s121
      %p128 = scmp.eq.s32.totalorder %s27, 1
      %p129 = por %p127, %p128
      %p130 = scmp.ne.s32.totalorder %s121, %s122
      %p131 = scmp.eq.s32.totalorder %s27, 0
      %p132 = por %p130, %p131
      %p133 = scmp.ne.s32.totalorder %s121, %s122
      %p134 = scmp.eq.s32.totalorder %s28, 1
      %p135 = por %p133, %p134
      %p137 = scmp.ne.s32.totalorder %s122, %s136
      %p138 = scmp.eq.s32.totalorder %s28, 0
      %p139 = por %p137, %p138
      %s141 = sadd.s32 %s140, 1
      %p144 = scmp.eq.s32.totalorder %s22, 1
      %p145 = scmp.ne.s32.totalorder %s140, %s142
      %p146 = scmp.eq.s32.totalorder %s22, 0
      %p147 = por %p145, %p146
      %p148 = scmp.ne.s32.totalorder %s140, %s142
      %p149 = scmp.eq.s32.totalorder %s27, 1
      %p150 = por %p148, %p149
      %p151 = scmp.ne.s32.totalorder %s142, %s143
      %p152 = scmp.eq.s32.totalorder %s27, 0
      %p153 = por %p151, %p152
      %p154 = scmp.ne.s32.totalorder %s142, %s143
      %p155 = scmp.eq.s32.totalorder %s28, 1
      %p156 = por %p154, %p155
      %p158 = scmp.ne.s32.totalorder %s143, %s157
      %p159 = scmp.eq.s32.totalorder %s28, 0
      %p160 = por %p158, %p159
      %s162 = sadd.s32 %s161, 1
      %p165 = scmp.eq.s32.totalorder %s22, 1
      %p166 = scmp.ne.s32.totalorder %s161, %s163
      %p167 = scmp.eq.s32.totalorder %s22, 0
      %p168 = por %p166, %p167
      %p169 = scmp.ne.s32.totalorder %s161, %s163
      %p170 = scmp.eq.s32.totalorder %s27, 1
      %p171 = por %p169, %p170
      %p172 = scmp.ne.s32.totalorder %s163, %s164
      %p173 = scmp.eq.s32.totalorder %s27, 0
      %p174 = por %p172, %p173
      %p175 = scmp.ne.s32.totalorder %s163, %s164
      %p176 = scmp.eq.s32.totalorder %s28, 1
      %p177 = por %p175, %p176
      %p179 = scmp.ne.s32.totalorder %s164, %s178
      %p180 = scmp.eq.s32.totalorder %s28, 0
      %p181 = por %p179, %p180
      %s183 = sadd.s32 %s182, 1
      %p186 = scmp.eq.s32.totalorder %s22, 1
      %p187 = scmp.ne.s32.totalorder %s182, %s184
      %p188 = scmp.eq.s32.totalorder %s22, 0
      %p189 = por %p187, %p188
      %p190 = scmp.ne.s32.totalorder %s182, %s184
      %p191 = scmp.eq.s32.totalorder %s27, 1
      %p192 = por %p190, %p191
      %p193 = scmp.ne.s32.totalorder %s184, %s185
      %p194 = scmp.eq.s32.totalorder %s27, 0
      %p195 = por %p193, %p194
      %p196 = scmp.ne.s32.totalorder %s184, %s185
      %p197 = scmp.eq.s32.totalorder %s28, 1
      %p198 = por %p196, %p197
      %p200 = scmp.ne.s32.totalorder %s185, %s199
      %p201 = scmp.eq.s32.totalorder %s28, 0
      %p202 = por %p200, %p201
      %s204 = sadd.s32 %s203, 1
      %p207 = scmp.eq.s32.totalorder %s22, 1
      %p208 = scmp.ne.s32.totalorder %s203, %s205
      %p209 = scmp.eq.s32.totalorder %s22, 0
      %p210 = por %p208, %p209
      %p211 = scmp.ne.s32.totalorder %s203, %s205
      %p212 = scmp.eq.s32.totalorder %s27, 1
      %p213 = por %p211, %p212
      %p214 = scmp.ne.s32.totalorder %s205, %s206
      %p215 = scmp.eq.s32.totalorder %s27, 0
      %p216 = por %p214, %p215
      %p217 = scmp.ne.s32.totalorder %s205, %s206
      %p218 = scmp.eq.s32.totalorder %s28, 1
      %p219 = por %p217, %p218
      %p221 = scmp.ne.s32.totalorder %s206, %s220
      %p222 = scmp.eq.s32.totalorder %s28, 0
      %p223 = por %p221, %p222
      %s225 = sadd.s32 %s224, 1
      %p228 = scmp.eq.s32.totalorder %s22, 1
      %p229 = scmp.ne.s32.totalorder %s224, %s226
      %p230 = scmp.eq.s32.totalorder %s22, 0
      %p231 = por %p229, %p230
      %p232 = scmp.ne.s32.totalorder %s224, %s226
      %p233 = scmp.eq.s32.totalorder %s27, 1
      %p234 = por %p232, %p233
      %p235 = scmp.ne.s32.totalorder %s226, %s227
      %p236 = scmp.eq.s32.totalorder %s27, 0
      %p237 = por %p235, %p236
      %p238 = scmp.ne.s32.totalorder %s226, %s227
      %p239 = scmp.eq.s32.totalorder %s28, 1
      %p240 = por %p238, %p239
      %p242 = scmp.ne.s32.totalorder %s227, %s241
      %p243 = scmp.eq.s32.totalorder %s28, 0
      %p244 = por %p242, %p243
      %s246 = sadd.s32 %s245, 1
      %p249 = scmp.eq.s32.totalorder %s22, 1
      %p250 = scmp.ne.s32.totalorder %s245, %s247
      %p251 = scmp.eq.s32.totalorder %s22, 0
      %p252 = por %p250, %p251
      %p253 = scmp.ne.s32.totalorder %s245, %s247
      %p254 = scmp.eq.s32.totalorder %s27, 1
      %p255 = por %p253, %p254
      %p256 = scmp.ne.s32.totalorder %s247, %s248
      %p257 = scmp.eq.s32.totalorder %s27, 0
      %p258 = por %p256, %p257
      %p259 = scmp.ne.s32.totalorder %s247, %s248
      %p260 = scmp.eq.s32.totalorder %s28, 1
      %p261 = por %p259, %p260
      %p263 = scmp.ne.s32.totalorder %s248, %s262
      %p264 = scmp.eq.s32.totalorder %s28, 0
      %p265 = por %p263, %p264
      %s267 = sadd.s32 %s266, 1
      %p270 = scmp.eq.s32.totalorder %s22, 1
      %p271 = scmp.ne.s32.totalorder %s266, %s268
      %p272 = scmp.eq.s32.totalorder %s22, 0
      %p273 = por %p271, %p272
      %p274 = scmp.ne.s32.totalorder %s266, %s268
      %p275 = scmp.eq.s32.totalorder %s27, 1
      %p276 = por %p274, %p275
      %p277 = scmp.ne.s32.totalorder %s268, %s269
      %p278 = scmp.eq.s32.totalorder %s27, 0
      %p279 = por %p277, %p278
      %p280 = scmp.ne.s32.totalorder %s268, %s269
      %p281 = scmp.eq.s32.totalorder %s28, 1
      %p282 = por %p280, %p281
      %p284 = scmp.ne.s32.totalorder %s269, %s283
      %p285 = scmp.eq.s32.totalorder %s28, 0
      %p286 = por %p284, %p285
      %s288 = sadd.s32 %s287, 1
      %p291 = scmp.eq.s32.totalorder %s22, 1
      %p292 = scmp.ne.s32.totalorder %s287, %s289
      %p293 = scmp.eq.s32.totalorder %s22, 0
      %p294 = por %p292, %p293
      %p295 = scmp.ne.s32.totalorder %s287, %s289
      %p296 = scmp.eq.s32.totalorder %s27, 1
      %p297 = por %p295, %p296
      %p298 = scmp.ne.s32.totalorder %s289, %s290
      %p299 = scmp.eq.s32.totalorder %s27, 0
      %p300 = por %p298, %p299
      %p301 = scmp.ne.s32.totalorder %s289, %s290
      %p302 = scmp.eq.s32.totalorder %s28, 1
      %p303 = por %p301, %p302
      %p305 = scmp.ne.s32.totalorder %s290, %s304
      %p306 = scmp.eq.s32.totalorder %s28, 0
      %p307 = por %p305, %p306
      %s308 = ssub.s32 %s22, %s29
      %p309 = scmp.eq.s32.totalorder %s308, 0
      %s311 = sadd.s32 %s310, 1
      %s312 = scalar_select %p309, %s310, %s311
      %p315 = pneg %p309
      %p316 = scmp.eq.s32.totalorder %s22, 1
      %p317 = por %p315, %p316
      %p318 = scmp.ne.s32.totalorder %s310, %s313
      %p319 = scmp.eq.s32.totalorder %s22, 0
      %p320 = por %p318, %p319
      %p321 = scmp.ne.s32.totalorder %s310, %s313
      %p322 = scmp.eq.s32.totalorder %s27, 1
      %p323 = por %p321, %p322
      %p324 = scmp.ne.s32.totalorder %s313, %s314
      %p325 = scmp.eq.s32.totalorder %s27, 0
      %p326 = por %p324, %p325
      %p327 = scmp.ne.s32.totalorder %s313, %s314
      %p328 = scmp.eq.s32.totalorder %s28, 1
      %p329 = por %p327, %p328
      %p331 = scmp.ne.s32.totalorder %s314, %s330
      %p332 = scmp.eq.s32.totalorder %s28, 0
      %p333 = por %p331, %p332
      %p334 = scmp.le.s32.totalorder 1, %s22
      %p335 = scmp.lt.s32.totalorder %s22, 3
      %p336 = pnand %p334, %p335
      %p337 = pneg %p336
      // Predicated region
      $region9: #{tpu_custom_call.1} parent=5 // pred_check
        _
      $region10: #{tpu_custom_call.1} parent=5 // pred_check_branch
        %339 = sbr.rel (%p336) target = $region12
      $region11: #{tpu_custom_call.1} parent=5 // pred_region
        %s340 = ssub.s32 %s22, 1
        // Predicated region
        $region13: #{tpu_custom_call.1} parent=11 // pred_check
          %p341 = pneg %p69
        $region14: #{tpu_custom_call.1} parent=11 // pred_check_branch
          %343 = sbr.rel (%p341) target = $region16
        $region15: #{tpu_custom_call.1} parent=11 // pred_region
          _
        $region16: #{tpu_custom_call.1} parent=11 // pred_fallthru
          _
        // Predicated region
        $region17: #{tpu_custom_call.1} parent=11 // pred_check
          %p344 = pneg %p90
        $region18: #{tpu_custom_call.1} parent=11 // pred_check_branch
          %346 = sbr.rel (%p344) target = $region20
        $region19: #{tpu_custom_call.1} parent=11 // pred_region
          _
        $region20: #{tpu_custom_call.1} parent=11 // pred_fallthru
          _
        // Predicated region
        $region21: #{tpu_custom_call.1} parent=11 // pred_check
          %p347 = pneg %p111
        $region22: #{tpu_custom_call.1} parent=11 // pred_check_branch
          %349 = sbr.rel (%p347) target = $region24
        $region23: #{tpu_custom_call.1} parent=11 // pred_region
          _
        $region24: #{tpu_custom_call.1} parent=11 // pred_fallthru
          _
        // Predicated region
        $region25: #{tpu_custom_call.1} parent=11 // pred_check
          %p350 = pneg %p132
        $region26: #{tpu_custom_call.1} parent=11 // pred_check_branch
          %352 = sbr.rel (%p350) target = $region28
        $region27: #{tpu_custom_call.1} parent=11 // pred_region
          _
        $region28: #{tpu_custom_call.1} parent=11 // pred_fallthru
          _
        // Predicated region
        $region29: #{tpu_custom_call.1} parent=11 // pred_check
          %p353 = pneg %p153
        $region30: #{tpu_custom_call.1} parent=11 // pred_check_branch
          %355 = sbr.rel (%p353) target = $region32
        $region31: #{tpu_custom_call.1} parent=11 // pred_region
          _
        $region32: #{tpu_custom_call.1} parent=11 // pred_fallthru
          _
        // Predicated region
        $region33: #{tpu_custom_call.1} parent=11 // pred_check
          %p356 = pneg %p174
        $region34: #{tpu_custom_call.1} parent=11 // pred_check_branch
          %358 = sbr.rel (%p356) target = $region36
        $region35: #{tpu_custom_call.1} parent=11 // pred_region
          _
        $region36: #{tpu_custom_call.1} parent=11 // pred_fallthru
          _
        // Predicated region
        $region37: #{tpu_custom_call.1} parent=11 // pred_check
          %p359 = pneg %p195
        $region38: #{tpu_custom_call.1} parent=11 // pred_check_branch
          %361 = sbr.rel (%p359) target = $region40
        $region39: #{tpu_custom_call.1} parent=11 // pred_region
          _
        $region40: #{tpu_custom_call.1} parent=11 // pred_fallthru
          _
        // Predicated region
        $region41: #{tpu_custom_call.1} parent=11 // pred_check
          %p362 = pneg %p216
        $region42: #{tpu_custom_call.1} parent=11 // pred_check_branch
          %364 = sbr.rel (%p362) target = $region44
        $region43: #{tpu_custom_call.1} parent=11 // pred_region
          _
        $region44: #{tpu_custom_call.1} parent=11 // pred_fallthru
          _
        // Predicated region
        $region45: #{tpu_custom_call.1} parent=11 // pred_check
          %p365 = pneg %p237
        $region46: #{tpu_custom_call.1} parent=11 // pred_check_branch
          %367 = sbr.rel (%p365) target = $region48
        $region47: #{tpu_custom_call.1} parent=11 // pred_region
          _
        $region48: #{tpu_custom_call.1} parent=11 // pred_fallthru
          _
        // Predicated region
        $region49: #{tpu_custom_call.1} parent=11 // pred_check
          %p368 = pneg %p258
        $region50: #{tpu_custom_call.1} parent=11 // pred_check_branch
          %370 = sbr.rel (%p368) target = $region52
        $region51: #{tpu_custom_call.1} parent=11 // pred_region
          _
        $region52: #{tpu_custom_call.1} parent=11 // pred_fallthru
          _
        // Predicated region
        $region53: #{tpu_custom_call.1} parent=11 // pred_check
          %p371 = pneg %p279
        $region54: #{tpu_custom_call.1} parent=11 // pred_check_branch
          %373 = sbr.rel (%p371) target = $region56
        $region55: #{tpu_custom_call.1} parent=11 // pred_region
          _
        $region56: #{tpu_custom_call.1} parent=11 // pred_fallthru
          _
        // Predicated region
        $region57: #{tpu_custom_call.1} parent=11 // pred_check
          %p374 = pneg %p300
        $region58: #{tpu_custom_call.1} parent=11 // pred_check_branch
          %376 = sbr.rel (%p374) target = $region60
        $region59: #{tpu_custom_call.1} parent=11 // pred_region
          _
        $region60: #{tpu_custom_call.1} parent=11 // pred_fallthru
          _
      $region12: #{tpu_custom_call.1} parent=5 // pred_fallthru
        _
      %p377 = scmp.lt.s32.totalorder %s22, 2
      // Predicated region
      $region61: #{tpu_custom_call.1} parent=5 // pred_check
        %p378 = pneg %p377
      $region62: #{tpu_custom_call.1} parent=5 // pred_check_branch
        %380 = sbr.rel (%p378) target = $region64
      $region63: #{tpu_custom_call.1} parent=5 // pred_region
        // Predicated region
        $region65: #{tpu_custom_call.1} parent=63 // pred_check
          %p381 = pneg %p42
        $region66: #{tpu_custom_call.1} parent=63 // pred_check_branch
          %383 = sbr.rel (%p381) target = $region68
        $region67: #{tpu_custom_call.1} parent=63 // pred_region
          %s384 = smul.u32 2, %s22
          %p385 = scmp.lt.s32.totalorder %s384, 3
          %s386 = scalar_select %p385, %s384, 3
          %s387 = smul.addr %s386, 8
          %s388 = scalar_lea.vmem %s0, %s387
          %s389 = smul.u32 2, %s22
        $region68: #{tpu_custom_call.1} parent=63 // pred_fallthru
          _
      $region64: #{tpu_custom_call.1} parent=5 // pred_fallthru
        _
      %p390 = scmp.le.s32.totalorder 1, %s22
      %p391 = scmp.lt.s32.totalorder %s22, 3
      %p392 = pnand %p390, %p391
      %p393 = pneg %p392
      // Predicated region
      $region69: #{tpu_custom_call.1} parent=5 // pred_check
        _
      $region70: #{tpu_custom_call.1} parent=5 // pred_check_branch
        %395 = sbr.rel (%p392) target = $region72
      $region71: #{tpu_custom_call.1} parent=5 // pred_region
        %s396 = ssub.s32 %s22, 1
        %s397 = smul.u32 2, %s27
        %p398 = scmp.lt.s32.totalorder %s397, 3
        %s399 = scalar_select %p398, %s397, 3
        %s400 = smul.addr %s399, 8
        %s401 = scalar_lea.vmem %s0, %s400
        %p402 = pneg %p48
        %p403 = pneg %p45
        %p404 = pneg %p69
        %p405 = pneg %p66
        %p406 = pneg %p90
        %p407 = pneg %p87
        %p408 = pneg %p111
        %p409 = pneg %p108
        %p410 = pneg %p132
        %p411 = pneg %p129
        %p412 = pneg %p153
        %p413 = pneg %p150
        %p414 = pneg %p174
        %p415 = pneg %p171
        %p416 = pneg %p195
        %p417 = pneg %p192
        %p418 = pneg %p216
        %p419 = pneg %p213
        %p420 = pneg %p237
        %p421 = pneg %p234
        %p422 = pneg %p258
        %p423 = pneg %p255
        %p424 = pneg %p279
        %p425 = pneg %p276
        %p426 = pneg %p300
        %p427 = pneg %p297
        %p428 = pneg %p326
        %p429 = pneg %p323
        %s430 = sand.u32 %s313, 1
        %s431 = scalar_lea.sflag [#allocation3], %s430
        %s432 = sand.u32 %s313, 1
        %s433 = smul.addr %s432, 16
        %s434 = scalar_lea.vmem [#allocation2], %s433
        %s435 = smul.u32 2, %s27
        %p436 = scmp.lt.s32.totalorder %s435, 3
        %s437 = scalar_select %p436, %s435, 3
        %s438 = smul.addr %s437, 8
        %s439 = scalar_lea.vmem %s0, %s438
        %s440 = smul.u32 2, %s27
        %s441 = smul.u32 2, %s27
        %v443 = vld [vmem:[%s439] sm:$0xff]
        %v444 = vld [vmem:[%s439 + $0x8] sm:$0xff]
        %v445 = vpack.c.bf16 %v444, %v443
        %v446 = vld [vmem:[%s1] sm:$0xff]
        %v447 = vld [vmem:[%s1 + $0x8] sm:$0xff]
        %v448 = vld [vmem:[%s1 + $0x10] sm:$0xff]
        %v449 = vld [vmem:[%s1 + $0x18] sm:$0xff]
        %v450 = vld [vmem:[%s1 + $0x20] sm:$0xff]
        %v451 = vld [vmem:[%s1 + $0x28] sm:$0xff]
        %v452 = vld [vmem:[%s1 + $0x30] sm:$0xff]
        %v453 = vld [vmem:[%s1 + $0x38] sm:$0xff]
        %v454 = vld [vmem:[%s2] sm:$0x3]
        %v456 = vlaneseq
        %v457 = vshrl.u32 %v456, 7
        %v458 = vsub.s32 0, %v457
        %v459 = vrot.slane %v454, %v458
        %v460 = vlaneseq
        %v461 = vshrl.u32 %v460, 7
        %v462 = vsub.s32 1, %v461
        %v463 = vrot.slane %v454, %v462
        %v474 = vunpack.c.l.b16 %v446
        %v475 = vunpack.c.h.b16 %v446
        %v476 = vunpack.c.l.b16 %v447
        %v477 = vunpack.c.h.b16 %v447
        %v478 = vunpack.c.l.b16 %v448
        %v479 = vunpack.c.h.b16 %v448
        %v480 = vunpack.c.l.b16 %v449
        %v481 = vunpack.c.h.b16 %v449
        %v482 = vunpack.c.l.b16 %v450
        %v483 = vunpack.c.h.b16 %v450
        %v484 = vunpack.c.l.b16 %v451
        %v485 = vunpack.c.h.b16 %v451
        %v486 = vunpack.c.l.b16 %v452
        %v487 = vunpack.c.h.b16 %v452
        %v488 = vunpack.c.l.b16 %v453
        %v489 = vunpack.c.h.b16 %v453
        %v490 = vpack.c.b16 %v476, %v474
        %v491 = vpack.c.b16 %v477, %v475
        %v492 = vpack.c.b16 %v480, %v478
        %v493 = vpack.c.b16 %v481, %v479
        %v494 = vpack.c.b16 %v484, %v482
        %v495 = vpack.c.b16 %v485, %v483
        %v496 = vpack.c.b16 %v488, %v486
        %v497 = vpack.c.b16 %v489, %v487
        %vm506 = vcmask 523264
        %v508 = vsel %vm506, %v445, 0
        %510 = vmatprep.subr.bf16.mxu0 0
        %511 = vmatpush1.bf16.msra.mxu0 0
        %512 = vmatprep.subr.bf16.mxu0 0
        %513 = vmatpush1.bf16.msra.mxu0 0
        %514 = vmatprep.subr.bf16.mxu0 0
        %515 = vmatpush1.bf16.msra.mxu0 0
        %516 = vmatprep.subr.bf16.mxu0 0
        %517 = vmatpush1.bf16.msra.mxu0 0
        %518 = vmatprep.subr.bf16.mxu0 %v497
        %519 = vmatpush1.bf16.msra.mxu0 %v496
        %520 = vmatprep.subr.bf16.mxu0 %v495
        %521 = vmatpush1.bf16.msra.mxu0 %v494
        %522 = vmatprep.subr.bf16.mxu0 %v493
        %523 = vmatpush1.bf16.msra.mxu0 %v492
        %524 = vmatprep.subr.bf16.mxu0 %v491
        %525 = vmatpush1.bf16.msra.mxu0 %v490
        %526 = vmatprep.subr.bf16.mxu0 0
        %527 = vmatpush2.bf16.msra.mxu0 0
        %528 = vmatprep.subr.bf16.mxu0 0
        %529 = vmatpush2.bf16.msra.mxu0 0
        %530 = vmatprep.subr.bf16.mxu0 0
        %531 = vmatpush2.bf16.msra.mxu0 0
        %532 = vmatprep.subr.bf16.mxu0 0
        %533 = vmatpush2.bf16.msra.mxu0 0
        %534 = vmatprep.subr.bf16.mxu0 0
        %535 = vmatpush2.bf16.msra.mxu0 0
        %536 = vmatprep.subr.bf16.mxu0 0
        %537 = vmatpush2.bf16.msra.mxu0 0
        %538 = vmatprep.subr.bf16.mxu0 0
        %539 = vmatpush2.bf16.msra.mxu0 0
        %540 = vmatprep.subr.bf16.mxu0 0
        %541 = vmatpush2.bf16.msra.mxu0 0
        %542 = vmatprep.mubr.bf16.mxu0 0
        %543 = vmatmul.mubr.bf16.gmra.mxu0 %v508
        %v544 = vpop.f32.mrf.mxu0
        %v545 = vadd.f32 %v459, %v544
        %v546 = vpop.f32.mrf.mxu0
        %v547 = vadd.f32 %v463, %v546
        %v548 = vpop.f32.mrf.mxu0
        %v549 = vadd.f32 %v459, %v548
        %v550 = vpop.f32.mrf.mxu0
        %v551 = vadd.f32 %v463, %v550
        %552 = vdwg.mxu0
        %555 = vrot.lane.b32.xlu0 %v545, 112
        %v556 = vpop.permute.xlu0 %555
        %557 = vrot.lane.b32.xlu0 %v549, 112
        %v558 = vpop.permute.xlu0 %557
        %561 = vrot.lane.b32.xlu0 %v545, 96
        %v562 = vpop.permute.xlu0 %561
        %563 = vrot.lane.b32.xlu0 %v549, 96
        %v564 = vpop.permute.xlu0 %563
        %567 = vrot.lane.b32.xlu0 %v545, 80
        %v568 = vpop.permute.xlu0 %567
        %569 = vrot.lane.b32.xlu0 %v549, 80
        %v570 = vpop.permute.xlu0 %569
        %v573 = vpack.c.bf16 %v545, %v545
        %v574 = vpack.c.bf16 %v549, %v549
        %v575 = vpack.c.bf16 %v556, %v556
        %v576 = vpack.c.bf16 %v558, %v558
        %v577 = vpack.c.bf16 %v562, %v562
        %v578 = vpack.c.bf16 %v564, %v564
        %v579 = vpack.c.bf16 %v568, %v568
        %v580 = vpack.c.bf16 %v570, %v570
        %583 = vrot.lane.b32.xlu0 %v547, 112
        %v584 = vpop.permute.xlu0 %583
        %585 = vrot.lane.b32.xlu0 %v551, 112
        %v586 = vpop.permute.xlu0 %585
        %589 = vrot.lane.b32.xlu0 %v547, 96
        %v590 = vpop.permute.xlu0 %589
        %591 = vrot.lane.b32.xlu0 %v551, 96
        %v592 = vpop.permute.xlu0 %591
        %595 = vrot.lane.b32.xlu0 %v547, 80
        %v596 = vpop.permute.xlu0 %595
        %597 = vrot.lane.b32.xlu0 %v551, 80
        %v598 = vpop.permute.xlu0 %597
        %v601 = vpack.c.bf16 %v547, %v547
        %v602 = vpack.c.bf16 %v551, %v551
        %v603 = vpack.c.bf16 %v584, %v584
        %v604 = vpack.c.bf16 %v586, %v586
        %v605 = vpack.c.bf16 %v590, %v590
        %v606 = vpack.c.bf16 %v592, %v592
        %v607 = vpack.c.bf16 %v596, %v596
        %v608 = vpack.c.bf16 %v598, %v598
        %610 = vrot.lane.b32.xlu0 %v573, 64
        %v611 = vpop.permute.xlu0 %610
        %vm612 = vcmask 130048
        %v614 = vsel %vm612, %v573, 0
        %v617 = vsel %vm612, %v611, 0
        %619 = vmatprep.subr.bf16.mxu0 0
        %620 = vmatpush1.bf16.xpose.msra.mxu0 0
        %621 = vmatprep.subr.bf16.mxu0 0
        %622 = vmatpush1.bf16.xpose.msra.mxu0 0
        %623 = vmatprep.subr.bf16.mxu0 0
        %624 = vmatpush1.bf16.xpose.msra.mxu0 0
        %625 = vmatprep.subr.bf16.mxu0 0
        %626 = vmatpush1.bf16.xpose.msra.mxu0 0
        %627 = vmatprep.subr.bf16.mxu0 0
        %628 = vmatpush1.bf16.xpose.msra.mxu0 0
        %629 = vmatprep.subr.bf16.mxu0 0
        %630 = vmatpush1.bf16.xpose.msra.mxu0 0
        %631 = vmatprep.subr.bf16.mxu0 0
        %632 = vmatpush1.bf16.xpose.msra.mxu0 0
        %633 = vmatprep.subr.bf16.mxu0 0
        %634 = vmatpush1.bf16.xpose.msra.mxu0 %v617
        %635 = vmatprep.subr.bf16.mxu0 0
        %636 = vmatpush2.bf16.xpose.msra.mxu0 0
        %637 = vmatprep.subr.bf16.mxu0 0
        %638 = vmatpush2.bf16.xpose.msra.mxu0 0
        %639 = vmatprep.subr.bf16.mxu0 0
        %640 = vmatpush2.bf16.xpose.msra.mxu0 0
        %641 = vmatprep.subr.bf16.mxu0 0
        %642 = vmatpush2.bf16.xpose.msra.mxu0 0
        %643 = vmatprep.subr.bf16.mxu0 0
        %644 = vmatpush2.bf16.xpose.msra.mxu0 0
        %645 = vmatprep.subr.bf16.mxu0 0
        %646 = vmatpush2.bf16.xpose.msra.mxu0 0
        %647 = vmatprep.subr.bf16.mxu0 0
        %648 = vmatpush2.bf16.xpose.msra.mxu0 0
        %649 = vmatprep.subr.bf16.mxu0 0
        %650 = vmatpush2.bf16.xpose.msra.mxu0 0
        %651 = vmatprep.mubr.bf16.mxu0 0
        %652 = vmatmul.mubr.bf16.gmra.mxu0 %v614
        %v653 = vpop.f32.mrf.mxu0
        %v654 = vadd.f32 0.0, %v653
        %v655 = vpop.f32.mrf.mxu0
        %v656 = vpop.f32.mrf.mxu0
        %v657 = vpop.f32.mrf.mxu0
        %658 = vdwg.mxu0
        %660 = vrot.lane.b32.xlu0 %v574, 64
        %v661 = vpop.permute.xlu0 %660
        %v663 = vsel %vm612, %v574, 0
        %v666 = vsel %vm612, %v661, 0
        %668 = vmatprep.subr.bf16.mxu0 0
        %669 = vmatpush1.bf16.xpose.msra.mxu0 0
        %670 = vmatprep.subr.bf16.mxu0 0
        %671 = vmatpush1.bf16.xpose.msra.mxu0 0
        %672 = vmatprep.subr.bf16.mxu0 0
        %673 = vmatpush1.bf16.xpose.msra.mxu0 0
        %674 = vmatprep.subr.bf16.mxu0 0
        %675 = vmatpush1.bf16.xpose.msra.mxu0 0
        %676 = vmatprep.subr.bf16.mxu0 0
        %677 = vmatpush1.bf16.xpose.msra.mxu0 0
        %678 = vmatprep.subr.bf16.mxu0 0
        %679 = vmatpush1.bf16.xpose.msra.mxu0 0
        %680 = vmatprep.subr.bf16.mxu0 0
        %681 = vmatpush1.bf16.xpose.msra.mxu0 0
        %682 = vmatprep.subr.bf16.mxu0 0
        %683 = vmatpush1.bf16.xpose.msra.mxu0 %v666
        %684 = vmatprep.subr.bf16.mxu0 0
        %685 = vmatpush2.bf16.xpose.msra.mxu0 0
        %686 = vmatprep.subr.bf16.mxu0 0
        %687 = vmatpush2.bf16.xpose.msra.mxu0 0
        %688 = vmatprep.subr.bf16.mxu0 0
        %689 = vmatpush2.bf16.xpose.msra.mxu0 0
        %690 = vmatprep.subr.bf16.mxu0 0
        %691 = vmatpush2.bf16.xpose.msra.mxu0 0
        %692 = vmatprep.subr.bf16.mxu0 0
        %693 = vmatpush2.bf16.xpose.msra.mxu0 0
        %694 = vmatprep.subr.bf16.mxu0 0
        %695 = vmatpush2.bf16.xpose.msra.mxu0 0
        %696 = vmatprep.subr.bf16.mxu0 0
        %697 = vmatpush2.bf16.xpose.msra.mxu0 0
        %698 = vmatprep.subr.bf16.mxu0 0
        %699 = vmatpush2.bf16.xpose.msra.mxu0 0
        %700 = vmatprep.mubr.bf16.mxu0 0
        %701 = vmatmul.mubr.bf16.gmra.mxu0 %v663
        %v702 = vpop.f32.mrf.mxu0
        %v703 = vadd.f32 0.0, %v702
        %v704 = vpop.f32.mrf.mxu0
        %v705 = vpop.f32.mrf.mxu0
        %v706 = vpop.f32.mrf.mxu0
        %707 = vdwg.mxu0
        %709 = vrot.lane.b32.xlu0 %v575, 64
        %v710 = vpop.permute.xlu0 %709
        %v712 = vsel %vm612, %v575, 0
        %v715 = vsel %vm612, %v710, 0
        %717 = vmatprep.subr.bf16.mxu0 0
        %718 = vmatpush1.bf16.xpose.msra.mxu0 0
        %719 = vmatprep.subr.bf16.mxu0 0
        %720 = vmatpush1.bf16.xpose.msra.mxu0 0
        %721 = vmatprep.subr.bf16.mxu0 0
        %722 = vmatpush1.bf16.xpose.msra.mxu0 0
        %723 = vmatprep.subr.bf16.mxu0 0
        %724 = vmatpush1.bf16.xpose.msra.mxu0 0
        %725 = vmatprep.subr.bf16.mxu0 0
        %726 = vmatpush1.bf16.xpose.msra.mxu0 0
        %727 = vmatprep.subr.bf16.mxu0 0
        %728 = vmatpush1.bf16.xpose.msra.mxu0 0
        %729 = vmatprep.subr.bf16.mxu0 0
        %730 = vmatpush1.bf16.xpose.msra.mxu0 0
        %731 = vmatprep.subr.bf16.mxu0 0
        %732 = vmatpush1.bf16.xpose.msra.mxu0 %v715
        %733 = vmatprep.subr.bf16.mxu0 0
        %734 = vmatpush2.bf16.xpose.msra.mxu0 0
        %735 = vmatprep.subr.bf16.mxu0 0
        %736 = vmatpush2.bf16.xpose.msra.mxu0 0
        %737 = vmatprep.subr.bf16.mxu0 0
        %738 = vmatpush2.bf16.xpose.msra.mxu0 0
        %739 = vmatprep.subr.bf16.mxu0 0
        %740 = vmatpush2.bf16.xpose.msra.mxu0 0
        %741 = vmatprep.subr.bf16.mxu0 0
        %742 = vmatpush2.bf16.xpose.msra.mxu0 0
        %743 = vmatprep.subr.bf16.mxu0 0
        %744 = vmatpush2.bf16.xpose.msra.mxu0 0
        %745 = vmatprep.subr.bf16.mxu0 0
        %746 = vmatpush2.bf16.xpose.msra.mxu0 0
        %747 = vmatprep.subr.bf16.mxu0 0
        %748 = vmatpush2.bf16.xpose.msra.mxu0 0
        %749 = vmatprep.mubr.bf16.mxu0 0
        %750 = vmatmul.mubr.bf16.gmra.mxu0 %v712
        %v751 = vpop.f32.mrf.mxu0
        %v752 = vadd.f32 0.0, %v751
        %v753 = vpop.f32.mrf.mxu0
        %v754 = vpop.f32.mrf.mxu0
        %v755 = vpop.f32.mrf.mxu0
        %756 = vdwg.mxu0
        %758 = vrot.lane.b32.xlu0 %v576, 64
        %v759 = vpop.permute.xlu0 %758
        %v761 = vsel %vm612, %v576, 0
        %v764 = vsel %vm612, %v759, 0
        %766 = vmatprep.subr.bf16.mxu0 0
        %767 = vmatpush1.bf16.xpose.msra.mxu0 0
        %768 = vmatprep.subr.bf16.mxu0 0
        %769 = vmatpush1.bf16.xpose.msra.mxu0 0
        %770 = vmatprep.subr.bf16.mxu0 0
        %771 = vmatpush1.bf16.xpose.msra.mxu0 0
        %772 = vmatprep.subr.bf16.mxu0 0
        %773 = vmatpush1.bf16.xpose.msra.mxu0 0
        %774 = vmatprep.subr.bf16.mxu0 0
        %775 = vmatpush1.bf16.xpose.msra.mxu0 0
        %776 = vmatprep.subr.bf16.mxu0 0
        %777 = vmatpush1.bf16.xpose.msra.mxu0 0
        %778 = vmatprep.subr.bf16.mxu0 0
        %779 = vmatpush1.bf16.xpose.msra.mxu0 0
        %780 = vmatprep.subr.bf16.mxu0 0
        %781 = vmatpush1.bf16.xpose.msra.mxu0 %v764
        %782 = vmatprep.subr.bf16.mxu0 0
        %783 = vmatpush2.bf16.xpose.msra.mxu0 0
        %784 = vmatprep.subr.bf16.mxu0 0
        %785 = vmatpush2.bf16.xpose.msra.mxu0 0
        %786 = vmatprep.subr.bf16.mxu0 0
        %787 = vmatpush2.bf16.xpose.msra.mxu0 0
        %788 = vmatprep.subr.bf16.mxu0 0
        %789 = vmatpush2.bf16.xpose.msra.mxu0 0
        %790 = vmatprep.subr.bf16.mxu0 0
        %791 = vmatpush2.bf16.xpose.msra.mxu0 0
        %792 = vmatprep.subr.bf16.mxu0 0
        %793 = vmatpush2.bf16.xpose.msra.mxu0 0
        %794 = vmatprep.subr.bf16.mxu0 0
        %795 = vmatpush2.bf16.xpose.msra.mxu0 0
        %796 = vmatprep.subr.bf16.mxu0 0
        %797 = vmatpush2.bf16.xpose.msra.mxu0 0
        %798 = vmatprep.mubr.bf16.mxu0 0
        %799 = vmatmul.mubr.bf16.gmra.mxu0 %v761
        %v800 = vpop.f32.mrf.mxu0
        %v801 = vadd.f32 0.0, %v800
        %v802 = vpop.f32.mrf.mxu0
        %v803 = vpop.f32.mrf.mxu0
        %v804 = vpop.f32.mrf.mxu0
        %805 = vdwg.mxu0
        %807 = vrot.lane.b32.xlu0 %v577, 64
        %v808 = vpop.permute.xlu0 %807
        %v810 = vsel %vm612, %v577, 0
        %v813 = vsel %vm612, %v808, 0
        %815 = vmatprep.subr.bf16.mxu0 0
        %816 = vmatpush1.bf16.xpose.msra.mxu0 0
        %817 = vmatprep.subr.bf16.mxu0 0
        %818 = vmatpush1.bf16.xpose.msra.mxu0 0
        %819 = vmatprep.subr.bf16.mxu0 0
        %820 = vmatpush1.bf16.xpose.msra.mxu0 0
        %821 = vmatprep.subr.bf16.mxu0 0
        %822 = vmatpush1.bf16.xpose.msra.mxu0 0
        %823 = vmatprep.subr.bf16.mxu0 0
        %824 = vmatpush1.bf16.xpose.msra.mxu0 0
        %825 = vmatprep.subr.bf16.mxu0 0
        %826 = vmatpush1.bf16.xpose.msra.mxu0 0
        %827 = vmatprep.subr.bf16.mxu0 0
        %828 = vmatpush1.bf16.xpose.msra.mxu0 0
        %829 = vmatprep.subr.bf16.mxu0 0
        %830 = vmatpush1.bf16.xpose.msra.mxu0 %v813
        %831 = vmatprep.subr.bf16.mxu0 0
        %832 = vmatpush2.bf16.xpose.msra.mxu0 0
        %833 = vmatprep.subr.bf16.mxu0 0
        %834 = vmatpush2.bf16.xpose.msra.mxu0 0
        %835 = vmatprep.subr.bf16.mxu0 0
        %836 = vmatpush2.bf16.xpose.msra.mxu0 0
        %837 = vmatprep.subr.bf16.mxu0 0
        %838 = vmatpush2.bf16.xpose.msra.mxu0 0
        %839 = vmatprep.subr.bf16.mxu0 0
        %840 = vmatpush2.bf16.xpose.msra.mxu0 0
        %841 = vmatprep.subr.bf16.mxu0 0
        %842 = vmatpush2.bf16.xpose.msra.mxu0 0
        %843 = vmatprep.subr.bf16.mxu0 0
        %844 = vmatpush2.bf16.xpose.msra.mxu0 0
        %845 = vmatprep.subr.bf16.mxu0 0
        %846 = vmatpush2.bf16.xpose.msra.mxu0 0
        %847 = vmatprep.mubr.bf16.mxu0 0
        %848 = vmatmul.mubr.bf16.gmra.mxu0 %v810
        %v849 = vpop.f32.mrf.mxu0
        %v850 = vadd.f32 0.0, %v849
        %v851 = vpop.f32.mrf.mxu0
        %v852 = vpop.f32.mrf.mxu0
        %v853 = vpop.f32.mrf.mxu0
        %854 = vdwg.mxu0
        %856 = vrot.lane.b32.xlu0 %v578, 64
        %v857 = vpop.permute.xlu0 %856
        %v859 = vsel %vm612, %v578, 0
        %v862 = vsel %vm612, %v857, 0
        %864 = vmatprep.subr.bf16.mxu0 0
        %865 = vmatpush1.bf16.xpose.msra.mxu0 0
        %866 = vmatprep.subr.bf16.mxu0 0
        %867 = vmatpush1.bf16.xpose.msra.mxu0 0
        %868 = vmatprep.subr.bf16.mxu0 0
        %869 = vmatpush1.bf16.xpose.msra.mxu0 0
        %870 = vmatprep.subr.bf16.mxu0 0
        %871 = vmatpush1.bf16.xpose.msra.mxu0 0
        %872 = vmatprep.subr.bf16.mxu0 0
        %873 = vmatpush1.bf16.xpose.msra.mxu0 0
        %874 = vmatprep.subr.bf16.mxu0 0
        %875 = vmatpush1.bf16.xpose.msra.mxu0 0
        %876 = vmatprep.subr.bf16.mxu0 0
        %877 = vmatpush1.bf16.xpose.msra.mxu0 0
        %878 = vmatprep.subr.bf16.mxu0 0
        %879 = vmatpush1.bf16.xpose.msra.mxu0 %v862
        %880 = vmatprep.subr.bf16.mxu0 0
        %881 = vmatpush2.bf16.xpose.msra.mxu0 0
        %882 = vmatprep.subr.bf16.mxu0 0
        %883 = vmatpush2.bf16.xpose.msra.mxu0 0
        %884 = vmatprep.subr.bf16.mxu0 0
        %885 = vmatpush2.bf16.xpose.msra.mxu0 0
        %886 = vmatprep.subr.bf16.mxu0 0
        %887 = vmatpush2.bf16.xpose.msra.mxu0 0
        %888 = vmatprep.subr.bf16.mxu0 0
        %889 = vmatpush2.bf16.xpose.msra.mxu0 0
        %890 = vmatprep.subr.bf16.mxu0 0
        %891 = vmatpush2.bf16.xpose.msra.mxu0 0
        %892 = vmatprep.subr.bf16.mxu0 0
        %893 = vmatpush2.bf16.xpose.msra.mxu0 0
        %894 = vmatprep.subr.bf16.mxu0 0
        %895 = vmatpush2.bf16.xpose.msra.mxu0 0
        %896 = vmatprep.mubr.bf16.mxu0 0
        %897 = vmatmul.mubr.bf16.gmra.mxu0 %v859
        %v898 = vpop.f32.mrf.mxu0
        %v899 = vadd.f32 0.0, %v898
        %v900 = vpop.f32.mrf.mxu0
        %v901 = vpop.f32.mrf.mxu0
        %v902 = vpop.f32.mrf.mxu0
        %903 = vdwg.mxu0
        %905 = vrot.lane.b32.xlu0 %v579, 64
        %v906 = vpop.permute.xlu0 %905
        %v908 = vsel %vm612, %v579, 0
        %v911 = vsel %vm612, %v906, 0
        %913 = vmatprep.subr.bf16.mxu0 0
        %914 = vmatpush1.bf16.xpose.msra.mxu0 0
        %915 = vmatprep.subr.bf16.mxu0 0
        %916 = vmatpush1.bf16.xpose.msra.mxu0 0
        %917 = vmatprep.subr.bf16.mxu0 0
        %918 = vmatpush1.bf16.xpose.msra.mxu0 0
        %919 = vmatprep.subr.bf16.mxu0 0
        %920 = vmatpush1.bf16.xpose.msra.mxu0 0
        %921 = vmatprep.subr.bf16.mxu0 0
        %922 = vmatpush1.bf16.xpose.msra.mxu0 0
        %923 = vmatprep.subr.bf16.mxu0 0
        %924 = vmatpush1.bf16.xpose.msra.mxu0 0
        %925 = vmatprep.subr.bf16.mxu0 0
        %926 = vmatpush1.bf16.xpose.msra.mxu0 0
        %927 = vmatprep.subr.bf16.mxu0 0
        %928 = vmatpush1.bf16.xpose.msra.mxu0 %v911
        %929 = vmatprep.subr.bf16.mxu0 0
        %930 = vmatpush2.bf16.xpose.msra.mxu0 0
        %931 = vmatprep.subr.bf16.mxu0 0
        %932 = vmatpush2.bf16.xpose.msra.mxu0 0
        %933 = vmatprep.subr.bf16.mxu0 0
        %934 = vmatpush2.bf16.xpose.msra.mxu0 0
        %935 = vmatprep.subr.bf16.mxu0 0
        %936 = vmatpush2.bf16.xpose.msra.mxu0 0
        %937 = vmatprep.subr.bf16.mxu0 0
        %938 = vmatpush2.bf16.xpose.msra.mxu0 0
        %939 = vmatprep.subr.bf16.mxu0 0
        %940 = vmatpush2.bf16.xpose.msra.mxu0 0
        %941 = vmatprep.subr.bf16.mxu0 0
        %942 = vmatpush2.bf16.xpose.msra.mxu0 0
        %943 = vmatprep.subr.bf16.mxu0 0
        %944 = vmatpush2.bf16.xpose.msra.mxu0 0
        %945 = vmatprep.mubr.bf16.mxu0 0
        %946 = vmatmul.mubr.bf16.gmra.mxu0 %v908
        %v947 = vpop.f32.mrf.mxu0
        %v948 = vadd.f32 0.0, %v947
        %v949 = vpop.f32.mrf.mxu0
        %v950 = vpop.f32.mrf.mxu0
        %v951 = vpop.f32.mrf.mxu0
        %952 = vdwg.mxu0
        %954 = vrot.lane.b32.xlu0 %v580, 64
        %v955 = vpop.permute.xlu0 %954
        %v957 = vsel %vm612, %v580, 0
        %v960 = vsel %vm612, %v955, 0
        %962 = vmatprep.subr.bf16.mxu0 0
        %963 = vmatpush1.bf16.xpose.msra.mxu0 0
        %964 = vmatprep.subr.bf16.mxu0 0
        %965 = vmatpush1.bf16.xpose.msra.mxu0 0
        %966 = vmatprep.subr.bf16.mxu0 0
        %967 = vmatpush1.bf16.xpose.msra.mxu0 0
        %968 = vmatprep.subr.bf16.mxu0 0
        %969 = vmatpush1.bf16.xpose.msra.mxu0 0
        %970 = vmatprep.subr.bf16.mxu0 0
        %971 = vmatpush1.bf16.xpose.msra.mxu0 0
        %972 = vmatprep.subr.bf16.mxu0 0
        %973 = vmatpush1.bf16.xpose.msra.mxu0 0
        %974 = vmatprep.subr.bf16.mxu0 0
        %975 = vmatpush1.bf16.xpose.msra.mxu0 0
        %976 = vmatprep.subr.bf16.mxu0 0
        %977 = vmatpush1.bf16.xpose.msra.mxu0 %v960
        %978 = vmatprep.subr.bf16.mxu0 0
        %979 = vmatpush2.bf16.xpose.msra.mxu0 0
        %980 = vmatprep.subr.bf16.mxu0 0
        %981 = vmatpush2.bf16.xpose.msra.mxu0 0
        %982 = vmatprep.subr.bf16.mxu0 0
        %983 = vmatpush2.bf16.xpose.msra.mxu0 0
        %984 = vmatprep.subr.bf16.mxu0 0
        %985 = vmatpush2.bf16.xpose.msra.mxu0 0
        %986 = vmatprep.subr.bf16.mxu0 0
        %987 = vmatpush2.bf16.xpose.msra.mxu0 0
        %988 = vmatprep.subr.bf16.mxu0 0
        %989 = vmatpush2.bf16.xpose.msra.mxu0 0
        %990 = vmatprep.subr.bf16.mxu0 0
        %991 = vmatpush2.bf16.xpose.msra.mxu0 0
        %992 = vmatprep.subr.bf16.mxu0 0
        %993 = vmatpush2.bf16.xpose.msra.mxu0 0
        %994 = vmatprep.mubr.bf16.mxu0 0
        %995 = vmatmul.mubr.bf16.gmra.mxu0 %v957
        %v996 = vpop.f32.mrf.mxu0
        %v997 = vadd.f32 0.0, %v996
        %v998 = vpop.f32.mrf.mxu0
        %v999 = vpop.f32.mrf.mxu0
        %v1000 = vpop.f32.mrf.mxu0
        %1001 = vdwg.mxu0
        %vm1002 = vcmask 64512
        %v1003 = vsel %vm1002, %v654, -inf
        %1004 = vmax.xlane.f32.xlu0 %v1003
        %v1005 = vpop.xlane.xlu0 %1004
        %v1006 = vsel %vm1002, %v703, -inf
        %1007 = vmax.xlane.f32.xlu0 %v1006
        %v1008 = vpop.xlane.xlu0 %1007
        %v1009 = vsel %vm1002, %v752, -inf
        %1010 = vmax.xlane.f32.xlu0 %v1009
        %v1011 = vpop.xlane.xlu0 %1010
        %v1012 = vsel %vm1002, %v801, -inf
        %1013 = vmax.xlane.f32.xlu0 %v1012
        %v1014 = vpop.xlane.xlu0 %1013
        %v1015 = vsel %vm1002, %v850, -inf
        %1016 = vmax.xlane.f32.xlu0 %v1015
        %v1017 = vpop.xlane.xlu0 %1016
        %v1018 = vsel %vm1002, %v899, -inf
        %1019 = vmax.xlane.f32.xlu0 %v1018
        %v1020 = vpop.xlane.xlu0 %1019
        %v1021 = vsel %vm1002, %v948, -inf
        %1022 = vmax.xlane.f32.xlu0 %v1021
        %v1023 = vpop.xlane.xlu0 %1022
        %v1024 = vsel %vm1002, %v997, -inf
        %1025 = vmax.xlane.f32.xlu0 %v1024
        %v1026 = vpop.xlane.xlu0 %1025
        %v1027 = vsub.f32 %v654, %v1005
        %v1028 = vsub.f32 %v703, %v1008
        %v1029 = vsub.f32 %v752, %v1011
        %v1030 = vsub.f32 %v801, %v1014
        %v1031 = vsub.f32 %v850, %v1017
        %v1032 = vsub.f32 %v899, %v1020
        %v1033 = vsub.f32 %v948, %v1023
        %v1034 = vsub.f32 %v997, %v1026
        %v1035 = vmul.f32 %v1027, 1.442695
        %v1036 = vpow.pop %v1035
        %v1037 = vmul.f32 %v1028, 1.442695
        %v1038 = vpow.pop %v1037
        %v1039 = vmul.f32 %v1029, 1.442695
        %v1040 = vpow.pop %v1039
        %v1041 = vmul.f32 %v1030, 1.442695
        %v1042 = vpow.pop %v1041
        %v1043 = vmul.f32 %v1031, 1.442695
        %v1044 = vpow.pop %v1043
        %v1045 = vmul.f32 %v1032, 1.442695
        %v1046 = vpow.pop %v1045
        %v1047 = vmul.f32 %v1033, 1.442695
        %v1048 = vpow.pop %v1047
        %v1049 = vmul.f32 %v1034, 1.442695
        %v1050 = vpow.pop %v1049
        %v1051 = vsel %vm1002, %v1036, 0.0
        %1052 = vadd.xlane.f32.xlu0 %v1051
        %v1053 = vpop.xlane.xlu0 %1052
        %v1054 = vsel %vm1002, %v1038, 0.0
        %1055 = vadd.xlane.f32.xlu0 %v1054
        %v1056 = vpop.xlane.xlu0 %1055
        %v1057 = vsel %vm1002, %v1040, 0.0
        %1058 = vadd.xlane.f32.xlu0 %v1057
        %v1059 = vpop.xlane.xlu0 %1058
        %v1060 = vsel %vm1002, %v1042, 0.0
        %1061 = vadd.xlane.f32.xlu0 %v1060
        %v1062 = vpop.xlane.xlu0 %1061
        %v1063 = vsel %vm1002, %v1044, 0.0
        %1064 = vadd.xlane.f32.xlu0 %v1063
        %v1065 = vpop.xlane.xlu0 %1064
        %v1066 = vsel %vm1002, %v1046, 0.0
        %1067 = vadd.xlane.f32.xlu0 %v1066
        %v1068 = vpop.xlane.xlu0 %1067
        %v1069 = vsel %vm1002, %v1048, 0.0
        %1070 = vadd.xlane.f32.xlu0 %v1069
        %v1071 = vpop.xlane.xlu0 %1070
        %v1072 = vsel %vm1002, %v1050, 0.0
        %1073 = vadd.xlane.f32.xlu0 %v1072
        %v1074 = vpop.xlane.xlu0 %1073
        %v1075 = vrcp.pop %v1053
        %v1076 = vrcp.pop %v1056
        %v1077 = vrcp.pop %v1059
        %v1078 = vrcp.pop %v1062
        %v1079 = vrcp.pop %v1065
        %v1080 = vrcp.pop %v1068
        %v1081 = vrcp.pop %v1071
        %v1082 = vrcp.pop %v1074
        %v1083 = vmul.f32 %v1036, %v1075
        %v1084 = vmul.f32 %v1038, %v1076
        %v1085 = vmul.f32 %v1040, %v1077
        %v1086 = vmul.f32 %v1042, %v1078
        %v1087 = vmul.f32 %v1044, %v1079
        %v1088 = vmul.f32 %v1046, %v1080
        %v1089 = vmul.f32 %v1048, %v1081
        %v1090 = vmul.f32 %v1050, %v1082
        %v1091 = vpack.c.bf16 %v1083, %v1083
        %v1092 = vpack.c.bf16 %v1084, %v1084
        %v1093 = vpack.c.bf16 %v1085, %v1085
        %v1094 = vpack.c.bf16 %v1086, %v1086
        %v1095 = vpack.c.bf16 %v1087, %v1087
        %v1096 = vpack.c.bf16 %v1088, %v1088
        %v1097 = vpack.c.bf16 %v1089, %v1089
        %v1098 = vpack.c.bf16 %v1090, %v1090
        %v1100 = vsel %vm1002, %v1091, 0
        %vm1102 = vcmask 1043456
        %v1104 = vsel %vm1102, %v601, 0
        %1106 = vmatprep.subr.bf16.mxu0 0
        %1107 = vmatpush1.bf16.msra.mxu0 0
        %1108 = vmatprep.subr.bf16.mxu0 0
        %1109 = vmatpush1.bf16.msra.mxu0 0
        %1110 = vmatprep.subr.bf16.mxu0 0
        %1111 = vmatpush1.bf16.msra.mxu0 0
        %1112 = vmatprep.subr.bf16.mxu0 0
        %1113 = vmatpush1.bf16.msra.mxu0 0
        %1114 = vmatprep.subr.bf16.mxu0 0
        %1115 = vmatpush1.bf16.msra.mxu0 0
        %1116 = vmatprep.subr.bf16.mxu0 0
        %1117 = vmatpush1.bf16.msra.mxu0 0
        %1118 = vmatprep.subr.bf16.mxu0 0
        %1119 = vmatpush1.bf16.msra.mxu0 0
        %1120 = vmatprep.subr.bf16.mxu0 0
        %1121 = vmatpush1.bf16.msra.mxu0 %v1104
        %1122 = vmatprep.subr.bf16.mxu0 0
        %1123 = vmatpush2.bf16.msra.mxu0 0
        %1124 = vmatprep.subr.bf16.mxu0 0
        %1125 = vmatpush2.bf16.msra.mxu0 0
        %1126 = vmatprep.subr.bf16.mxu0 0
        %1127 = vmatpush2.bf16.msra.mxu0 0
        %1128 = vmatprep.subr.bf16.mxu0 0
        %1129 = vmatpush2.bf16.msra.mxu0 0
        %1130 = vmatprep.subr.bf16.mxu0 0
        %1131 = vmatpush2.bf16.msra.mxu0 0
        %1132 = vmatprep.subr.bf16.mxu0 0
        %1133 = vmatpush2.bf16.msra.mxu0 0
        %1134 = vmatprep.subr.bf16.mxu0 0
        %1135 = vmatpush2.bf16.msra.mxu0 0
        %1136 = vmatprep.subr.bf16.mxu0 0
        %1137 = vmatpush2.bf16.msra.mxu0 0
        %1138 = vmatprep.mubr.bf16.mxu0 0
        %1139 = vmatmul.mubr.bf16.gmra.mxu0 %v1100
        %v1140 = vpop.f32.mrf.mxu0
        %v1141 = vadd.f32 0.0, %v1140
        %v1142 = vpop.f32.mrf.mxu0
        %v1143 = vpop.f32.mrf.mxu0
        %v1144 = vpop.f32.mrf.mxu0
        %1145 = vdwg.mxu0
        %v1147 = vsel %vm1002, %v1092, 0
        %v1150 = vsel %vm1102, %v602, 0
        %1152 = vmatprep.subr.bf16.mxu0 0
        %1153 = vmatpush1.bf16.msra.mxu0 0
        %1154 = vmatprep.subr.bf16.mxu0 0
        %1155 = vmatpush1.bf16.msra.mxu0 0
        %1156 = vmatprep.subr.bf16.mxu0 0
        %1157 = vmatpush1.bf16.msra.mxu0 0
        %1158 = vmatprep.subr.bf16.mxu0 0
        %1159 = vmatpush1.bf16.msra.mxu0 0
        %1160 = vmatprep.subr.bf16.mxu0 0
        %1161 = vmatpush1.bf16.msra.mxu0 0
        %1162 = vmatprep.subr.bf16.mxu0 0
        %1163 = vmatpush1.bf16.msra.mxu0 0
        %1164 = vmatprep.subr.bf16.mxu0 0
        %1165 = vmatpush1.bf16.msra.mxu0 0
        %1166 = vmatprep.subr.bf16.mxu0 0
        %1167 = vmatpush1.bf16.msra.mxu0 %v1150
        %1168 = vmatprep.subr.bf16.mxu0 0
        %1169 = vmatpush2.bf16.msra.mxu0 0
        %1170 = vmatprep.subr.bf16.mxu0 0
        %1171 = vmatpush2.bf16.msra.mxu0 0
        %1172 = vmatprep.subr.bf16.mxu0 0
        %1173 = vmatpush2.bf16.msra.mxu0 0
        %1174 = vmatprep.subr.bf16.mxu0 0
        %1175 = vmatpush2.bf16.msra.mxu0 0
        %1176 = vmatprep.subr.bf16.mxu0 0
        %1177 = vmatpush2.bf16.msra.mxu0 0
        %1178 = vmatprep.subr.bf16.mxu0 0
        %1179 = vmatpush2.bf16.msra.mxu0 0
        %1180 = vmatprep.subr.bf16.mxu0 0
        %1181 = vmatpush2.bf16.msra.mxu0 0
        %1182 = vmatprep.subr.bf16.mxu0 0
        %1183 = vmatpush2.bf16.msra.mxu0 0
        %1184 = vmatprep.mubr.bf16.mxu0 0
        %1185 = vmatmul.mubr.bf16.gmra.mxu0 %v1147
        %v1186 = vpop.f32.mrf.mxu0
        %v1187 = vadd.f32 0.0, %v1186
        %v1188 = vpop.f32.mrf.mxu0
        %v1189 = vpop.f32.mrf.mxu0
        %v1190 = vpop.f32.mrf.mxu0
        %1191 = vdwg.mxu0
        %v1193 = vsel %vm1002, %v1093, 0
        %v1196 = vsel %vm1102, %v603, 0
        %1198 = vmatprep.subr.bf16.mxu0 0
        %1199 = vmatpush1.bf16.msra.mxu0 0
        %1200 = vmatprep.subr.bf16.mxu0 0
        %1201 = vmatpush1.bf16.msra.mxu0 0
        %1202 = vmatprep.subr.bf16.mxu0 0
        %1203 = vmatpush1.bf16.msra.mxu0 0
        %1204 = vmatprep.subr.bf16.mxu0 0
        %1205 = vmatpush1.bf16.msra.mxu0 0
        %1206 = vmatprep.subr.bf16.mxu0 0
        %1207 = vmatpush1.bf16.msra.mxu0 0
        %1208 = vmatprep.subr.bf16.mxu0 0
        %1209 = vmatpush1.bf16.msra.mxu0 0
        %1210 = vmatprep.subr.bf16.mxu0 0
        %1211 = vmatpush1.bf16.msra.mxu0 0
        %1212 = vmatprep.subr.bf16.mxu0 0
        %1213 = vmatpush1.bf16.msra.mxu0 %v1196
        %1214 = vmatprep.subr.bf16.mxu0 0
        %1215 = vmatpush2.bf16.msra.mxu0 0
        %1216 = vmatprep.subr.bf16.mxu0 0
        %1217 = vmatpush2.bf16.msra.mxu0 0
        %1218 = vmatprep.subr.bf16.mxu0 0
        %1219 = vmatpush2.bf16.msra.mxu0 0
        %1220 = vmatprep.subr.bf16.mxu0 0
        %1221 = vmatpush2.bf16.msra.mxu0 0
        %1222 = vmatprep.subr.bf16.mxu0 0
        %1223 = vmatpush2.bf16.msra.mxu0 0
        %1224 = vmatprep.subr.bf16.mxu0 0
        %1225 = vmatpush2.bf16.msra.mxu0 0
        %1226 = vmatprep.subr.bf16.mxu0 0
        %1227 = vmatpush2.bf16.msra.mxu0 0
        %1228 = vmatprep.subr.bf16.mxu0 0
        %1229 = vmatpush2.bf16.msra.mxu0 0
        %1230 = vmatprep.mubr.bf16.mxu0 0
        %1231 = vmatmul.mubr.bf16.gmra.mxu0 %v1193
        %v1232 = vpop.f32.mrf.mxu0
        %v1233 = vadd.f32 0.0, %v1232
        %v1234 = vpop.f32.mrf.mxu0
        %v1235 = vpop.f32.mrf.mxu0
        %v1236 = vpop.f32.mrf.mxu0
        %1237 = vdwg.mxu0
        %v1239 = vsel %vm1002, %v1094, 0
        %v1242 = vsel %vm1102, %v604, 0
        %1244 = vmatprep.subr.bf16.mxu0 0
        %1245 = vmatpush1.bf16.msra.mxu0 0
        %1246 = vmatprep.subr.bf16.mxu0 0
        %1247 = vmatpush1.bf16.msra.mxu0 0
        %1248 = vmatprep.subr.bf16.mxu0 0
        %1249 = vmatpush1.bf16.msra.mxu0 0
        %1250 = vmatprep.subr.bf16.mxu0 0
        %1251 = vmatpush1.bf16.msra.mxu0 0
        %1252 = vmatprep.subr.bf16.mxu0 0
        %1253 = vmatpush1.bf16.msra.mxu0 0
        %1254 = vmatprep.subr.bf16.mxu0 0
        %1255 = vmatpush1.bf16.msra.mxu0 0
        %1256 = vmatprep.subr.bf16.mxu0 0
        %1257 = vmatpush1.bf16.msra.mxu0 0
        %1258 = vmatprep.subr.bf16.mxu0 0
        %1259 = vmatpush1.bf16.msra.mxu0 %v1242
        %1260 = vmatprep.subr.bf16.mxu0 0
        %1261 = vmatpush2.bf16.msra.mxu0 0
        %1262 = vmatprep.subr.bf16.mxu0 0
        %1263 = vmatpush2.bf16.msra.mxu0 0
        %1264 = vmatprep.subr.bf16.mxu0 0
        %1265 = vmatpush2.bf16.msra.mxu0 0
        %1266 = vmatprep.subr.bf16.mxu0 0
        %1267 = vmatpush2.bf16.msra.mxu0 0
        %1268 = vmatprep.subr.bf16.mxu0 0
        %1269 = vmatpush2.bf16.msra.mxu0 0
        %1270 = vmatprep.subr.bf16.mxu0 0
        %1271 = vmatpush2.bf16.msra.mxu0 0
        %1272 = vmatprep.subr.bf16.mxu0 0
        %1273 = vmatpush2.bf16.msra.mxu0 0
        %1274 = vmatprep.subr.bf16.mxu0 0
        %1275 = vmatpush2.bf16.msra.mxu0 0
        %1276 = vmatprep.mubr.bf16.mxu0 0
        %1277 = vmatmul.mubr.bf16.gmra.mxu0 %v1239
        %v1278 = vpop.f32.mrf.mxu0
        %v1279 = vadd.f32 0.0, %v1278
        %v1280 = vpop.f32.mrf.mxu0
        %v1281 = vpop.f32.mrf.mxu0
        %v1282 = vpop.f32.mrf.mxu0
        %1283 = vdwg.mxu0
        %v1285 = vsel %vm1002, %v1095, 0
        %v1288 = vsel %vm1102, %v605, 0
        %1290 = vmatprep.subr.bf16.mxu0 0
        %1291 = vmatpush1.bf16.msra.mxu0 0
        %1292 = vmatprep.subr.bf16.mxu0 0
        %1293 = vmatpush1.bf16.msra.mxu0 0
        %1294 = vmatprep.subr.bf16.mxu0 0
        %1295 = vmatpush1.bf16.msra.mxu0 0
        %1296 = vmatprep.subr.bf16.mxu0 0
        %1297 = vmatpush1.bf16.msra.mxu0 0
        %1298 = vmatprep.subr.bf16.mxu0 0
        %1299 = vmatpush1.bf16.msra.mxu0 0
        %1300 = vmatprep.subr.bf16.mxu0 0
        %1301 = vmatpush1.bf16.msra.mxu0 0
        %1302 = vmatprep.subr.bf16.mxu0 0
        %1303 = vmatpush1.bf16.msra.mxu0 0
        %1304 = vmatprep.subr.bf16.mxu0 0
        %1305 = vmatpush1.bf16.msra.mxu0 %v1288
        %1306 = vmatprep.subr.bf16.mxu0 0
        %1307 = vmatpush2.bf16.msra.mxu0 0
        %1308 = vmatprep.subr.bf16.mxu0 0
        %1309 = vmatpush2.bf16.msra.mxu0 0
        %1310 = vmatprep.subr.bf16.mxu0 0
        %1311 = vmatpush2.bf16.msra.mxu0 0
        %1312 = vmatprep.subr.bf16.mxu0 0
        %1313 = vmatpush2.bf16.msra.mxu0 0
        %1314 = vmatprep.subr.bf16.mxu0 0
        %1315 = vmatpush2.bf16.msra.mxu0 0
        %1316 = vmatprep.subr.bf16.mxu0 0
        %1317 = vmatpush2.bf16.msra.mxu0 0
        %1318 = vmatprep.subr.bf16.mxu0 0
        %1319 = vmatpush2.bf16.msra.mxu0 0
        %1320 = vmatprep.subr.bf16.mxu0 0
        %1321 = vmatpush2.bf16.msra.mxu0 0
        %1322 = vmatprep.mubr.bf16.mxu0 0
        %1323 = vmatmul.mubr.bf16.gmra.mxu0 %v1285
        %v1324 = vpop.f32.mrf.mxu0
        %v1325 = vadd.f32 0.0, %v1324
        %v1326 = vpop.f32.mrf.mxu0
        %v1327 = vpop.f32.mrf.mxu0
        %v1328 = vpop.f32.mrf.mxu0
        %1329 = vdwg.mxu0
        %v1331 = vsel %vm1002, %v1096, 0
        %v1334 = vsel %vm1102, %v606, 0
        %1336 = vmatprep.subr.bf16.mxu0 0
        %1337 = vmatpush1.bf16.msra.mxu0 0
        %1338 = vmatprep.subr.bf16.mxu0 0
        %1339 = vmatpush1.bf16.msra.mxu0 0
        %1340 = vmatprep.subr.bf16.mxu0 0
        %1341 = vmatpush1.bf16.msra.mxu0 0
        %1342 = vmatprep.subr.bf16.mxu0 0
        %1343 = vmatpush1.bf16.msra.mxu0 0
        %1344 = vmatprep.subr.bf16.mxu0 0
        %1345 = vmatpush1.bf16.msra.mxu0 0
        %1346 = vmatprep.subr.bf16.mxu0 0
        %1347 = vmatpush1.bf16.msra.mxu0 0
        %1348 = vmatprep.subr.bf16.mxu0 0
        %1349 = vmatpush1.bf16.msra.mxu0 0
        %1350 = vmatprep.subr.bf16.mxu0 0
        %1351 = vmatpush1.bf16.msra.mxu0 %v1334
        %1352 = vmatprep.subr.bf16.mxu0 0
        %1353 = vmatpush2.bf16.msra.mxu0 0
        %1354 = vmatprep.subr.bf16.mxu0 0
        %1355 = vmatpush2.bf16.msra.mxu0 0
        %1356 = vmatprep.subr.bf16.mxu0 0
        %1357 = vmatpush2.bf16.msra.mxu0 0
        %1358 = vmatprep.subr.bf16.mxu0 0
        %1359 = vmatpush2.bf16.msra.mxu0 0
        %1360 = vmatprep.subr.bf16.mxu0 0
        %1361 = vmatpush2.bf16.msra.mxu0 0
        %1362 = vmatprep.subr.bf16.mxu0 0
        %1363 = vmatpush2.bf16.msra.mxu0 0
        %1364 = vmatprep.subr.bf16.mxu0 0
        %1365 = vmatpush2.bf16.msra.mxu0 0
        %1366 = vmatprep.subr.bf16.mxu0 0
        %1367 = vmatpush2.bf16.msra.mxu0 0
        %1368 = vmatprep.mubr.bf16.mxu0 0
        %1369 = vmatmul.mubr.bf16.gmra.mxu0 %v1331
        %v1370 = vpop.f32.mrf.mxu0
        %v1371 = vadd.f32 0.0, %v1370
        %v1372 = vpop.f32.mrf.mxu0
        %v1373 = vpop.f32.mrf.mxu0
        %v1374 = vpop.f32.mrf.mxu0
        %1375 = vdwg.mxu0
        %v1377 = vsel %vm1002, %v1097, 0
        %v1380 = vsel %vm1102, %v607, 0
        %1382 = vmatprep.subr.bf16.mxu0 0
        %1383 = vmatpush1.bf16.msra.mxu0 0
        %1384 = vmatprep.subr.bf16.mxu0 0
        %1385 = vmatpush1.bf16.msra.mxu0 0
        %1386 = vmatprep.subr.bf16.mxu0 0
        %1387 = vmatpush1.bf16.msra.mxu0 0
        %1388 = vmatprep.subr.bf16.mxu0 0
        %1389 = vmatpush1.bf16.msra.mxu0 0
        %1390 = vmatprep.subr.bf16.mxu0 0
        %1391 = vmatpush1.bf16.msra.mxu0 0
        %1392 = vmatprep.subr.bf16.mxu0 0
        %1393 = vmatpush1.bf16.msra.mxu0 0
        %1394 = vmatprep.subr.bf16.mxu0 0
        %1395 = vmatpush1.bf16.msra.mxu0 0
        %1396 = vmatprep.subr.bf16.mxu0 0
        %1397 = vmatpush1.bf16.msra.mxu0 %v1380
        %1398 = vmatprep.subr.bf16.mxu0 0
        %1399 = vmatpush2.bf16.msra.mxu0 0
        %1400 = vmatprep.subr.bf16.mxu0 0
        %1401 = vmatpush2.bf16.msra.mxu0 0
        %1402 = vmatprep.subr.bf16.mxu0 0
        %1403 = vmatpush2.bf16.msra.mxu0 0
        %1404 = vmatprep.subr.bf16.mxu0 0
        %1405 = vmatpush2.bf16.msra.mxu0 0
        %1406 = vmatprep.subr.bf16.mxu0 0
        %1407 = vmatpush2.bf16.msra.mxu0 0
        %1408 = vmatprep.subr.bf16.mxu0 0
        %1409 = vmatpush2.bf16.msra.mxu0 0
        %1410 = vmatprep.subr.bf16.mxu0 0
        %1411 = vmatpush2.bf16.msra.mxu0 0
        %1412 = vmatprep.subr.bf16.mxu0 0
        %1413 = vmatpush2.bf16.msra.mxu0 0
        %1414 = vmatprep.mubr.bf16.mxu0 0
        %1415 = vmatmul.mubr.bf16.gmra.mxu0 %v1377
        %v1416 = vpop.f32.mrf.mxu0
        %v1417 = vadd.f32 0.0, %v1416
        %v1418 = vpop.f32.mrf.mxu0
        %v1419 = vpop.f32.mrf.mxu0
        %v1420 = vpop.f32.mrf.mxu0
        %1421 = vdwg.mxu0
        %v1423 = vsel %vm1002, %v1098, 0
        %v1426 = vsel %vm1102, %v608, 0
        %1428 = vmatprep.subr.bf16.mxu0 0
        %1429 = vmatpush1.bf16.msra.mxu0 0
        %1430 = vmatprep.subr.bf16.mxu0 0
        %1431 = vmatpush1.bf16.msra.mxu0 0
        %1432 = vmatprep.subr.bf16.mxu0 0
        %1433 = vmatpush1.bf16.msra.mxu0 0
        %1434 = vmatprep.subr.bf16.mxu0 0
        %1435 = vmatpush1.bf16.msra.mxu0 0
        %1436 = vmatprep.subr.bf16.mxu0 0
        %1437 = vmatpush1.bf16.msra.mxu0 0
        %1438 = vmatprep.subr.bf16.mxu0 0
        %1439 = vmatpush1.bf16.msra.mxu0 0
        %1440 = vmatprep.subr.bf16.mxu0 0
        %1441 = vmatpush1.bf16.msra.mxu0 0
        %1442 = vmatprep.subr.bf16.mxu0 0
        %1443 = vmatpush1.bf16.msra.mxu0 %v1426
        %1444 = vmatprep.subr.bf16.mxu0 0
        %1445 = vmatpush2.bf16.msra.mxu0 0
        %1446 = vmatprep.subr.bf16.mxu0 0
        %1447 = vmatpush2.bf16.msra.mxu0 0
        %1448 = vmatprep.subr.bf16.mxu0 0
        %1449 = vmatpush2.bf16.msra.mxu0 0
        %1450 = vmatprep.subr.bf16.mxu0 0
        %1451 = vmatpush2.bf16.msra.mxu0 0
        %1452 = vmatprep.subr.bf16.mxu0 0
        %1453 = vmatpush2.bf16.msra.mxu0 0
        %1454 = vmatprep.subr.bf16.mxu0 0
        %1455 = vmatpush2.bf16.msra.mxu0 0
        %1456 = vmatprep.subr.bf16.mxu0 0
        %1457 = vmatpush2.bf16.msra.mxu0 0
        %1458 = vmatprep.subr.bf16.mxu0 0
        %1459 = vmatpush2.bf16.msra.mxu0 0
        %1460 = vmatprep.mubr.bf16.mxu0 0
        %1461 = vmatmul.mubr.bf16.gmra.mxu0 %v1423
        %v1462 = vpop.f32.mrf.mxu0
        %v1463 = vadd.f32 0.0, %v1462
        %v1464 = vpop.f32.mrf.mxu0
        %v1465 = vpop.f32.mrf.mxu0
        %v1466 = vpop.f32.mrf.mxu0
        %1467 = vdwg.mxu0
        %1470 = vrot.lane.b32.xlu0 %v1233, 16
        %v1471 = vpop.permute.xlu0 %1470
        %1472 = vrot.lane.b32.xlu0 %v1279, 16
        %v1473 = vpop.permute.xlu0 %1472
        %1478 = vrot.lane.b32.xlu0 %v1325, 32
        %v1479 = vpop.permute.xlu0 %1478
        %1480 = vrot.lane.b32.xlu0 %v1371, 32
        %v1481 = vpop.permute.xlu0 %1480
        %1486 = vrot.lane.b32.xlu0 %v1417, 48
        %v1487 = vpop.permute.xlu0 %1486
        %1488 = vrot.lane.b32.xlu0 %v1463, 48
        %v1489 = vpop.permute.xlu0 %1488
        %v1492 = vsel %vm612, %v1141, %v1471
        %v1493 = vsel %vm612, %v1187, %v1473
        %vm1494 = vcmask 261120
        %v1495 = vsel %vm1494, %v1492, %v1479
        %v1496 = vsel %vm1494, %v1493, %v1481
        %vm1497 = vcmask 392192
        %v1498 = vsel %vm1497, %v1495, %v1487
        %v1499 = vsel %vm1497, %v1496, %v1489
        %v1500 = vpack.c.bf16 %v1499, %v1498
        %v1501 = vld [vmem:[%s3] sm:$0xf]
        %v1502 = vld [vmem:[%s3 + $0x4] sm:$0xf]
        %v1503 = vld [vmem:[%s3 + $0x8] sm:$0xf]
        %v1504 = vld [vmem:[%s3 + $0xc] sm:$0xf]
        %v1505 = vld [vmem:[%s3 + $0x10] sm:$0xf]
        %v1506 = vld [vmem:[%s3 + $0x14] sm:$0xf]
        %v1507 = vld [vmem:[%s3 + $0x18] sm:$0xf]
        %v1508 = vld [vmem:[%s3 + $0x1c] sm:$0xf]
        %v1509 = vld [vmem:[%s4] sm:$0x1]
        %v1511 = vlaneseq
        %v1512 = vshrl.u32 %v1511, 7
        %v1513 = vsub.s32 0, %v1512
        %v1514 = vrot.slane %v1509, %v1513
        %v1524 = vunpack.c.l.b16 %v1501
        %v1525 = vunpack.c.l.b16 %v1502
        %v1526 = vunpack.c.l.b16 %v1503
        %v1527 = vunpack.c.l.b16 %v1504
        %v1528 = vunpack.c.l.b16 %v1505
        %v1529 = vunpack.c.l.b16 %v1506
        %v1530 = vunpack.c.l.b16 %v1507
        %v1531 = vunpack.c.l.b16 %v1508
        %v1532 = vpack.c.b16 %v1525, %v1524
        %v1533 = vpack.c.b16 %v1527, %v1526
        %v1534 = vpack.c.b16 %v1529, %v1528
        %v1535 = vpack.c.b16 %v1531, %v1530
        %v1541 = vsel %vm506, %v1500, 0
        %1543 = vmatprep.subr.bf16.mxu0 0
        %1544 = vmatpush1.bf16.msra.mxu0 0
        %1545 = vmatprep.subr.bf16.mxu0 0
        %1546 = vmatpush1.bf16.msra.mxu0 0
        %1547 = vmatprep.subr.bf16.mxu0 0
        %1548 = vmatpush1.bf16.msra.mxu0 0
        %1549 = vmatprep.subr.bf16.mxu0 0
        %1550 = vmatpush1.bf16.msra.mxu0 0
        %1551 = vmatprep.subr.bf16.mxu0 0
        %1552 = vmatpush1.bf16.msra.mxu0 %v1535
        %1553 = vmatprep.subr.bf16.mxu0 0
        %1554 = vmatpush1.bf16.msra.mxu0 %v1534
        %1555 = vmatprep.subr.bf16.mxu0 0
        %1556 = vmatpush1.bf16.msra.mxu0 %v1533
        %1557 = vmatprep.subr.bf16.mxu0 0
        %1558 = vmatpush1.bf16.msra.mxu0 %v1532
        %1559 = vmatprep.subr.bf16.mxu0 0
        %1560 = vmatpush2.bf16.msra.mxu0 0
        %1561 = vmatprep.subr.bf16.mxu0 0
        %1562 = vmatpush2.bf16.msra.mxu0 0
        %1563 = vmatprep.subr.bf16.mxu0 0
        %1564 = vmatpush2.bf16.msra.mxu0 0
        %1565 = vmatprep.subr.bf16.mxu0 0
        %1566 = vmatpush2.bf16.msra.mxu0 0
        %1567 = vmatprep.subr.bf16.mxu0 0
        %1568 = vmatpush2.bf16.msra.mxu0 0
        %1569 = vmatprep.subr.bf16.mxu0 0
        %1570 = vmatpush2.bf16.msra.mxu0 0
        %1571 = vmatprep.subr.bf16.mxu0 0
        %1572 = vmatpush2.bf16.msra.mxu0 0
        %1573 = vmatprep.subr.bf16.mxu0 0
        %1574 = vmatpush2.bf16.msra.mxu0 0
        %1575 = vmatprep.mubr.bf16.mxu0 0
        %1576 = vmatmul.mubr.bf16.gmra.mxu0 %v1541
        %v1577 = vpop.f32.mrf.mxu0
        %v1578 = vadd.f32 %v1514, %v1577
        %v1579 = vpop.f32.mrf.mxu0
        %v1580 = vpop.f32.mrf.mxu0
        %v1581 = vadd.f32 %v1514, %v1580
        %v1582 = vpop.f32.mrf.mxu0
        %1583 = vdwg.mxu0
        %v1584 = vadd.f32 %v1578, %v443
        %v1585 = vadd.f32 %v1581, %v444
        %v1586 = vsel %vm506, %v1584, 0.0
        %1587 = vadd.xlane.f32.xlu0 %v1586
        %v1588 = vpop.xlane.xlu0 %1587
        %v1589 = vsel %vm506, %v1585, 0.0
        %1590 = vadd.xlane.f32.xlu0 %v1589
        %v1591 = vpop.xlane.xlu0 %1590
        %v1592 = vrcp.pop 64.0
        %v1593 = vmul.f32 %v1588, %v1592
        %v1594 = vmul.f32 %v1591, %v1592
        %v1595 = vsub.f32 %v1584, %v1593
        %v1596 = vsub.f32 %v1585, %v1594
        %v1597 = vmul.f32 %v1595, %v1595
        %v1598 = vmul.f32 %v1596, %v1596
        %v1599 = vsel %vm506, %v1597, 0.0
        %1600 = vadd.xlane.f32.xlu0 %v1599
        %v1601 = vpop.xlane.xlu0 %1600
        %v1602 = vsel %vm506, %v1598, 0.0
        %1603 = vadd.xlane.f32.xlu0 %v1602
        %v1604 = vpop.xlane.xlu0 %1603
        %v1605 = vmul.f32 %v1601, %v1592
        %v1606 = vmul.f32 %v1604, %v1592
        %v1607 = vadd.f32 %v1605, 1e-05
        %v1608 = vadd.f32 %v1606, 1e-05
        %v1609 = vrsqrt.pop %v1607
        %v1610 = vrsqrt.pop %v1608
        %v1611 = vmul.f32 %v1595, %v1609
        %v1612 = vmul.f32 %v1596, %v1610
        %v1613 = vld [vmem:[%s5] sm:$0x1]
        %v1615 = vlaneseq
        %v1616 = vshrl.u32 %v1615, 7
        %v1617 = vsub.s32 0, %v1616
        %v1618 = vrot.slane %v1613, %v1617
        %v1620 = vmul.f32 %v1611, %v1618
        %v1621 = vmul.f32 %v1612, %v1618
        %v1622 = vld [vmem:[%s6] sm:$0x1]
        %v1624 = vlaneseq
        %v1625 = vshrl.u32 %v1624, 7
        %v1626 = vsub.s32 0, %v1625
        %v1627 = vrot.slane %v1622, %v1626
        %v1629 = vadd.f32 %v1620, %v1627
        %v1630 = vadd.f32 %v1621, %v1627
        %v1631 = vpack.c.bf16 %v1630, %v1629
        %v1632 = vld [vmem:[%s7] sm:$0xff]
        %v1633 = vld [vmem:[%s7 + $0x8] sm:$0xff]
        %v1634 = vld [vmem:[%s7 + $0x10] sm:$0xff]
        %v1635 = vld [vmem:[%s7 + $0x18] sm:$0xff]
        %v1636 = vld [vmem:[%s7 + $0x20] sm:$0xff]
        %v1637 = vld [vmem:[%s7 + $0x28] sm:$0xff]
        %v1638 = vld [vmem:[%s7 + $0x30] sm:$0xff]
        %v1639 = vld [vmem:[%s7 + $0x38] sm:$0xff]
        %v1640 = vld [vmem:[%s8] sm:$0x3]
        %v1642 = vlaneseq
        %v1643 = vshrl.u32 %v1642, 7
        %v1644 = vsub.s32 0, %v1643
        %v1645 = vrot.slane %v1640, %v1644
        %v1646 = vlaneseq
        %v1647 = vshrl.u32 %v1646, 7
        %v1648 = vsub.s32 1, %v1647
        %v1649 = vrot.slane %v1640, %v1648
        %v1660 = vunpack.c.l.b16 %v1632
        %v1661 = vunpack.c.h.b16 %v1632
        %v1662 = vunpack.c.l.b16 %v1633
        %v1663 = vunpack.c.h.b16 %v1633
        %v1664 = vunpack.c.l.b16 %v1634
        %v1665 = vunpack.c.h.b16 %v1634
        %v1666 = vunpack.c.l.b16 %v1635
        %v1667 = vunpack.c.h.b16 %v1635
        %v1668 = vunpack.c.l.b16 %v1636
        %v1669 = vunpack.c.h.b16 %v1636
        %v1670 = vunpack.c.l.b16 %v1637
        %v1671 = vunpack.c.h.b16 %v1637
        %v1672 = vunpack.c.l.b16 %v1638
        %v1673 = vunpack.c.h.b16 %v1638
        %v1674 = vunpack.c.l.b16 %v1639
        %v1675 = vunpack.c.h.b16 %v1639
        %v1676 = vpack.c.b16 %v1662, %v1660
        %v1677 = vpack.c.b16 %v1663, %v1661
        %v1678 = vpack.c.b16 %v1666, %v1664
        %v1679 = vpack.c.b16 %v1667, %v1665
        %v1680 = vpack.c.b16 %v1670, %v1668
        %v1681 = vpack.c.b16 %v1671, %v1669
        %v1682 = vpack.c.b16 %v1674, %v1672
        %v1683 = vpack.c.b16 %v1675, %v1673
        %v1693 = vsel %vm506, %v1631, 0
        %1695 = vmatprep.subr.bf16.mxu0 0
        %1696 = vmatpush1.bf16.msra.mxu0 0
        %1697 = vmatprep.subr.bf16.mxu0 0
        %1698 = vmatpush1.bf16.msra.mxu0 0
        %1699 = vmatprep.subr.bf16.mxu0 0
        %1700 = vmatpush1.bf16.msra.mxu0 0
        %1701 = vmatprep.subr.bf16.mxu0 0
        %1702 = vmatpush1.bf16.msra.mxu0 0
        %1703 = vmatprep.subr.bf16.mxu0 %v1683
        %1704 = vmatpush1.bf16.msra.mxu0 %v1682
        %1705 = vmatprep.subr.bf16.mxu0 %v1681
        %1706 = vmatpush1.bf16.msra.mxu0 %v1680
        %1707 = vmatprep.subr.bf16.mxu0 %v1679
        %1708 = vmatpush1.bf16.msra.mxu0 %v1678
        %1709 = vmatprep.subr.bf16.mxu0 %v1677
        %1710 = vmatpush1.bf16.msra.mxu0 %v1676
        %1711 = vmatprep.subr.bf16.mxu0 0
        %1712 = vmatpush2.bf16.msra.mxu0 0
        %1713 = vmatprep.subr.bf16.mxu0 0
        %1714 = vmatpush2.bf16.msra.mxu0 0
        %1715 = vmatprep.subr.bf16.mxu0 0
        %1716 = vmatpush2.bf16.msra.mxu0 0
        %1717 = vmatprep.subr.bf16.mxu0 0
        %1718 = vmatpush2.bf16.msra.mxu0 0
        %1719 = vmatprep.subr.bf16.mxu0 0
        %1720 = vmatpush2.bf16.msra.mxu0 0
        %1721 = vmatprep.subr.bf16.mxu0 0
        %1722 = vmatpush2.bf16.msra.mxu0 0
        %1723 = vmatprep.subr.bf16.mxu0 0
        %1724 = vmatpush2.bf16.msra.mxu0 0
        %1725 = vmatprep.subr.bf16.mxu0 0
        %1726 = vmatpush2.bf16.msra.mxu0 0
        %1727 = vmatprep.mubr.bf16.mxu0 0
        %1728 = vmatmul.mubr.bf16.gmra.mxu0 %v1693
        %v1729 = vpop.f32.mrf.mxu0
        %v1730 = vadd.f32 %v1645, %v1729
        %v1731 = vpop.f32.mrf.mxu0
        %v1732 = vadd.f32 %v1649, %v1731
        %v1733 = vpop.f32.mrf.mxu0
        %v1734 = vadd.f32 %v1645, %v1733
        %v1735 = vpop.f32.mrf.mxu0
        %v1736 = vadd.f32 %v1649, %v1735
        %1737 = vdwg.mxu0
        %v1738 = vmax.f32 %v1730, 0.0
        %v1739 = vmax.f32 %v1732, 0.0
        %v1740 = vmax.f32 %v1734, 0.0
        %v1741 = vmax.f32 %v1736, 0.0
        %v1742 = vpack.c.bf16 %v1740, %v1738
        %v1743 = vpack.c.bf16 %v1741, %v1739
        %v1744 = vld [vmem:[%s9] sm:$0xf]
        %v1745 = vld [vmem:[%s9 + $0x4] sm:$0xf]
        %v1746 = vld [vmem:[%s9 + $0x8] sm:$0xf]
        %v1747 = vld [vmem:[%s9 + $0xc] sm:$0xf]
        %v1748 = vld [vmem:[%s9 + $0x10] sm:$0xf]
        %v1749 = vld [vmem:[%s9 + $0x14] sm:$0xf]
        %v1750 = vld [vmem:[%s9 + $0x18] sm:$0xf]
        %v1751 = vld [vmem:[%s9 + $0x1c] sm:$0xf]
        %v1752 = vld [vmem:[%s9 + $0x20] sm:$0xf]
        %v1753 = vld [vmem:[%s9 + $0x24] sm:$0xf]
        %v1754 = vld [vmem:[%s9 + $0x28] sm:$0xf]
        %v1755 = vld [vmem:[%s9 + $0x2c] sm:$0xf]
        %v1756 = vld [vmem:[%s9 + $0x30] sm:$0xf]
        %v1757 = vld [vmem:[%s9 + $0x34] sm:$0xf]
        %v1758 = vld [vmem:[%s9 + $0x38] sm:$0xf]
        %v1759 = vld [vmem:[%s9 + $0x3c] sm:$0xf]
        %v1760 = vld [vmem:[%s9 + $0x40] sm:$0xf]
        %v1761 = vld [vmem:[%s9 + $0x44] sm:$0xf]
        %v1762 = vld [vmem:[%s9 + $0x48] sm:$0xf]
        %v1763 = vld [vmem:[%s9 + $0x4c] sm:$0xf]
        %v1764 = vld [vmem:[%s9 + $0x50] sm:$0xf]
        %v1765 = vld [vmem:[%s9 + $0x54] sm:$0xf]
        %v1766 = vld [vmem:[%s9 + $0x58] sm:$0xf]
        %v1767 = vld [vmem:[%s9 + $0x5c] sm:$0xf]
        %v1768 = vld [vmem:[%s9 + $0x60] sm:$0xf]
        %v1769 = vld [vmem:[%s9 + $0x64] sm:$0xf]
        %v1770 = vld [vmem:[%s9 + $0x68] sm:$0xf]
        %v1771 = vld [vmem:[%s9 + $0x6c] sm:$0xf]
        %v1772 = vld [vmem:[%s9 + $0x70] sm:$0xf]
        %v1773 = vld [vmem:[%s9 + $0x74] sm:$0xf]
        %v1774 = vld [vmem:[%s9 + $0x78] sm:$0xf]
        %v1775 = vld [vmem:[%s9 + $0x7c] sm:$0xf]
        %v1776 = vld [vmem:[%s10] sm:$0x1]
        %v1778 = vlaneseq
        %v1779 = vshrl.u32 %v1778, 7
        %v1780 = vsub.s32 0, %v1779
        %v1781 = vrot.slane %v1776, %v1780
        %v1815 = vunpack.c.l.b16 %v1744
        %v1816 = vunpack.c.l.b16 %v1745
        %v1817 = vunpack.c.l.b16 %v1746
        %v1818 = vunpack.c.l.b16 %v1747
        %v1819 = vunpack.c.l.b16 %v1748
        %v1820 = vunpack.c.l.b16 %v1749
        %v1821 = vunpack.c.l.b16 %v1750
        %v1822 = vunpack.c.l.b16 %v1751
        %v1823 = vunpack.c.l.b16 %v1752
        %v1824 = vunpack.c.l.b16 %v1753
        %v1825 = vunpack.c.l.b16 %v1754
        %v1826 = vunpack.c.l.b16 %v1755
        %v1827 = vunpack.c.l.b16 %v1756
        %v1828 = vunpack.c.l.b16 %v1757
        %v1829 = vunpack.c.l.b16 %v1758
        %v1830 = vunpack.c.l.b16 %v1759
        %v1831 = vunpack.c.l.b16 %v1760
        %v1832 = vunpack.c.l.b16 %v1761
        %v1833 = vunpack.c.l.b16 %v1762
        %v1834 = vunpack.c.l.b16 %v1763
        %v1835 = vunpack.c.l.b16 %v1764
        %v1836 = vunpack.c.l.b16 %v1765
        %v1837 = vunpack.c.l.b16 %v1766
        %v1838 = vunpack.c.l.b16 %v1767
        %v1839 = vunpack.c.l.b16 %v1768
        %v1840 = vunpack.c.l.b16 %v1769
        %v1841 = vunpack.c.l.b16 %v1770
        %v1842 = vunpack.c.l.b16 %v1771
        %v1843 = vunpack.c.l.b16 %v1772
        %v1844 = vunpack.c.l.b16 %v1773
        %v1845 = vunpack.c.l.b16 %v1774
        %v1846 = vunpack.c.l.b16 %v1775
        %v1847 = vpack.c.b16 %v1816, %v1815
        %v1848 = vpack.c.b16 %v1818, %v1817
        %v1849 = vpack.c.b16 %v1820, %v1819
        %v1850 = vpack.c.b16 %v1822, %v1821
        %v1851 = vpack.c.b16 %v1824, %v1823
        %v1852 = vpack.c.b16 %v1826, %v1825
        %v1853 = vpack.c.b16 %v1828, %v1827
        %v1854 = vpack.c.b16 %v1830, %v1829
        %v1855 = vpack.c.b16 %v1832, %v1831
        %v1856 = vpack.c.b16 %v1834, %v1833
        %v1857 = vpack.c.b16 %v1836, %v1835
        %v1858 = vpack.c.b16 %v1838, %v1837
        %v1859 = vpack.c.b16 %v1840, %v1839
        %v1860 = vpack.c.b16 %v1842, %v1841
        %v1861 = vpack.c.b16 %v1844, %v1843
        %v1862 = vpack.c.b16 %v1846, %v1845
        %1879 = vmatprep.subr.bf16.mxu0 0
        %1880 = vmatpush1.bf16.msra.mxu0 %v1854
        %1881 = vmatprep.subr.bf16.mxu0 0
        %1882 = vmatpush1.bf16.msra.mxu0 %v1853
        %1883 = vmatprep.subr.bf16.mxu0 0
        %1884 = vmatpush1.bf16.msra.mxu0 %v1852
        %1885 = vmatprep.subr.bf16.mxu0 0
        %1886 = vmatpush1.bf16.msra.mxu0 %v1851
        %1887 = vmatprep.subr.bf16.mxu0 0
        %1888 = vmatpush1.bf16.msra.mxu0 %v1850
        %1889 = vmatprep.subr.bf16.mxu0 0
        %1890 = vmatpush1.bf16.msra.mxu0 %v1849
        %1891 = vmatprep.subr.bf16.mxu0 0
        %1892 = vmatpush1.bf16.msra.mxu0 %v1848
        %1893 = vmatprep.subr.bf16.mxu0 0
        %1894 = vmatpush1.bf16.msra.mxu0 %v1847
        %1895 = vmatprep.subr.bf16.mxu0 0
        %1896 = vmatpush2.bf16.msra.mxu0 %v1862
        %1897 = vmatprep.subr.bf16.mxu0 0
        %1898 = vmatpush2.bf16.msra.mxu0 %v1861
        %1899 = vmatprep.subr.bf16.mxu0 0
        %1900 = vmatpush2.bf16.msra.mxu0 %v1860
        %1901 = vmatprep.subr.bf16.mxu0 0
        %1902 = vmatpush2.bf16.msra.mxu0 %v1859
        %1903 = vmatprep.subr.bf16.mxu0 0
        %1904 = vmatpush2.bf16.msra.mxu0 %v1858
        %1905 = vmatprep.subr.bf16.mxu0 0
        %1906 = vmatpush2.bf16.msra.mxu0 %v1857
        %1907 = vmatprep.subr.bf16.mxu0 0
        %1908 = vmatpush2.bf16.msra.mxu0 %v1856
        %1909 = vmatprep.subr.bf16.mxu0 0
        %1910 = vmatpush2.bf16.msra.mxu0 %v1855
        %1911 = vmatprep.mubr.bf16.mxu0 %v1743
        %1912 = vmatmul.mubr.bf16.gmra.mxu0 %v1742
        %v1913 = vpop.f32.mrf.mxu0
        %v1914 = vadd.f32 %v1781, %v1913
        %v1915 = vpop.f32.mrf.mxu0
        %v1916 = vpop.f32.mrf.mxu0
        %v1917 = vadd.f32 %v1781, %v1916
        %v1918 = vpop.f32.mrf.mxu0
        %1919 = vdwg.mxu0
        %v1920 = vadd.f32 %v1914, %v1629
        %v1921 = vadd.f32 %v1917, %v1630
        %v1922 = vsel %vm506, %v1920, 0.0
        %1923 = vadd.xlane.f32.xlu0 %v1922
        %v1924 = vpop.xlane.xlu0 %1923
        %v1925 = vsel %vm506, %v1921, 0.0
        %1926 = vadd.xlane.f32.xlu0 %v1925
        %v1927 = vpop.xlane.xlu0 %1926
        %v1928 = vmul.f32 %v1924, %v1592
        %v1929 = vmul.f32 %v1927, %v1592
        %v1930 = vsub.f32 %v1920, %v1928
        %v1931 = vsub.f32 %v1921, %v1929
        %v1932 = vmul.f32 %v1930, %v1930
        %v1933 = vmul.f32 %v1931, %v1931
        %v1934 = vsel %vm506, %v1932, 0.0
        %1935 = vadd.xlane.f32.xlu0 %v1934
        %v1936 = vpop.xlane.xlu0 %1935
        %v1937 = vsel %vm506, %v1933, 0.0
        %1938 = vadd.xlane.f32.xlu0 %v1937
        %v1939 = vpop.xlane.xlu0 %1938
        %v1940 = vmul.f32 %v1936, %v1592
        %v1941 = vmul.f32 %v1939, %v1592
        %v1942 = vadd.f32 %v1940, 1e-05
        %v1943 = vadd.f32 %v1941, 1e-05
        %v1944 = vrsqrt.pop %v1942
        %v1945 = vrsqrt.pop %v1943
        %v1946 = vmul.f32 %v1930, %v1944
        %v1947 = vmul.f32 %v1931, %v1945
        %v1948 = vld [vmem:[%s11] sm:$0x1]
        %v1950 = vlaneseq
        %v1951 = vshrl.u32 %v1950, 7
        %v1952 = vsub.s32 0, %v1951
        %v1953 = vrot.slane %v1948, %v1952
        %v1955 = vmul.f32 %v1946, %v1953
        %v1956 = vmul.f32 %v1947, %v1953
        %v1957 = vld [vmem:[%s12] sm:$0x1]
        %v1959 = vlaneseq
        %v1960 = vshrl.u32 %v1959, 7
        %v1961 = vsub.s32 0, %v1960
        %v1962 = vrot.slane %v1957, %v1961
        %v1964 = vadd.f32 %v1955, %v1962
        %v1965 = vadd.f32 %v1956, %v1962
        %1966 = vst.msk [vmem:[%s434] sm:$0xff] %vm506, %v1964
        %1967 = vst.msk [vmem:[%s434 + $0x8] sm:$0xff] %vm506, %v1965
        %s1968 = sand.u32 %s313, 1
        %s1969 = scalar_lea.sflag [#allocation3], %s1968
        %s1970 = sand.u32 %s313, 1
        %s1971 = smul.addr %s1970, 16
        %s1972 = scalar_lea.vmem [#allocation2], %s1971
        // Predicated region
        $region73: #{tpu_custom_call.1} parent=71 // pred_check
          %p1973 = pneg %p323
        $region74: #{tpu_custom_call.1} parent=71 // pred_check_branch
          %1975 = sbr.rel (%p1973) target = $region76
        $region75: #{tpu_custom_call.1} parent=71 // pred_region
          %s1976 = smul.u32 2, %s27
          %s1978 = ssub.s32 256, 256
          %1979 = vsyncadd %s1969, %s1978
          %s1980 = smul.addr %s1976, 128
          %s1981 = scalar_lea.hbm %s13, %s1980
          %s1982 = sshll.u32 %s1972, 4
          %s1983 = int_to_ptr.vmem [resolvable:$true] %s1982
          %1988 = dma.vmem_to_hbm [thread:$0]  %s1983, 256, %s1981, %s1969, 128, 128, 8
        $region76: #{tpu_custom_call.1} parent=71 // pred_fallthru
          _
      $region72: #{tpu_custom_call.1} parent=5 // pred_fallthru
        _
      %p1989 = scmp.le.s32.totalorder 2, %s22
      // Predicated region
      $region77: #{tpu_custom_call.1} parent=5 // pred_check
        %p1990 = pneg %p1989
      $region78: #{tpu_custom_call.1} parent=5 // pred_check_branch
        %1992 = sbr.rel (%p1990) target = $region80
      $region79: #{tpu_custom_call.1} parent=5 // pred_region
        %s1993 = ssub.s32 %s22, 2
        // Predicated region
        $region81: #{tpu_custom_call.1} parent=79 // pred_check
          %p1994 = pneg %p329
        $region82: #{tpu_custom_call.1} parent=79 // pred_check_branch
          %1996 = sbr.rel (%p1994) target = $region84
        $region83: #{tpu_custom_call.1} parent=79 // pred_region
          %s1997 = sand.u32 %s314, 1
          %s1998 = scalar_lea.sflag [#allocation3], %s1997
          %s1999 = sand.u32 %s314, 1
          %s2000 = smul.addr %s1999, 16
          %s2001 = scalar_lea.vmem [#allocation2], %s2000
          %2002 = dma.done %s1998, 256
        $region84: #{tpu_custom_call.1} parent=79 // pred_fallthru
          _
      $region80: #{tpu_custom_call.1} parent=5 // pred_fallthru
        _
    $region6: #{tpu_custom_call.1} parent=1 // loop_footer
      %s26 = sadd.s32 1, %s22
    $region7: #{tpu_custom_call.1} parent=1 // loop_footer_branch
      %21 = sbr.rel target = $region3
    $region8: #{tpu_custom_call.1} parent=1 // loop_exit
      _
    %2003 = vsyncpa [#allocation3], 1
    %s2004 = scalar_lea.sflag [#allocation3], 1
    %2005 = vsyncpa %s2004, 1

</llo_original>
